<compile_context>
chip_gen: v5e
topology: v5e:2x2
jax: 0.10.0
libtpu: 0.0.40
codegen_flags: <defaults>
</compile_context>

<pallas_src>
import functools

import jax
import jax.numpy as jnp
from jax.experimental import pallas as pl
from jax.experimental.pallas import tpu as pltpu


_CP = 128   # packed conv-output lanes (lane-dense): [0:Fd]=domain conv, [Fd:Fd+Fc]=class conv
_KP = 128   # packed head-output lanes (lane-dense): [0:nd]=d, [nd:nd+nc]=y


# ----------------------------------------------------------------------------
# Fused Pallas kernel: conv(domain) + conv(class) + ReLU + GAP + both heads
# ----------------------------------------------------------------------------
def _fused_forward_kernel(x_ref, poolmat_ref, tmask_ref, wx_ref, wz_ref, b_ref,
                          wh1_ref, wh2_ref, bh_ref, o_ref, *, B, H, W, Fd, CP):
    WP = W + 2
    M = H * WP                        # H output rows x (W + 2 lane-wrap garbage cols)
    f32 = jnp.float32

    # --- tap-folded conv LHS built in VMEM: 9 shifted flat windows per sample ------------
    per_sample = []
    for b in range(B):                                        # static unroll, B is small
        taps = []
        for t in range(9):
            ky, kx = divmod(t, 3)
            off = ky * WP + kx
            taps.append(x_ref[b, off:off + M, :])             # (M, Cin)
        per_sample.append(jnp.concatenate(taps, axis=-1))     # (M, 9*Cin)
    lhs = per_sample[0] if B == 1 else jnp.concatenate(per_sample, axis=0)   # (B*M, 9*Cin)

    # --- ONE K=9*Cin MXU matmul = x-channel term of BOTH branch convs (+ packed biases) --
    pre = jnp.dot(lhs, wx_ref[...], preferred_element_type=f32) + b_ref[...]  # (B*M, CP)

    # --- domain branch: ReLU + block-diagonal masked global-average-pool on the MXU ------
    pooled_dom = jnp.dot(poolmat_ref[...], jnp.maximum(pre, 0.0),
                         preferred_element_type=f32)                           # (B, CP)

    # --- class branch: broadcast-zd conv contribution as two matmuls (no VPU passes) -----
    ct = jnp.dot(pooled_dom[:, :Fd], wz_ref[...],
                 preferred_element_type=f32)                                   # (B, 9*CP)
    ct = ct.reshape(B * 9, CP)                                                 # (B*9, CP)
    contrib = jnp.dot(tmask_ref[...], ct, preferred_element_type=f32)          # (B*M, CP)
    pooled_cls = jnp.dot(poolmat_ref[...], jnp.maximum(pre + contrib, 0.0),
                         preferred_element_type=f32)                           # (B, CP)

    # --- fused linear heads: lane-dense [d | y] rows, one per sample ---------------------
    o_ref[0] = (jnp.dot(pooled_dom, wh1_ref[...], preferred_element_type=f32)
                + jnp.dot(pooled_cls, wh2_ref[...], preferred_element_type=f32)
                + bh_ref[...])


# ----------------------------------------------------------------------------
# Wrapper (layout / weight packing glue only)
# ----------------------------------------------------------------------------
def multi_domain_forward(x_nchw, params, *, samples_per_step=8, mxu_dtype=jnp.float32):
    """Forward pass of MultiDomainModule.  Returns (d, y)."""
    w_fd, b_fd = params["w_fd"], params["b_fd"]      # (3,3,Cin,Fd), (Fd,)
    w_fc, b_fc = params["w_fc"], params["b_fc"]      # (3,3,Cin+Fd,Fc), (Fc,)
    w_dom, b_dom = params["w_dom"], params["b_dom"]  # (Fd,nd), (nd,)
    w_cls, b_cls = params["w_cls"], params["b_cls"]  # (Fc,nc), (nc,)

    x = jnp.transpose(x_nchw, (0, 2, 3, 1)).astype(jnp.float32)          # NCHW -> NHWC
    N, H, W, Cin = x.shape
    Fd, Fc = w_fd.shape[-1], w_fc.shape[-1]
    nd, nc = w_dom.shape[-1], w_cls.shape[-1]
    assert w_fc.shape[2] == Cin + Fd
    assert Fd + Fc <= _CP and nd + nc <= _KP

    # Samples per grid step (amortizes per-step fixed overhead and grows the conv M dim).
    # At production N keep the grid length a multiple of 2 so both v7x TensorCores get work.
    B = max(b for b in range(1, min(samples_per_step, N) + 1) if N % b == 0)

    WP = W + 2
    M = H * WP                                       # conv rows incl. lane-wrap garbage
    R = -(-((H + 2) * WP + 2) // 8) * 8              # flat rows + slack for largest tap shift

    # Zero-padded, spatially flattened input (the ONLY per-pixel HBM stream; no im2col).
    xp = jnp.pad(x, ((0, 0), (1, 1), (1, 1), (0, 0)))
    xflat = xp.reshape(N, (H + 2) * WP, Cin)
    xflat = jnp.pad(xflat, ((0, 0), (0, R - (H + 2) * WP), (0, 0))).astype(mxu_dtype)

    # Static masks: valid output pixels (pool) and valid conv taps at the borders.
    q = jnp.arange(M, dtype=jnp.int32)
    r, c = q // WP, q % WP
    pool_row = jnp.where(c < W, 1.0 / (H * W), 0.0).astype(jnp.float32)        # (M,)
    pool_mat = jnp.kron(jnp.eye(B, dtype=jnp.float32), pool_row[None, :])      # (B, B*M)
    tcols = []
    for ky in range(3):
        for kx in range(3):
            inside = (r + ky >= 1) & (r + ky <= H) & (c + kx >= 1) & (c + kx <= W)
            tcols.append(jnp.where(inside, 1.0, 0.0))
    tmask_single = jnp.stack(tcols, axis=1).astype(jnp.float32)                # (M, 9)
    tmask_mat = jnp.kron(jnp.eye(B, dtype=jnp.float32), tmask_single)          # (B*M, B*9)

    # Lane-dense packed weights.  Conv cols [0:Fd]=domain, [Fd:Fd+Fc]=class; head cols
    # [0:nd]=d, [nd:nd+nc]=y.  wx rows are tap-major (matches the in-kernel LHS fold);
    # wz is only its non-zero (Fd, 9*CP) block (tap-major 128-column groups).
    wx = jnp.zeros((9 * Cin, _CP), jnp.float32)
    wz = jnp.zeros((Fd, 9 * _CP), jnp.float32)
    for t in range(9):
        ky, kx = divmod(t, 3)
        wx = wx.at[t * Cin:(t + 1) * Cin, :Fd].set(w_fd[ky, kx])
        wx = wx.at[t * Cin:(t + 1) * Cin, Fd:Fd + Fc].set(w_fc[ky, kx, :Cin, :])
        wz = wz.at[:, t * _CP + Fd:t * _CP + Fd + Fc].set(w_fc[ky, kx, Cin:, :])
    wx = wx.astype(mxu_dtype)
    bias = jnp.zeros((1, _CP), jnp.float32).at[0, :Fd].set(b_fd).at[0, Fd:Fd + Fc].set(b_fc)
    wh1 = jnp.zeros((_CP, _KP), jnp.float32).at[:Fd, :nd].set(w_dom)
    wh2 = jnp.zeros((_CP, _KP), jnp.float32).at[Fd:Fd + Fc, nd:nd + nc].set(w_cls)
    bh = jnp.zeros((1, _KP), jnp.float32).at[0, :nd].set(b_dom).at[0, nd:nd + nc].set(b_cls)

    kernel = functools.partial(_fused_forward_kernel, B=B, H=H, W=W, Fd=Fd, CP=_CP)

    flops = N * (2 * M * (9 * Cin) * _CP + 4 * M * _CP + 2 * M * 9 * _CP
                 + 2 * Fd * 9 * _CP + 4 * _CP * _KP)
    const_bytes = 4 * (pool_mat.size + tmask_mat.size + wz.size + bias.size
                       + wh1.size + wh2.size + bh.size) + wx.size * wx.dtype.itemsize
    bytes_accessed = xflat.size * xflat.dtype.itemsize + const_bytes + 4 * N * _KP

    # Explicit scoped-VMEM budget: double-buffered inputs + in-flight (B*M, 128) f32 temps.
    step_in_bytes = B * R * Cin * xflat.dtype.itemsize + const_bytes + 4 * B * _KP
    scratch_bytes = 6 * B * M * _CP * 4
    vmem_limit = int(min(32 * 2 ** 20, max(8 * 2 ** 20, 2 * step_in_bytes + scratch_bytes)))

    out = pl.pallas_call(
        kernel,
        out_shape=jax.ShapeDtypeStruct((N // B, B, _KP), jnp.float32),
        grid=(N // B,),
        in_specs=[
            pl.BlockSpec((B, R, Cin), lambda i: (i, 0, 0)),        # padded, flattened x slabs
            pl.BlockSpec((B, B * M), lambda i: (0, 0)),            # block-diag pooling matrix
            pl.BlockSpec((B * M, B * 9), lambda i: (0, 0)),        # block-diag border tap masks
            pl.BlockSpec((9 * Cin, _CP), lambda i: (0, 0)),        # packed conv weights (x part)
            pl.BlockSpec((Fd, 9 * _CP), lambda i: (0, 0)),         # packed conv weights (zd part)
            pl.BlockSpec((1, _CP), lambda i: (0, 0)),              # packed conv biases
            pl.BlockSpec((_CP, _KP), lambda i: (0, 0)),            # packed domain head
            pl.BlockSpec((_CP, _KP), lambda i: (0, 0)),            # packed classifier head
            pl.BlockSpec((1, _KP), lambda i: (0, 0)),              # packed head biases
        ],
        out_specs=pl.BlockSpec((1, B, _KP), lambda i: (i, 0, 0)),
        compiler_params=pltpu.CompilerParams(
            dimension_semantics=("parallel",),
            vmem_limit_bytes=vmem_limit),
        cost_estimate=pl.CostEstimate(flops=int(flops), transcendentals=0,
                                      bytes_accessed=int(bytes_accessed)),
    )(xflat, pool_mat, tmask_mat, wx, wz, bias, wh1, wh2, bh)

    out = out.reshape(N, _KP)
    d = out[:, :nd]
    y = out[:, nd:nd + nc]
    return d, y


# ----------------------------------------------------------------------------
# Plain-JAX reference (for correctness check)
# ----------------------------------------------------------------------------
def _ref_conv_relu_gap(x_nhwc, w_hwio, b):
    y = jax.lax.conv_general_dilated(
        x_nhwc, w_hwio, window_strides=(1, 1), padding="SAME",
        dimension_numbers=("NHWC", "HWIO", "NHWC"))
    y = jnp.maximum(y + b, 0.0)
    return jnp.mean(y, axis=(1, 2))


def reference_forward(x_nchw, params):
    x = jnp.transpose(x_nchw, (0, 2, 3, 1))
    zd = _ref_conv_relu_gap(x, params["w_fd"], params["b_fd"])
    d = zd @ params["w_dom"] + params["b_dom"]
    n, h, w, _ = x.shape
    z_ = jnp.broadcast_to(zd[:, None, None, :], (n, h, w, zd.shape[1]))
    x_ = jnp.concatenate([x, z_], axis=-1)
    zy = _ref_conv_relu_gap(x_, params["w_fc"], params["b_fc"])
    y = zy @ params["w_cls"] + params["b_cls"]
    return d, y


# ----------------------------------------------------------------------------
# Main
# ----------------------------------------------------------------------------
if __name__ == "__main__":
    N, Cin, H, W = 2, 4, 16, 16
    Fd, Fc = 8, 8
    n_domains, n_classes = 3, 5

    key = jax.random.PRNGKey(0)
    ks = jax.random.split(key, 9)
    params = {
        "w_fd": 0.1 * jax.random.normal(ks[0], (3, 3, Cin, Fd), jnp.float32),
        "b_fd": 0.1 * jax.random.normal(ks[1], (Fd,), jnp.float32),
        "w_dom": 0.1 * jax.random.normal(ks[2], (Fd, n_domains), jnp.float32),
        "b_dom": 0.1 * jax.random.normal(ks[3], (n_domains,), jnp.float32),
        "w_fc": 0.1 * jax.random.normal(ks[4], (3, 3, Cin + Fd, Fc), jnp.float32),
        "b_fc": 0.1 * jax.random.normal(ks[5], (Fc,), jnp.float32),
        "w_cls": 0.1 * jax.random.normal(ks[6], (Fc, n_classes), jnp.float32),
        "b_cls": 0.1 * jax.random.normal(ks[7], (n_classes,), jnp.float32),
    }
    x = jax.random.normal(ks[8], (N, Cin, H, W), jnp.float32)  # PyTorch NCHW

    fwd = jax.jit(multi_domain_forward)
    d, y = jax.block_until_ready(fwd(x, params))
    d_ref, y_ref = jax.block_until_ready(reference_forward(x, params))

    assert d.shape == (N, n_domains) and y.shape == (N, n_classes)
    assert jnp.allclose(d, d_ref, atol=1e-4, rtol=1e-4)
    assert jnp.allclose(y, y_ref, atol=1e-4, rtol=1e-4)

    print("KERNEL_OK")
</pallas_src>

<mosaic_0001>
module attributes {stable_mosaic.version = 11 : i64} {
  func.func @_fused_forward_kernel(%arg0: i32, %arg1: memref<2x328x4xf32, #tpu.memory_space<vmem>>, %arg2: memref<2x576xf32, #tpu.memory_space<vmem>>, %arg3: memref<576x18xf32, #tpu.memory_space<vmem>>, %arg4: memref<36x128xf32, #tpu.memory_space<vmem>>, %arg5: memref<8x1152xf32, #tpu.memory_space<vmem>>, %arg6: memref<1x128xf32, #tpu.memory_space<vmem>>, %arg7: memref<128x128xf32, #tpu.memory_space<vmem>>, %arg8: memref<128x128xf32, #tpu.memory_space<vmem>>, %arg9: memref<1x128xf32, #tpu.memory_space<vmem>>, %arg10: memref<1x2x128xf32, #tpu.memory_space<vmem>>) attributes {dimension_semantics = [#tpu.dimension_semantics<parallel>], iteration_bounds = array<i64: 1>, scalar_prefetch = 0 : i64, scratch_operands = 0 : i64, tpu.core_type = #tpu.core_type<tc>, window_params = [{transform_indices = @transform_0, window_bounds = array<i64: 2, 328, 4>}, {pipeline_mode = #tpu.pipeline_mode<synchronous>, transform_indices = @transform_1, window_bounds = array<i64: 2, 576>}, {pipeline_mode = #tpu.pipeline_mode<synchronous>, transform_indices = @transform_2, window_bounds = array<i64: 576, 18>}, {pipeline_mode = #tpu.pipeline_mode<synchronous>, transform_indices = @transform_3, window_bounds = array<i64: 36, 128>}, {pipeline_mode = #tpu.pipeline_mode<synchronous>, transform_indices = @transform_4, window_bounds = array<i64: 8, 1152>}, {pipeline_mode = #tpu.pipeline_mode<synchronous>, transform_indices = @transform_5, window_bounds = array<i64: 1, 128>}, {pipeline_mode = #tpu.pipeline_mode<synchronous>, transform_indices = @transform_6, window_bounds = array<i64: 128, 128>}, {pipeline_mode = #tpu.pipeline_mode<synchronous>, transform_indices = @transform_7, window_bounds = array<i64: 128, 128>}, {pipeline_mode = #tpu.pipeline_mode<synchronous>, transform_indices = @transform_8, window_bounds = array<i64: 1, 128>}, {transform_indices = @transform_9, window_bounds = array<i64: 1, 2, 128>}]} {
    %c0 = arith.constant 0 : index
    %c0_0 = arith.constant 0 : index
    %c0_1 = arith.constant 0 : index
    %0 = vector.load %arg1[%c0, %c0_0, %c0_1] : memref<2x328x4xf32, #tpu.memory_space<vmem>>, vector<1x288x4xf32>
    %1 = vector.shape_cast %0 : vector<1x288x4xf32> to vector<288x4xf32>
    %c0_2 = arith.constant 0 : index
    %c1 = arith.constant 1 : index
    %c0_3 = arith.constant 0 : index
    %2 = vector.load %arg1[%c0_2, %c1, %c0_3] : memref<2x328x4xf32, #tpu.memory_space<vmem>>, vector<1x288x4xf32>
    %3 = vector.shape_cast %2 : vector<1x288x4xf32> to vector<288x4xf32>
    %c0_4 = arith.constant 0 : index
    %c2 = arith.constant 2 : index
    %c0_5 = arith.constant 0 : index
    %4 = vector.load %arg1[%c0_4, %c2, %c0_5] : memref<2x328x4xf32, #tpu.memory_space<vmem>>, vector<1x288x4xf32>
    %5 = vector.shape_cast %4 : vector<1x288x4xf32> to vector<288x4xf32>
    %c0_6 = arith.constant 0 : index
    %c18 = arith.constant 18 : index
    %c0_7 = arith.constant 0 : index
    %6 = vector.load %arg1[%c0_6, %c18, %c0_7] : memref<2x328x4xf32, #tpu.memory_space<vmem>>, vector<1x288x4xf32>
    %7 = vector.shape_cast %6 : vector<1x288x4xf32> to vector<288x4xf32>
    %c0_8 = arith.constant 0 : index
    %c19 = arith.constant 19 : index
    %c0_9 = arith.constant 0 : index
    %8 = vector.load %arg1[%c0_8, %c19, %c0_9] : memref<2x328x4xf32, #tpu.memory_space<vmem>>, vector<1x288x4xf32>
    %9 = vector.shape_cast %8 : vector<1x288x4xf32> to vector<288x4xf32>
    %c0_10 = arith.constant 0 : index
    %c20 = arith.constant 20 : index
    %c0_11 = arith.constant 0 : index
    %10 = vector.load %arg1[%c0_10, %c20, %c0_11] : memref<2x328x4xf32, #tpu.memory_space<vmem>>, vector<1x288x4xf32>
    %11 = vector.shape_cast %10 : vector<1x288x4xf32> to vector<288x4xf32>
    %c0_12 = arith.constant 0 : index
    %c36 = arith.constant 36 : index
    %c0_13 = arith.constant 0 : index
    %12 = vector.load %arg1[%c0_12, %c36, %c0_13] : memref<2x328x4xf32, #tpu.memory_space<vmem>>, vector<1x288x4xf32>
    %13 = vector.shape_cast %12 : vector<1x288x4xf32> to vector<288x4xf32>
    %c0_14 = arith.constant 0 : index
    %c37 = arith.constant 37 : index
    %c0_15 = arith.constant 0 : index
    %14 = vector.load %arg1[%c0_14, %c37, %c0_15] : memref<2x328x4xf32, #tpu.memory_space<vmem>>, vector<1x288x4xf32>
    %15 = vector.shape_cast %14 : vector<1x288x4xf32> to vector<288x4xf32>
    %c0_16 = arith.constant 0 : index
    %c38 = arith.constant 38 : index
    %c0_17 = arith.constant 0 : index
    %16 = vector.load %arg1[%c0_16, %c38, %c0_17] : memref<2x328x4xf32, #tpu.memory_space<vmem>>, vector<1x288x4xf32>
    %17 = vector.shape_cast %16 : vector<1x288x4xf32> to vector<288x4xf32>
    %18 = tpu.concatenate %1, %3, %5, %7, %9, %11, %13, %15, %17 in 1 : vector<288x4xf32>, vector<288x4xf32>, vector<288x4xf32>, vector<288x4xf32>, vector<288x4xf32>, vector<288x4xf32>, vector<288x4xf32>, vector<288x4xf32>, vector<288x4xf32> -> vector<288x36xf32>
    %c1_18 = arith.constant 1 : index
    %c0_19 = arith.constant 0 : index
    %c0_20 = arith.constant 0 : index
    %19 = vector.load %arg1[%c1_18, %c0_19, %c0_20] : memref<2x328x4xf32, #tpu.memory_space<vmem>>, vector<1x288x4xf32>
    %20 = vector.shape_cast %19 : vector<1x288x4xf32> to vector<288x4xf32>
    %c1_21 = arith.constant 1 : index
    %c1_22 = arith.constant 1 : index
    %c0_23 = arith.constant 0 : index
    %21 = vector.load %arg1[%c1_21, %c1_22, %c0_23] : memref<2x328x4xf32, #tpu.memory_space<vmem>>, vector<1x288x4xf32>
    %22 = vector.shape_cast %21 : vector<1x288x4xf32> to vector<288x4xf32>
    %c1_24 = arith.constant 1 : index
    %c2_25 = arith.constant 2 : index
    %c0_26 = arith.constant 0 : index
    %23 = vector.load %arg1[%c1_24, %c2_25, %c0_26] : memref<2x328x4xf32, #tpu.memory_space<vmem>>, vector<1x288x4xf32>
    %24 = vector.shape_cast %23 : vector<1x288x4xf32> to vector<288x4xf32>
    %c1_27 = arith.constant 1 : index
    %c18_28 = arith.constant 18 : index
    %c0_29 = arith.constant 0 : index
    %25 = vector.load %arg1[%c1_27, %c18_28, %c0_29] : memref<2x328x4xf32, #tpu.memory_space<vmem>>, vector<1x288x4xf32>
    %26 = vector.shape_cast %25 : vector<1x288x4xf32> to vector<288x4xf32>
    %c1_30 = arith.constant 1 : index
    %c19_31 = arith.constant 19 : index
    %c0_32 = arith.constant 0 : index
    %27 = vector.load %arg1[%c1_30, %c19_31, %c0_32] : memref<2x328x4xf32, #tpu.memory_space<vmem>>, vector<1x288x4xf32>
    %28 = vector.shape_cast %27 : vector<1x288x4xf32> to vector<288x4xf32>
    %c1_33 = arith.constant 1 : index
    %c20_34 = arith.constant 20 : index
    %c0_35 = arith.constant 0 : index
    %29 = vector.load %arg1[%c1_33, %c20_34, %c0_35] : memref<2x328x4xf32, #tpu.memory_space<vmem>>, vector<1x288x4xf32>
    %30 = vector.shape_cast %29 : vector<1x288x4xf32> to vector<288x4xf32>
    %c1_36 = arith.constant 1 : index
    %c36_37 = arith.constant 36 : index
    %c0_38 = arith.constant 0 : index
    %31 = vector.load %arg1[%c1_36, %c36_37, %c0_38] : memref<2x328x4xf32, #tpu.memory_space<vmem>>, vector<1x288x4xf32>
    %32 = vector.shape_cast %31 : vector<1x288x4xf32> to vector<288x4xf32>
    %c1_39 = arith.constant 1 : index
    %c37_40 = arith.constant 37 : index
    %c0_41 = arith.constant 0 : index
    %33 = vector.load %arg1[%c1_39, %c37_40, %c0_41] : memref<2x328x4xf32, #tpu.memory_space<vmem>>, vector<1x288x4xf32>
    %34 = vector.shape_cast %33 : vector<1x288x4xf32> to vector<288x4xf32>
    %c1_42 = arith.constant 1 : index
    %c38_43 = arith.constant 38 : index
    %c0_44 = arith.constant 0 : index
    %35 = vector.load %arg1[%c1_42, %c38_43, %c0_44] : memref<2x328x4xf32, #tpu.memory_space<vmem>>, vector<1x288x4xf32>
    %36 = vector.shape_cast %35 : vector<1x288x4xf32> to vector<288x4xf32>
    %37 = tpu.concatenate %20, %22, %24, %26, %28, %30, %32, %34, %36 in 1 : vector<288x4xf32>, vector<288x4xf32>, vector<288x4xf32>, vector<288x4xf32>, vector<288x4xf32>, vector<288x4xf32>, vector<288x4xf32>, vector<288x4xf32>, vector<288x4xf32> -> vector<288x36xf32>
    %38 = tpu.concatenate %18, %37 in 0 : vector<288x36xf32>, vector<288x36xf32> -> vector<576x36xf32>
    %c0_45 = arith.constant 0 : index
    %c0_46 = arith.constant 0 : index
    %39 = vector.load %arg4[%c0_45, %c0_46] : memref<36x128xf32, #tpu.memory_space<vmem>>, vector<36x128xf32>
    %cst = arith.constant dense<0.000000e+00> : vector<576x128xf32>
    %40 = tpu.matmul %38, %39, %cst {dimension_numbers = #tpu.dot_dimension_numbers<[1], [0], [0], [1], [0, 0, 1, 1], [], []>} : vector<576x36xf32>, vector<36x128xf32>, vector<576x128xf32> -> vector<576x128xf32>
    %c0_47 = arith.constant 0 : index
    %c0_48 = arith.constant 0 : index
    %41 = vector.load %arg6[%c0_47, %c0_48] : memref<1x128xf32, #tpu.memory_space<vmem>>, vector<1x128xf32>
    %42 = vector.broadcast %41 : vector<1x128xf32> to vector<576x128xf32>
    %43 = arith.addf %40, %42 : vector<576x128xf32>
    %c0_49 = arith.constant 0 : index
    %c0_50 = arith.constant 0 : index
    %44 = vector.load %arg2[%c0_49, %c0_50] : memref<2x576xf32, #tpu.memory_space<vmem>>, vector<2x576xf32>
    %cst_51 = arith.constant 0.000000e+00 : f32
    %45 = vector.broadcast %cst_51 : f32 to vector<576x128xf32>
    %46 = arith.maximumf %43, %45 : vector<576x128xf32>
    %cst_52 = arith.constant dense<0.000000e+00> : vector<2x128xf32>
    %47 = tpu.matmul %44, %46, %cst_52 {dimension_numbers = #tpu.dot_dimension_numbers<[1], [0], [0], [1], [0, 0, 1, 1], [], []>} : vector<2x576xf32>, vector<576x128xf32>, vector<2x128xf32> -> vector<2x128xf32>
    %48 = vector.extract_strided_slice %47 {offsets = [0, 0], sizes = [2, 8], strides = [1, 1]} : vector<2x128xf32> to vector<2x8xf32>
    %c0_53 = arith.constant 0 : index
    %c0_54 = arith.constant 0 : index
    %49 = vector.load %arg5[%c0_53, %c0_54] : memref<8x1152xf32, #tpu.memory_space<vmem>>, vector<8x1152xf32>
    %cst_55 = arith.constant dense<0.000000e+00> : vector<2x1152xf32>
    %50 = tpu.matmul %48, %49, %cst_55 {dimension_numbers = #tpu.dot_dimension_numbers<[1], [0], [0], [1], [0, 0, 1, 1], [], []>} : vector<2x8xf32>, vector<8x1152xf32>, vector<2x1152xf32> -> vector<2x1152xf32>
    %51 = vector.shape_cast %50 : vector<2x1152xf32> to vector<18x128xf32>
    %c0_56 = arith.constant 0 : index
    %c0_57 = arith.constant 0 : index
    %52 = vector.load %arg3[%c0_56, %c0_57] : memref<576x18xf32, #tpu.memory_space<vmem>>, vector<576x18xf32>
    %cst_58 = arith.constant dense<0.000000e+00> : vector<576x128xf32>
    %53 = tpu.matmul %52, %51, %cst_58 {dimension_numbers = #tpu.dot_dimension_numbers<[1], [0], [0], [1], [0, 0, 1, 1], [], []>} : vector<576x18xf32>, vector<18x128xf32>, vector<576x128xf32> -> vector<576x128xf32>
    %c0_59 = arith.constant 0 : index
    %c0_60 = arith.constant 0 : index
    %54 = vector.load %arg2[%c0_59, %c0_60] : memref<2x576xf32, #tpu.memory_space<vmem>>, vector<2x576xf32>
    %55 = arith.addf %43, %53 : vector<576x128xf32>
    %cst_61 = arith.constant 0.000000e+00 : f32
    %56 = vector.broadcast %cst_61 : f32 to vector<576x128xf32>
    %57 = arith.maximumf %55, %56 : vector<576x128xf32>
    %cst_62 = arith.constant dense<0.000000e+00> : vector<2x128xf32>
    %58 = tpu.matmul %54, %57, %cst_62 {dimension_numbers = #tpu.dot_dimension_numbers<[1], [0], [0], [1], [0, 0, 1, 1], [], []>} : vector<2x576xf32>, vector<576x128xf32>, vector<2x128xf32> -> vector<2x128xf32>
    %c0_63 = arith.constant 0 : index
    %c0_64 = arith.constant 0 : index
    %59 = vector.load %arg7[%c0_63, %c0_64] : memref<128x128xf32, #tpu.memory_space<vmem>>, vector<128x128xf32>
    %cst_65 = arith.constant dense<0.000000e+00> : vector<2x128xf32>
    %60 = tpu.matmul %47, %59, %cst_65 {dimension_numbers = #tpu.dot_dimension_numbers<[1], [0], [0], [1], [0, 0, 1, 1], [], []>} : vector<2x128xf32>, vector<128x128xf32>, vector<2x128xf32> -> vector<2x128xf32>
    %c0_66 = arith.constant 0 : index
    %c0_67 = arith.constant 0 : index
    %61 = vector.load %arg8[%c0_66, %c0_67] : memref<128x128xf32, #tpu.memory_space<vmem>>, vector<128x128xf32>
    %cst_68 = arith.constant dense<0.000000e+00> : vector<2x128xf32>
    %62 = tpu.matmul %58, %61, %cst_68 {dimension_numbers = #tpu.dot_dimension_numbers<[1], [0], [0], [1], [0, 0, 1, 1], [], []>} : vector<2x128xf32>, vector<128x128xf32>, vector<2x128xf32> -> vector<2x128xf32>
    %63 = arith.addf %60, %62 : vector<2x128xf32>
    %c0_69 = arith.constant 0 : index
    %c0_70 = arith.constant 0 : index
    %64 = vector.load %arg9[%c0_69, %c0_70] : memref<1x128xf32, #tpu.memory_space<vmem>>, vector<1x128xf32>
    %65 = vector.broadcast %64 : vector<1x128xf32> to vector<2x128xf32>
    %66 = arith.addf %63, %65 : vector<2x128xf32>
    %c0_71 = arith.constant 0 : index
    %c0_72 = arith.constant 0 : index
    %c0_73 = arith.constant 0 : index
    %67 = vector.load %arg10[%c0_71, %c0_72, %c0_73] : memref<1x2x128xf32, #tpu.memory_space<vmem>>, vector<1x2x128xf32>
    %68 = vector.shape_cast %67 : vector<1x2x128xf32> to vector<2x128xf32>
    %69 = vector.shape_cast %66 : vector<2x128xf32> to vector<1x2x128xf32>
    tpu.vector_store %arg10[%c0_71, %c0_72, %c0_73], %69 {strides = array<i32>} : memref<1x2x128xf32, #tpu.memory_space<vmem>>, vector<1x2x128xf32>,
    return
  }
  func.func @transform_0(%arg0: i32) -> (i32, i32, i32) {
    %c0_i32 = arith.constant 0 : i32
    %c0_i32_0 = arith.constant 0 : i32
    %c0_i32_1 = arith.constant 0 : i32
    return %arg0, %c0_i32, %c0_i32_0 : i32, i32, i32
  }
  func.func @transform_1(%arg0: i32) -> (i32, i32) {
    %c0_i32 = arith.constant 0 : i32
    %c0_i32_0 = arith.constant 0 : i32
    %c0_i32_1 = arith.constant 0 : i32
    return %c0_i32, %c0_i32_0 : i32, i32
  }
  func.func @transform_2(%arg0: i32) -> (i32, i32) {
    %c0_i32 = arith.constant 0 : i32
    %c0_i32_0 = arith.constant 0 : i32
    %c0_i32_1 = arith.constant 0 : i32
    return %c0_i32, %c0_i32_0 : i32, i32
  }
  func.func @transform_3(%arg0: i32) -> (i32, i32) {
    %c0_i32 = arith.constant 0 : i32
    %c0_i32_0 = arith.constant 0 : i32
    %c0_i32_1 = arith.constant 0 : i32
    return %c0_i32, %c0_i32_0 : i32, i32
  }
  func.func @transform_4(%arg0: i32) -> (i32, i32) {
    %c0_i32 = arith.constant 0 : i32
    %c0_i32_0 = arith.constant 0 : i32
    %c0_i32_1 = arith.constant 0 : i32
    return %c0_i32, %c0_i32_0 : i32, i32
  }
  func.func @transform_5(%arg0: i32) -> (i32, i32) {
    %c0_i32 = arith.constant 0 : i32
    %c0_i32_0 = arith.constant 0 : i32
    %c0_i32_1 = arith.constant 0 : i32
    return %c0_i32, %c0_i32_0 : i32, i32
  }
  func.func @transform_6(%arg0: i32) -> (i32, i32) {
    %c0_i32 = arith.constant 0 : i32
    %c0_i32_0 = arith.constant 0 : i32
    %c0_i32_1 = arith.constant 0 : i32
    return %c0_i32, %c0_i32_0 : i32, i32
  }
  func.func @transform_7(%arg0: i32) -> (i32, i32) {
    %c0_i32 = arith.constant 0 : i32
    %c0_i32_0 = arith.constant 0 : i32
    %c0_i32_1 = arith.constant 0 : i32
    return %c0_i32, %c0_i32_0 : i32, i32
  }
  func.func @transform_8(%arg0: i32) -> (i32, i32) {
    %c0_i32 = arith.constant 0 : i32
    %c0_i32_0 = arith.constant 0 : i32
    %c0_i32_1 = arith.constant 0 : i32
    return %c0_i32, %c0_i32_0 : i32, i32
  }
  func.func @transform_9(%arg0: i32) -> (i32, i32, i32) {
    %c0_i32 = arith.constant 0 : i32
    %c0_i32_0 = arith.constant 0 : i32
    %c0_i32_1 = arith.constant 0 : i32
    return %arg0, %c0_i32, %c0_i32_0 : i32, i32, i32
  }
}

</mosaic_0001>

<llo_original>
// kernel: multi_domain_forward.1
$region0: #{multi_domain_forward.1}
  #allocation0 [shape = 'u32[]', space=smem, size = 0x4, offset = 0x4, fixed_abs, tag = 'smem constant byte address 0x4 - core index']
  #allocation1 [shape = 'u32[72,128]{1,0:T(1,128)}', space=vmem, size = 0x9000, scoped, tag = 'internal scratch']
  %s0 = inlined_call_operand.vmem [shape: f32[2,328,4], index: 0, kind: input, shape index: {}]
  %s1 = inlined_call_operand.vmem [shape: f32[2,576], index: 1, kind: input, shape index: {}]
  %s2 = inlined_call_operand.vmem [shape: f32[576,18], index: 2, kind: input, shape index: {}]
  %s3 = inlined_call_operand.vmem [shape: f32[36,128], index: 3, kind: input, shape index: {}]
  %s4 = inlined_call_operand.vmem [shape: f32[8,1152], index: 4, kind: input, shape index: {}]
  %s5 = inlined_call_operand.vmem [shape: f32[1,128], index: 5, kind: input, shape index: {}]
  %s6 = inlined_call_operand.vmem [shape: f32[128,128], index: 6, kind: input, shape index: {}]
  %s7 = inlined_call_operand.vmem [shape: f32[128,128], index: 7, kind: input, shape index: {}]
  %s8 = inlined_call_operand.vmem [shape: f32[1,128], index: 8, kind: input, shape index: {}]
  %s9 = inlined_call_operand.vmem [shape: f32[1,2,128], index: 9, kind: output, shape index: {}]
  %s10 = sld [smem:[#allocation0]]
  $region46: #{multi_domain_forward.1} parent=0
    _
  %s12 = ssub.s32 1, %s10
  %s13 = scalar_select 0, %s12, %s10
  // Predicated region
  $region2: #{multi_domain_forward.1} parent=0 // pred_check
    _
  $region3: #{multi_domain_forward.1} parent=0 // pred_check_branch
    %15 = sbr.rel (0) target = $region5
  $region4: #{multi_domain_forward.1} parent=0 // pred_region
    _
  $region5: #{multi_domain_forward.1} parent=0 // pred_fallthru
    _
  // Predicated region
  $region6: #{multi_domain_forward.1} parent=0 // pred_check
    _
  $region7: #{multi_domain_forward.1} parent=0 // pred_check_branch
    %17 = sbr.rel (0) target = $region9
  $region8: #{multi_domain_forward.1} parent=0 // pred_region
    _
  $region9: #{multi_domain_forward.1} parent=0 // pred_fallthru
    _
  // Predicated region
  $region10: #{multi_domain_forward.1} parent=0 // pred_check
    _
  $region11: #{multi_domain_forward.1} parent=0 // pred_check_branch
    %19 = sbr.rel (0) target = $region13
  $region12: #{multi_domain_forward.1} parent=0 // pred_region
    _
  $region13: #{multi_domain_forward.1} parent=0 // pred_fallthru
    _
  // Predicated region
  $region14: #{multi_domain_forward.1} parent=0 // pred_check
    _
  $region15: #{multi_domain_forward.1} parent=0 // pred_check_branch
    %21 = sbr.rel (0) target = $region17
  $region16: #{multi_domain_forward.1} parent=0 // pred_region
    _
  $region17: #{multi_domain_forward.1} parent=0 // pred_fallthru
    _
  // Predicated region
  $region18: #{multi_domain_forward.1} parent=0 // pred_check
    _
  $region19: #{multi_domain_forward.1} parent=0 // pred_check_branch
    %23 = sbr.rel (0) target = $region21
  $region20: #{multi_domain_forward.1} parent=0 // pred_region
    _
  $region21: #{multi_domain_forward.1} parent=0 // pred_fallthru
    _
  // Predicated region
  $region22: #{multi_domain_forward.1} parent=0 // pred_check
    _
  $region23: #{multi_domain_forward.1} parent=0 // pred_check_branch
    %25 = sbr.rel (0) target = $region25
  $region24: #{multi_domain_forward.1} parent=0 // pred_region
    _
  $region25: #{multi_domain_forward.1} parent=0 // pred_fallthru
    _
  // Predicated region
  $region26: #{multi_domain_forward.1} parent=0 // pred_check
    _
  $region27: #{multi_domain_forward.1} parent=0 // pred_check_branch
    %27 = sbr.rel (0) target = $region29
  $region28: #{multi_domain_forward.1} parent=0 // pred_region
    _
  $region29: #{multi_domain_forward.1} parent=0 // pred_fallthru
    _
  // Predicated region
  $region30: #{multi_domain_forward.1} parent=0 // pred_check
    _
  $region31: #{multi_domain_forward.1} parent=0 // pred_check_branch
    %29 = sbr.rel (0) target = $region33
  $region32: #{multi_domain_forward.1} parent=0 // pred_region
    _
  $region33: #{multi_domain_forward.1} parent=0 // pred_fallthru
    _
  // Predicated region
  $region34: #{multi_domain_forward.1} parent=0 // pred_check
    _
  $region35: #{multi_domain_forward.1} parent=0 // pred_check_branch
    %31 = sbr.rel (0) target = $region37
  $region36: #{multi_domain_forward.1} parent=0 // pred_region
    _
  $region37: #{multi_domain_forward.1} parent=0 // pred_fallthru
    _
  %v32 = vld [vmem:[%s0] sm:$0xff]
  %v33 = vld [vmem:[%s0 + $0x8] sm:$0xff]
  %v34 = vld [vmem:[%s0 + $0x10] sm:$0xff]
  %v35 = vld [vmem:[%s0 + $0x18] sm:$0xff]
  %v36 = vld [vmem:[%s0 + $0x20] sm:$0xff]
  %v37 = vld [vmem:[%s0 + $0x28] sm:$0xff]
  %v38 = vld [vmem:[%s0 + $0x30] sm:$0xff]
  %v39 = vld [vmem:[%s0 + $0x38] sm:$0xff]
  %v40 = vld [vmem:[%s0 + $0x40] sm:$0xff]
  %v41 = vld [vmem:[%s0 + $0x48] sm:$0xff]
  %v42 = vld [vmem:[%s0 + $0x50] sm:$0xff]
  %v43 = vld [vmem:[%s0 + $0x58] sm:$0xff]
  %v44 = vld [vmem:[%s0 + $0x60] sm:$0xff]
  %v45 = vld [vmem:[%s0 + $0x68] sm:$0xff]
  %v46 = vld [vmem:[%s0 + $0x70] sm:$0xff]
  %v47 = vld [vmem:[%s0 + $0x78] sm:$0xff]
  %v48 = vld [vmem:[%s0 + $0x80] sm:$0xff]
  %v49 = vld [vmem:[%s0 + $0x88] sm:$0xff]
  %v50 = vld [vmem:[%s0 + $0x90] sm:$0xff]
  %v51 = vld [vmem:[%s0 + $0x98] sm:$0xff]
  %v52 = vld [vmem:[%s0 + $0xa0] sm:$0xff]
  %v53 = vld [vmem:[%s0 + $0xa8] sm:$0xff]
  %v54 = vld [vmem:[%s0 + $0xb0] sm:$0xff]
  %v55 = vld [vmem:[%s0 + $0xb8] sm:$0xff]
  %v56 = vld [vmem:[%s0 + $0xc0] sm:$0xff]
  %v57 = vld [vmem:[%s0 + $0xc8] sm:$0xff]
  %v58 = vld [vmem:[%s0 + $0xd0] sm:$0xff]
  %v59 = vld [vmem:[%s0 + $0xd8] sm:$0xff]
  %v60 = vld [vmem:[%s0 + $0xe0] sm:$0xff]
  %v61 = vld [vmem:[%s0 + $0xe8] sm:$0xff]
  %v62 = vld [vmem:[%s0 + $0xf0] sm:$0xff]
  %v63 = vld [vmem:[%s0 + $0xf8] sm:$0xff]
  %v64 = vld [vmem:[%s0 + $0x100] sm:$0xff]
  %v65 = vld [vmem:[%s0 + $0x108] sm:$0xff]
  %v66 = vld [vmem:[%s0 + $0x110] sm:$0xff]
  %v67 = vld [vmem:[%s0 + $0x118] sm:$0xff]
  %v68 = vld [vmem:[%s0 + $0x1] sm:$0xff]
  %v69 = vld [vmem:[%s0 + $0x9] sm:$0xff]
  %v70 = vld [vmem:[%s0 + $0x11] sm:$0xff]
  %v71 = vld [vmem:[%s0 + $0x19] sm:$0xff]
  %v72 = vld [vmem:[%s0 + $0x21] sm:$0xff]
  %v73 = vld [vmem:[%s0 + $0x29] sm:$0xff]
  %v74 = vld [vmem:[%s0 + $0x31] sm:$0xff]
  %v75 = vld [vmem:[%s0 + $0x39] sm:$0xff]
  %v76 = vld [vmem:[%s0 + $0x41] sm:$0xff]
  %v77 = vld [vmem:[%s0 + $0x49] sm:$0xff]
  %v78 = vld [vmem:[%s0 + $0x51] sm:$0xff]
  %v79 = vld [vmem:[%s0 + $0x59] sm:$0xff]
  %v80 = vld [vmem:[%s0 + $0x61] sm:$0xff]
  %v81 = vld [vmem:[%s0 + $0x69] sm:$0xff]
  %v82 = vld [vmem:[%s0 + $0x71] sm:$0xff]
  %v83 = vld [vmem:[%s0 + $0x79] sm:$0xff]
  %v84 = vld [vmem:[%s0 + $0x81] sm:$0xff]
  %v85 = vld [vmem:[%s0 + $0x89] sm:$0xff]
  %v86 = vld [vmem:[%s0 + $0x91] sm:$0xff]
  %v87 = vld [vmem:[%s0 + $0x99] sm:$0xff]
  %v88 = vld [vmem:[%s0 + $0xa1] sm:$0xff]
  %v89 = vld [vmem:[%s0 + $0xa9] sm:$0xff]
  %v90 = vld [vmem:[%s0 + $0xb1] sm:$0xff]
  %v91 = vld [vmem:[%s0 + $0xb9] sm:$0xff]
  %v92 = vld [vmem:[%s0 + $0xc1] sm:$0xff]
  %v93 = vld [vmem:[%s0 + $0xc9] sm:$0xff]
  %v94 = vld [vmem:[%s0 + $0xd1] sm:$0xff]
  %v95 = vld [vmem:[%s0 + $0xd9] sm:$0xff]
  %v96 = vld [vmem:[%s0 + $0xe1] sm:$0xff]
  %v97 = vld [vmem:[%s0 + $0xe9] sm:$0xff]
  %v98 = vld [vmem:[%s0 + $0xf1] sm:$0xff]
  %v99 = vld [vmem:[%s0 + $0xf9] sm:$0xff]
  %v100 = vld [vmem:[%s0 + $0x101] sm:$0xff]
  %v101 = vld [vmem:[%s0 + $0x109] sm:$0xff]
  %v102 = vld [vmem:[%s0 + $0x111] sm:$0xff]
  %v103 = vld [vmem:[%s0 + $0x119] sm:$0xff]
  %v104 = vld [vmem:[%s0 + $0x2] sm:$0xff]
  %v105 = vld [vmem:[%s0 + $0xa] sm:$0xff]
  %v106 = vld [vmem:[%s0 + $0x12] sm:$0xff]
  %v107 = vld [vmem:[%s0 + $0x1a] sm:$0xff]
  %v108 = vld [vmem:[%s0 + $0x22] sm:$0xff]
  %v109 = vld [vmem:[%s0 + $0x2a] sm:$0xff]
  %v110 = vld [vmem:[%s0 + $0x32] sm:$0xff]
  %v111 = vld [vmem:[%s0 + $0x3a] sm:$0xff]
  %v112 = vld [vmem:[%s0 + $0x42] sm:$0xff]
  %v113 = vld [vmem:[%s0 + $0x4a] sm:$0xff]
  %v114 = vld [vmem:[%s0 + $0x52] sm:$0xff]
  %v115 = vld [vmem:[%s0 + $0x5a] sm:$0xff]
  %v116 = vld [vmem:[%s0 + $0x62] sm:$0xff]
  %v117 = vld [vmem:[%s0 + $0x6a] sm:$0xff]
  %v118 = vld [vmem:[%s0 + $0x72] sm:$0xff]
  %v119 = vld [vmem:[%s0 + $0x7a] sm:$0xff]
  %v120 = vld [vmem:[%s0 + $0x82] sm:$0xff]
  %v121 = vld [vmem:[%s0 + $0x8a] sm:$0xff]
  %v122 = vld [vmem:[%s0 + $0x92] sm:$0xff]
  %v123 = vld [vmem:[%s0 + $0x9a] sm:$0xff]
  %v124 = vld [vmem:[%s0 + $0xa2] sm:$0xff]
  %v125 = vld [vmem:[%s0 + $0xaa] sm:$0xff]
  %v126 = vld [vmem:[%s0 + $0xb2] sm:$0xff]
  %v127 = vld [vmem:[%s0 + $0xba] sm:$0xff]
  %v128 = vld [vmem:[%s0 + $0xc2] sm:$0xff]
  %v129 = vld [vmem:[%s0 + $0xca] sm:$0xff]
  %v130 = vld [vmem:[%s0 + $0xd2] sm:$0xff]
  %v131 = vld [vmem:[%s0 + $0xda] sm:$0xff]
  %v132 = vld [vmem:[%s0 + $0xe2] sm:$0xff]
  %v133 = vld [vmem:[%s0 + $0xea] sm:$0xff]
  %v134 = vld [vmem:[%s0 + $0xf2] sm:$0xff]
  %v135 = vld [vmem:[%s0 + $0xfa] sm:$0xff]
  %v136 = vld [vmem:[%s0 + $0x102] sm:$0xff]
  %v137 = vld [vmem:[%s0 + $0x10a] sm:$0xff]
  %v138 = vld [vmem:[%s0 + $0x112] sm:$0xff]
  %v139 = vld [vmem:[%s0 + $0x11a] sm:$0xff]
  %v140 = vld [vmem:[%s0 + $0x122] sm:$0xff]
  %v141 = vld [vmem:[%s0 + $0x12a] sm:$0xff]
  %v142 = vld [vmem:[%s0 + $0x13] sm:$0xff]
  %v143 = vld [vmem:[%s0 + $0x1b] sm:$0xff]
  %v144 = vld [vmem:[%s0 + $0x23] sm:$0xff]
  %v145 = vld [vmem:[%s0 + $0x2b] sm:$0xff]
  %v146 = vld [vmem:[%s0 + $0x33] sm:$0xff]
  %v147 = vld [vmem:[%s0 + $0x3b] sm:$0xff]
  %v148 = vld [vmem:[%s0 + $0x43] sm:$0xff]
  %v149 = vld [vmem:[%s0 + $0x4b] sm:$0xff]
  %v150 = vld [vmem:[%s0 + $0x53] sm:$0xff]
  %v151 = vld [vmem:[%s0 + $0x5b] sm:$0xff]
  %v152 = vld [vmem:[%s0 + $0x63] sm:$0xff]
  %v153 = vld [vmem:[%s0 + $0x6b] sm:$0xff]
  %v154 = vld [vmem:[%s0 + $0x73] sm:$0xff]
  %v155 = vld [vmem:[%s0 + $0x7b] sm:$0xff]
  %v156 = vld [vmem:[%s0 + $0x83] sm:$0xff]
  %v157 = vld [vmem:[%s0 + $0x8b] sm:$0xff]
  %v158 = vld [vmem:[%s0 + $0x93] sm:$0xff]
  %v159 = vld [vmem:[%s0 + $0x9b] sm:$0xff]
  %v160 = vld [vmem:[%s0 + $0xa3] sm:$0xff]
  %v161 = vld [vmem:[%s0 + $0xab] sm:$0xff]
  %v162 = vld [vmem:[%s0 + $0xb3] sm:$0xff]
  %v163 = vld [vmem:[%s0 + $0xbb] sm:$0xff]
  %v164 = vld [vmem:[%s0 + $0xc3] sm:$0xff]
  %v165 = vld [vmem:[%s0 + $0xcb] sm:$0xff]
  %v166 = vld [vmem:[%s0 + $0xd3] sm:$0xff]
  %v167 = vld [vmem:[%s0 + $0xdb] sm:$0xff]
  %v168 = vld [vmem:[%s0 + $0xe3] sm:$0xff]
  %v169 = vld [vmem:[%s0 + $0xeb] sm:$0xff]
  %v170 = vld [vmem:[%s0 + $0xf3] sm:$0xff]
  %v171 = vld [vmem:[%s0 + $0xfb] sm:$0xff]
  %v172 = vld [vmem:[%s0 + $0x103] sm:$0xff]
  %v173 = vld [vmem:[%s0 + $0x10b] sm:$0xff]
  %v174 = vld [vmem:[%s0 + $0x113] sm:$0xff]
  %v175 = vld [vmem:[%s0 + $0x11b] sm:$0xff]
  %v176 = vld [vmem:[%s0 + $0x123] sm:$0xff]
  %v177 = vld [vmem:[%s0 + $0x12b] sm:$0xff]
  %v178 = vld [vmem:[%s0 + $0x14] sm:$0xff]
  %v179 = vld [vmem:[%s0 + $0x1c] sm:$0xff]
  %v180 = vld [vmem:[%s0 + $0x24] sm:$0xff]
  %v181 = vld [vmem:[%s0 + $0x2c] sm:$0xff]
  %v182 = vld [vmem:[%s0 + $0x34] sm:$0xff]
  %v183 = vld [vmem:[%s0 + $0x3c] sm:$0xff]
  %v184 = vld [vmem:[%s0 + $0x44] sm:$0xff]
  %v185 = vld [vmem:[%s0 + $0x4c] sm:$0xff]
  %v186 = vld [vmem:[%s0 + $0x54] sm:$0xff]
  %v187 = vld [vmem:[%s0 + $0x5c] sm:$0xff]
  %v188 = vld [vmem:[%s0 + $0x64] sm:$0xff]
  %v189 = vld [vmem:[%s0 + $0x6c] sm:$0xff]
  %v190 = vld [vmem:[%s0 + $0x74] sm:$0xff]
  %v191 = vld [vmem:[%s0 + $0x7c] sm:$0xff]
  %v192 = vld [vmem:[%s0 + $0x84] sm:$0xff]
  %v193 = vld [vmem:[%s0 + $0x8c] sm:$0xff]
  %v194 = vld [vmem:[%s0 + $0x94] sm:$0xff]
  %v195 = vld [vmem:[%s0 + $0x9c] sm:$0xff]
  %v196 = vld [vmem:[%s0 + $0xa4] sm:$0xff]
  %v197 = vld [vmem:[%s0 + $0xac] sm:$0xff]
  %v198 = vld [vmem:[%s0 + $0xb4] sm:$0xff]
  %v199 = vld [vmem:[%s0 + $0xbc] sm:$0xff]
  %v200 = vld [vmem:[%s0 + $0xc4] sm:$0xff]
  %v201 = vld [vmem:[%s0 + $0xcc] sm:$0xff]
  %v202 = vld [vmem:[%s0 + $0xd4] sm:$0xff]
  %v203 = vld [vmem:[%s0 + $0xdc] sm:$0xff]
  %v204 = vld [vmem:[%s0 + $0xe4] sm:$0xff]
  %v205 = vld [vmem:[%s0 + $0xec] sm:$0xff]
  %v206 = vld [vmem:[%s0 + $0xf4] sm:$0xff]
  %v207 = vld [vmem:[%s0 + $0xfc] sm:$0xff]
  %v208 = vld [vmem:[%s0 + $0x104] sm:$0xff]
  %v209 = vld [vmem:[%s0 + $0x10c] sm:$0xff]
  %v210 = vld [vmem:[%s0 + $0x114] sm:$0xff]
  %v211 = vld [vmem:[%s0 + $0x11c] sm:$0xff]
  %v212 = vld [vmem:[%s0 + $0x124] sm:$0xff]
  %v213 = vld [vmem:[%s0 + $0x12c] sm:$0xff]
  %v214 = vld [vmem:[%s0 + $0x134] sm:$0xff]
  %v215 = vld [vmem:[%s0 + $0x13c] sm:$0xff]
  %v216 = vld [vmem:[%s0 + $0x25] sm:$0xff]
  %v217 = vld [vmem:[%s0 + $0x2d] sm:$0xff]
  %v218 = vld [vmem:[%s0 + $0x35] sm:$0xff]
  %v219 = vld [vmem:[%s0 + $0x3d] sm:$0xff]
  %v220 = vld [vmem:[%s0 + $0x45] sm:$0xff]
  %v221 = vld [vmem:[%s0 + $0x4d] sm:$0xff]
  %v222 = vld [vmem:[%s0 + $0x55] sm:$0xff]
  %v223 = vld [vmem:[%s0 + $0x5d] sm:$0xff]
  %v224 = vld [vmem:[%s0 + $0x65] sm:$0xff]
  %v225 = vld [vmem:[%s0 + $0x6d] sm:$0xff]
  %v226 = vld [vmem:[%s0 + $0x75] sm:$0xff]
  %v227 = vld [vmem:[%s0 + $0x7d] sm:$0xff]
  %v228 = vld [vmem:[%s0 + $0x85] sm:$0xff]
  %v229 = vld [vmem:[%s0 + $0x8d] sm:$0xff]
  %v230 = vld [vmem:[%s0 + $0x95] sm:$0xff]
  %v231 = vld [vmem:[%s0 + $0x9d] sm:$0xff]
  %v232 = vld [vmem:[%s0 + $0xa5] sm:$0xff]
  %v233 = vld [vmem:[%s0 + $0xad] sm:$0xff]
  %v234 = vld [vmem:[%s0 + $0xb5] sm:$0xff]
  %v235 = vld [vmem:[%s0 + $0xbd] sm:$0xff]
  %v236 = vld [vmem:[%s0 + $0xc5] sm:$0xff]
  %v237 = vld [vmem:[%s0 + $0xcd] sm:$0xff]
  %v238 = vld [vmem:[%s0 + $0xd5] sm:$0xff]
  %v239 = vld [vmem:[%s0 + $0xdd] sm:$0xff]
  %v240 = vld [vmem:[%s0 + $0xe5] sm:$0xff]
  %v241 = vld [vmem:[%s0 + $0xed] sm:$0xff]
  %v242 = vld [vmem:[%s0 + $0xf5] sm:$0xff]
  %v243 = vld [vmem:[%s0 + $0xfd] sm:$0xff]
  %v244 = vld [vmem:[%s0 + $0x105] sm:$0xff]
  %v245 = vld [vmem:[%s0 + $0x10d] sm:$0xff]
  %v246 = vld [vmem:[%s0 + $0x115] sm:$0xff]
  %v247 = vld [vmem:[%s0 + $0x11d] sm:$0xff]
  %v248 = vld [vmem:[%s0 + $0x125] sm:$0xff]
  %v249 = vld [vmem:[%s0 + $0x12d] sm:$0xff]
  %v250 = vld [vmem:[%s0 + $0x135] sm:$0xff]
  %v251 = vld [vmem:[%s0 + $0x13d] sm:$0xff]
  %v252 = vld [vmem:[%s0 + $0x26] sm:$0xff]
  %v253 = vld [vmem:[%s0 + $0x2e] sm:$0xff]
  %v254 = vld [vmem:[%s0 + $0x36] sm:$0xff]
  %v255 = vld [vmem:[%s0 + $0x3e] sm:$0xff]
  %v256 = vld [vmem:[%s0 + $0x46] sm:$0xff]
  %v257 = vld [vmem:[%s0 + $0x4e] sm:$0xff]
  %v258 = vld [vmem:[%s0 + $0x56] sm:$0xff]
  %v259 = vld [vmem:[%s0 + $0x5e] sm:$0xff]
  %v260 = vld [vmem:[%s0 + $0x66] sm:$0xff]
  %v261 = vld [vmem:[%s0 + $0x6e] sm:$0xff]
  %v262 = vld [vmem:[%s0 + $0x76] sm:$0xff]
  %v263 = vld [vmem:[%s0 + $0x7e] sm:$0xff]
  %v264 = vld [vmem:[%s0 + $0x86] sm:$0xff]
  %v265 = vld [vmem:[%s0 + $0x8e] sm:$0xff]
  %v266 = vld [vmem:[%s0 + $0x96] sm:$0xff]
  %v267 = vld [vmem:[%s0 + $0x9e] sm:$0xff]
  %v268 = vld [vmem:[%s0 + $0xa6] sm:$0xff]
  %v269 = vld [vmem:[%s0 + $0xae] sm:$0xff]
  %v270 = vld [vmem:[%s0 + $0xb6] sm:$0xff]
  %v271 = vld [vmem:[%s0 + $0xbe] sm:$0xff]
  %v272 = vld [vmem:[%s0 + $0xc6] sm:$0xff]
  %v273 = vld [vmem:[%s0 + $0xce] sm:$0xff]
  %v274 = vld [vmem:[%s0 + $0xd6] sm:$0xff]
  %v275 = vld [vmem:[%s0 + $0xde] sm:$0xff]
  %v276 = vld [vmem:[%s0 + $0xe6] sm:$0xff]
  %v277 = vld [vmem:[%s0 + $0xee] sm:$0xff]
  %v278 = vld [vmem:[%s0 + $0xf6] sm:$0xff]
  %v279 = vld [vmem:[%s0 + $0xfe] sm:$0xff]
  %v280 = vld [vmem:[%s0 + $0x106] sm:$0xff]
  %v281 = vld [vmem:[%s0 + $0x10e] sm:$0xff]
  %v282 = vld [vmem:[%s0 + $0x116] sm:$0xff]
  %v283 = vld [vmem:[%s0 + $0x11e] sm:$0xff]
  %v284 = vld [vmem:[%s0 + $0x126] sm:$0xff]
  %v285 = vld [vmem:[%s0 + $0x12e] sm:$0xff]
  %v286 = vld [vmem:[%s0 + $0x136] sm:$0xff]
  %v287 = vld [vmem:[%s0 + $0x13e] sm:$0xff]
  %324 = vrot.lane.b32.xlu0 %v68, 4
  %v325 = vpop.permute.xlu0 %324
  %326 = vrot.lane.b32.xlu0 %v69, 4
  %v327 = vpop.permute.xlu0 %326
  %328 = vrot.lane.b32.xlu0 %v70, 4
  %v329 = vpop.permute.xlu0 %328
  %330 = vrot.lane.b32.xlu0 %v71, 4
  %v331 = vpop.permute.xlu0 %330
  %332 = vrot.lane.b32.xlu0 %v72, 4
  %v333 = vpop.permute.xlu0 %332
  %334 = vrot.lane.b32.xlu0 %v73, 4
  %v335 = vpop.permute.xlu0 %334
  %336 = vrot.lane.b32.xlu0 %v74, 4
  %v337 = vpop.permute.xlu0 %336
  %338 = vrot.lane.b32.xlu0 %v75, 4
  %v339 = vpop.permute.xlu0 %338
  %340 = vrot.lane.b32.xlu0 %v76, 4
  %v341 = vpop.permute.xlu0 %340
  %342 = vrot.lane.b32.xlu0 %v77, 4
  %v343 = vpop.permute.xlu0 %342
  %344 = vrot.lane.b32.xlu0 %v78, 4
  %v345 = vpop.permute.xlu0 %344
  %346 = vrot.lane.b32.xlu0 %v79, 4
  %v347 = vpop.permute.xlu0 %346
  %348 = vrot.lane.b32.xlu0 %v80, 4
  %v349 = vpop.permute.xlu0 %348
  %350 = vrot.lane.b32.xlu0 %v81, 4
  %v351 = vpop.permute.xlu0 %350
  %352 = vrot.lane.b32.xlu0 %v82, 4
  %v353 = vpop.permute.xlu0 %352
  %354 = vrot.lane.b32.xlu0 %v83, 4
  %v355 = vpop.permute.xlu0 %354
  %356 = vrot.lane.b32.xlu0 %v84, 4
  %v357 = vpop.permute.xlu0 %356
  %358 = vrot.lane.b32.xlu0 %v85, 4
  %v359 = vpop.permute.xlu0 %358
  %360 = vrot.lane.b32.xlu0 %v86, 4
  %v361 = vpop.permute.xlu0 %360
  %362 = vrot.lane.b32.xlu0 %v87, 4
  %v363 = vpop.permute.xlu0 %362
  %364 = vrot.lane.b32.xlu0 %v88, 4
  %v365 = vpop.permute.xlu0 %364
  %366 = vrot.lane.b32.xlu0 %v89, 4
  %v367 = vpop.permute.xlu0 %366
  %368 = vrot.lane.b32.xlu0 %v90, 4
  %v369 = vpop.permute.xlu0 %368
  %370 = vrot.lane.b32.xlu0 %v91, 4
  %v371 = vpop.permute.xlu0 %370
  %372 = vrot.lane.b32.xlu0 %v92, 4
  %v373 = vpop.permute.xlu0 %372
  %374 = vrot.lane.b32.xlu0 %v93, 4
  %v375 = vpop.permute.xlu0 %374
  %376 = vrot.lane.b32.xlu0 %v94, 4
  %v377 = vpop.permute.xlu0 %376
  %378 = vrot.lane.b32.xlu0 %v95, 4
  %v379 = vpop.permute.xlu0 %378
  %380 = vrot.lane.b32.xlu0 %v96, 4
  %v381 = vpop.permute.xlu0 %380
  %382 = vrot.lane.b32.xlu0 %v97, 4
  %v383 = vpop.permute.xlu0 %382
  %384 = vrot.lane.b32.xlu0 %v98, 4
  %v385 = vpop.permute.xlu0 %384
  %386 = vrot.lane.b32.xlu0 %v99, 4
  %v387 = vpop.permute.xlu0 %386
  %388 = vrot.lane.b32.xlu0 %v100, 4
  %v389 = vpop.permute.xlu0 %388
  %390 = vrot.lane.b32.xlu0 %v101, 4
  %v391 = vpop.permute.xlu0 %390
  %392 = vrot.lane.b32.xlu0 %v102, 4
  %v393 = vpop.permute.xlu0 %392
  %394 = vrot.lane.b32.xlu0 %v103, 4
  %v395 = vpop.permute.xlu0 %394
  %468 = vrot.lane.b32.xlu0 %v104, 8
  %v469 = vpop.permute.xlu0 %468
  %470 = vrot.lane.b32.xlu0 %v105, 8
  %v471 = vpop.permute.xlu0 %470
  %472 = vrot.lane.b32.xlu0 %v106, 8
  %v473 = vpop.permute.xlu0 %472
  %474 = vrot.lane.b32.xlu0 %v107, 8
  %v475 = vpop.permute.xlu0 %474
  %476 = vrot.lane.b32.xlu0 %v108, 8
  %v477 = vpop.permute.xlu0 %476
  %478 = vrot.lane.b32.xlu0 %v109, 8
  %v479 = vpop.permute.xlu0 %478
  %480 = vrot.lane.b32.xlu0 %v110, 8
  %v481 = vpop.permute.xlu0 %480
  %482 = vrot.lane.b32.xlu0 %v111, 8
  %v483 = vpop.permute.xlu0 %482
  %484 = vrot.lane.b32.xlu0 %v112, 8
  %v485 = vpop.permute.xlu0 %484
  %486 = vrot.lane.b32.xlu0 %v113, 8
  %v487 = vpop.permute.xlu0 %486
  %488 = vrot.lane.b32.xlu0 %v114, 8
  %v489 = vpop.permute.xlu0 %488
  %490 = vrot.lane.b32.xlu0 %v115, 8
  %v491 = vpop.permute.xlu0 %490
  %492 = vrot.lane.b32.xlu0 %v116, 8
  %v493 = vpop.permute.xlu0 %492
  %494 = vrot.lane.b32.xlu0 %v117, 8
  %v495 = vpop.permute.xlu0 %494
  %496 = vrot.lane.b32.xlu0 %v118, 8
  %v497 = vpop.permute.xlu0 %496
  %498 = vrot.lane.b32.xlu0 %v119, 8
  %v499 = vpop.permute.xlu0 %498
  %500 = vrot.lane.b32.xlu0 %v120, 8
  %v501 = vpop.permute.xlu0 %500
  %502 = vrot.lane.b32.xlu0 %v121, 8
  %v503 = vpop.permute.xlu0 %502
  %504 = vrot.lane.b32.xlu0 %v122, 8
  %v505 = vpop.permute.xlu0 %504
  %506 = vrot.lane.b32.xlu0 %v123, 8
  %v507 = vpop.permute.xlu0 %506
  %508 = vrot.lane.b32.xlu0 %v124, 8
  %v509 = vpop.permute.xlu0 %508
  %510 = vrot.lane.b32.xlu0 %v125, 8
  %v511 = vpop.permute.xlu0 %510
  %512 = vrot.lane.b32.xlu0 %v126, 8
  %v513 = vpop.permute.xlu0 %512
  %514 = vrot.lane.b32.xlu0 %v127, 8
  %v515 = vpop.permute.xlu0 %514
  %516 = vrot.lane.b32.xlu0 %v128, 8
  %v517 = vpop.permute.xlu0 %516
  %518 = vrot.lane.b32.xlu0 %v129, 8
  %v519 = vpop.permute.xlu0 %518
  %520 = vrot.lane.b32.xlu0 %v130, 8
  %v521 = vpop.permute.xlu0 %520
  %522 = vrot.lane.b32.xlu0 %v131, 8
  %v523 = vpop.permute.xlu0 %522
  %524 = vrot.lane.b32.xlu0 %v132, 8
  %v525 = vpop.permute.xlu0 %524
  %526 = vrot.lane.b32.xlu0 %v133, 8
  %v527 = vpop.permute.xlu0 %526
  %528 = vrot.lane.b32.xlu0 %v134, 8
  %v529 = vpop.permute.xlu0 %528
  %530 = vrot.lane.b32.xlu0 %v135, 8
  %v531 = vpop.permute.xlu0 %530
  %532 = vrot.lane.b32.xlu0 %v136, 8
  %v533 = vpop.permute.xlu0 %532
  %534 = vrot.lane.b32.xlu0 %v137, 8
  %v535 = vpop.permute.xlu0 %534
  %536 = vrot.lane.b32.xlu0 %v138, 8
  %v537 = vpop.permute.xlu0 %536
  %538 = vrot.lane.b32.xlu0 %v139, 8
  %v539 = vpop.permute.xlu0 %538
  %578 = vrot.lane.b32.xlu0 %v106, 12
  %v579 = vpop.permute.xlu0 %578
  %580 = vrot.lane.b32.xlu0 %v107, 12
  %v581 = vpop.permute.xlu0 %580
  %582 = vrot.lane.b32.xlu0 %v108, 12
  %v583 = vpop.permute.xlu0 %582
  %584 = vrot.lane.b32.xlu0 %v109, 12
  %v585 = vpop.permute.xlu0 %584
  %586 = vrot.lane.b32.xlu0 %v110, 12
  %v587 = vpop.permute.xlu0 %586
  %588 = vrot.lane.b32.xlu0 %v111, 12
  %v589 = vpop.permute.xlu0 %588
  %590 = vrot.lane.b32.xlu0 %v112, 12
  %v591 = vpop.permute.xlu0 %590
  %592 = vrot.lane.b32.xlu0 %v113, 12
  %v593 = vpop.permute.xlu0 %592
  %594 = vrot.lane.b32.xlu0 %v114, 12
  %v595 = vpop.permute.xlu0 %594
  %596 = vrot.lane.b32.xlu0 %v115, 12
  %v597 = vpop.permute.xlu0 %596
  %598 = vrot.lane.b32.xlu0 %v116, 12
  %v599 = vpop.permute.xlu0 %598
  %600 = vrot.lane.b32.xlu0 %v117, 12
  %v601 = vpop.permute.xlu0 %600
  %602 = vrot.lane.b32.xlu0 %v118, 12
  %v603 = vpop.permute.xlu0 %602
  %604 = vrot.lane.b32.xlu0 %v119, 12
  %v605 = vpop.permute.xlu0 %604
  %606 = vrot.lane.b32.xlu0 %v120, 12
  %v607 = vpop.permute.xlu0 %606
  %608 = vrot.lane.b32.xlu0 %v121, 12
  %v609 = vpop.permute.xlu0 %608
  %610 = vrot.lane.b32.xlu0 %v122, 12
  %v611 = vpop.permute.xlu0 %610
  %612 = vrot.lane.b32.xlu0 %v123, 12
  %v613 = vpop.permute.xlu0 %612
  %614 = vrot.lane.b32.xlu0 %v124, 12
  %v615 = vpop.permute.xlu0 %614
  %616 = vrot.lane.b32.xlu0 %v125, 12
  %v617 = vpop.permute.xlu0 %616
  %618 = vrot.lane.b32.xlu0 %v126, 12
  %v619 = vpop.permute.xlu0 %618
  %620 = vrot.lane.b32.xlu0 %v127, 12
  %v621 = vpop.permute.xlu0 %620
  %622 = vrot.lane.b32.xlu0 %v128, 12
  %v623 = vpop.permute.xlu0 %622
  %624 = vrot.lane.b32.xlu0 %v129, 12
  %v625 = vpop.permute.xlu0 %624
  %626 = vrot.lane.b32.xlu0 %v130, 12
  %v627 = vpop.permute.xlu0 %626
  %628 = vrot.lane.b32.xlu0 %v131, 12
  %v629 = vpop.permute.xlu0 %628
  %630 = vrot.lane.b32.xlu0 %v132, 12
  %v631 = vpop.permute.xlu0 %630
  %632 = vrot.lane.b32.xlu0 %v133, 12
  %v633 = vpop.permute.xlu0 %632
  %634 = vrot.lane.b32.xlu0 %v134, 12
  %v635 = vpop.permute.xlu0 %634
  %636 = vrot.lane.b32.xlu0 %v135, 12
  %v637 = vpop.permute.xlu0 %636
  %638 = vrot.lane.b32.xlu0 %v136, 12
  %v639 = vpop.permute.xlu0 %638
  %640 = vrot.lane.b32.xlu0 %v137, 12
  %v641 = vpop.permute.xlu0 %640
  %642 = vrot.lane.b32.xlu0 %v138, 12
  %v643 = vpop.permute.xlu0 %642
  %644 = vrot.lane.b32.xlu0 %v139, 12
  %v645 = vpop.permute.xlu0 %644
  %646 = vrot.lane.b32.xlu0 %v140, 12
  %v647 = vpop.permute.xlu0 %646
  %648 = vrot.lane.b32.xlu0 %v141, 12
  %v649 = vpop.permute.xlu0 %648
  %722 = vrot.lane.b32.xlu0 %v142, 16
  %v723 = vpop.permute.xlu0 %722
  %724 = vrot.lane.b32.xlu0 %v143, 16
  %v725 = vpop.permute.xlu0 %724
  %726 = vrot.lane.b32.xlu0 %v144, 16
  %v727 = vpop.permute.xlu0 %726
  %728 = vrot.lane.b32.xlu0 %v145, 16
  %v729 = vpop.permute.xlu0 %728
  %730 = vrot.lane.b32.xlu0 %v146, 16
  %v731 = vpop.permute.xlu0 %730
  %732 = vrot.lane.b32.xlu0 %v147, 16
  %v733 = vpop.permute.xlu0 %732
  %734 = vrot.lane.b32.xlu0 %v148, 16
  %v735 = vpop.permute.xlu0 %734
  %736 = vrot.lane.b32.xlu0 %v149, 16
  %v737 = vpop.permute.xlu0 %736
  %738 = vrot.lane.b32.xlu0 %v150, 16
  %v739 = vpop.permute.xlu0 %738
  %740 = vrot.lane.b32.xlu0 %v151, 16
  %v741 = vpop.permute.xlu0 %740
  %742 = vrot.lane.b32.xlu0 %v152, 16
  %v743 = vpop.permute.xlu0 %742
  %744 = vrot.lane.b32.xlu0 %v153, 16
  %v745 = vpop.permute.xlu0 %744
  %746 = vrot.lane.b32.xlu0 %v154, 16
  %v747 = vpop.permute.xlu0 %746
  %748 = vrot.lane.b32.xlu0 %v155, 16
  %v749 = vpop.permute.xlu0 %748
  %750 = vrot.lane.b32.xlu0 %v156, 16
  %v751 = vpop.permute.xlu0 %750
  %752 = vrot.lane.b32.xlu0 %v157, 16
  %v753 = vpop.permute.xlu0 %752
  %754 = vrot.lane.b32.xlu0 %v158, 16
  %v755 = vpop.permute.xlu0 %754
  %756 = vrot.lane.b32.xlu0 %v159, 16
  %v757 = vpop.permute.xlu0 %756
  %758 = vrot.lane.b32.xlu0 %v160, 16
  %v759 = vpop.permute.xlu0 %758
  %760 = vrot.lane.b32.xlu0 %v161, 16
  %v761 = vpop.permute.xlu0 %760
  %762 = vrot.lane.b32.xlu0 %v162, 16
  %v763 = vpop.permute.xlu0 %762
  %764 = vrot.lane.b32.xlu0 %v163, 16
  %v765 = vpop.permute.xlu0 %764
  %766 = vrot.lane.b32.xlu0 %v164, 16
  %v767 = vpop.permute.xlu0 %766
  %768 = vrot.lane.b32.xlu0 %v165, 16
  %v769 = vpop.permute.xlu0 %768
  %770 = vrot.lane.b32.xlu0 %v166, 16
  %v771 = vpop.permute.xlu0 %770
  %772 = vrot.lane.b32.xlu0 %v167, 16
  %v773 = vpop.permute.xlu0 %772
  %774 = vrot.lane.b32.xlu0 %v168, 16
  %v775 = vpop.permute.xlu0 %774
  %776 = vrot.lane.b32.xlu0 %v169, 16
  %v777 = vpop.permute.xlu0 %776
  %778 = vrot.lane.b32.xlu0 %v170, 16
  %v779 = vpop.permute.xlu0 %778
  %780 = vrot.lane.b32.xlu0 %v171, 16
  %v781 = vpop.permute.xlu0 %780
  %782 = vrot.lane.b32.xlu0 %v172, 16
  %v783 = vpop.permute.xlu0 %782
  %784 = vrot.lane.b32.xlu0 %v173, 16
  %v785 = vpop.permute.xlu0 %784
  %786 = vrot.lane.b32.xlu0 %v174, 16
  %v787 = vpop.permute.xlu0 %786
  %788 = vrot.lane.b32.xlu0 %v175, 16
  %v789 = vpop.permute.xlu0 %788
  %790 = vrot.lane.b32.xlu0 %v176, 16
  %v791 = vpop.permute.xlu0 %790
  %792 = vrot.lane.b32.xlu0 %v177, 16
  %v793 = vpop.permute.xlu0 %792
  %866 = vrot.lane.b32.xlu0 %v178, 20
  %v867 = vpop.permute.xlu0 %866
  %868 = vrot.lane.b32.xlu0 %v179, 20
  %v869 = vpop.permute.xlu0 %868
  %870 = vrot.lane.b32.xlu0 %v180, 20
  %v871 = vpop.permute.xlu0 %870
  %872 = vrot.lane.b32.xlu0 %v181, 20
  %v873 = vpop.permute.xlu0 %872
  %874 = vrot.lane.b32.xlu0 %v182, 20
  %v875 = vpop.permute.xlu0 %874
  %876 = vrot.lane.b32.xlu0 %v183, 20
  %v877 = vpop.permute.xlu0 %876
  %878 = vrot.lane.b32.xlu0 %v184, 20
  %v879 = vpop.permute.xlu0 %878
  %880 = vrot.lane.b32.xlu0 %v185, 20
  %v881 = vpop.permute.xlu0 %880
  %882 = vrot.lane.b32.xlu0 %v186, 20
  %v883 = vpop.permute.xlu0 %882
  %884 = vrot.lane.b32.xlu0 %v187, 20
  %v885 = vpop.permute.xlu0 %884
  %886 = vrot.lane.b32.xlu0 %v188, 20
  %v887 = vpop.permute.xlu0 %886
  %888 = vrot.lane.b32.xlu0 %v189, 20
  %v889 = vpop.permute.xlu0 %888
  %890 = vrot.lane.b32.xlu0 %v190, 20
  %v891 = vpop.permute.xlu0 %890
  %892 = vrot.lane.b32.xlu0 %v191, 20
  %v893 = vpop.permute.xlu0 %892
  %894 = vrot.lane.b32.xlu0 %v192, 20
  %v895 = vpop.permute.xlu0 %894
  %896 = vrot.lane.b32.xlu0 %v193, 20
  %v897 = vpop.permute.xlu0 %896
  %898 = vrot.lane.b32.xlu0 %v194, 20
  %v899 = vpop.permute.xlu0 %898
  %900 = vrot.lane.b32.xlu0 %v195, 20
  %v901 = vpop.permute.xlu0 %900
  %902 = vrot.lane.b32.xlu0 %v196, 20
  %v903 = vpop.permute.xlu0 %902
  %904 = vrot.lane.b32.xlu0 %v197, 20
  %v905 = vpop.permute.xlu0 %904
  %906 = vrot.lane.b32.xlu0 %v198, 20
  %v907 = vpop.permute.xlu0 %906
  %908 = vrot.lane.b32.xlu0 %v199, 20
  %v909 = vpop.permute.xlu0 %908
  %910 = vrot.lane.b32.xlu0 %v200, 20
  %v911 = vpop.permute.xlu0 %910
  %912 = vrot.lane.b32.xlu0 %v201, 20
  %v913 = vpop.permute.xlu0 %912
  %914 = vrot.lane.b32.xlu0 %v202, 20
  %v915 = vpop.permute.xlu0 %914
  %916 = vrot.lane.b32.xlu0 %v203, 20
  %v917 = vpop.permute.xlu0 %916
  %918 = vrot.lane.b32.xlu0 %v204, 20
  %v919 = vpop.permute.xlu0 %918
  %920 = vrot.lane.b32.xlu0 %v205, 20
  %v921 = vpop.permute.xlu0 %920
  %922 = vrot.lane.b32.xlu0 %v206, 20
  %v923 = vpop.permute.xlu0 %922
  %924 = vrot.lane.b32.xlu0 %v207, 20
  %v925 = vpop.permute.xlu0 %924
  %926 = vrot.lane.b32.xlu0 %v208, 20
  %v927 = vpop.permute.xlu0 %926
  %928 = vrot.lane.b32.xlu0 %v209, 20
  %v929 = vpop.permute.xlu0 %928
  %930 = vrot.lane.b32.xlu0 %v210, 20
  %v931 = vpop.permute.xlu0 %930
  %932 = vrot.lane.b32.xlu0 %v211, 20
  %v933 = vpop.permute.xlu0 %932
  %934 = vrot.lane.b32.xlu0 %v212, 20
  %v935 = vpop.permute.xlu0 %934
  %936 = vrot.lane.b32.xlu0 %v213, 20
  %v937 = vpop.permute.xlu0 %936
  %976 = vrot.lane.b32.xlu0 %v180, 24
  %v977 = vpop.permute.xlu0 %976
  %978 = vrot.lane.b32.xlu0 %v181, 24
  %v979 = vpop.permute.xlu0 %978
  %980 = vrot.lane.b32.xlu0 %v182, 24
  %v981 = vpop.permute.xlu0 %980
  %982 = vrot.lane.b32.xlu0 %v183, 24
  %v983 = vpop.permute.xlu0 %982
  %984 = vrot.lane.b32.xlu0 %v184, 24
  %v985 = vpop.permute.xlu0 %984
  %986 = vrot.lane.b32.xlu0 %v185, 24
  %v987 = vpop.permute.xlu0 %986
  %988 = vrot.lane.b32.xlu0 %v186, 24
  %v989 = vpop.permute.xlu0 %988
  %990 = vrot.lane.b32.xlu0 %v187, 24
  %v991 = vpop.permute.xlu0 %990
  %992 = vrot.lane.b32.xlu0 %v188, 24
  %v993 = vpop.permute.xlu0 %992
  %994 = vrot.lane.b32.xlu0 %v189, 24
  %v995 = vpop.permute.xlu0 %994
  %996 = vrot.lane.b32.xlu0 %v190, 24
  %v997 = vpop.permute.xlu0 %996
  %998 = vrot.lane.b32.xlu0 %v191, 24
  %v999 = vpop.permute.xlu0 %998
  %1000 = vrot.lane.b32.xlu0 %v192, 24
  %v1001 = vpop.permute.xlu0 %1000
  %1002 = vrot.lane.b32.xlu0 %v193, 24
  %v1003 = vpop.permute.xlu0 %1002
  %1004 = vrot.lane.b32.xlu0 %v194, 24
  %v1005 = vpop.permute.xlu0 %1004
  %1006 = vrot.lane.b32.xlu0 %v195, 24
  %v1007 = vpop.permute.xlu0 %1006
  %1008 = vrot.lane.b32.xlu0 %v196, 24
  %v1009 = vpop.permute.xlu0 %1008
  %1010 = vrot.lane.b32.xlu0 %v197, 24
  %v1011 = vpop.permute.xlu0 %1010
  %1012 = vrot.lane.b32.xlu0 %v198, 24
  %v1013 = vpop.permute.xlu0 %1012
  %1014 = vrot.lane.b32.xlu0 %v199, 24
  %v1015 = vpop.permute.xlu0 %1014
  %1016 = vrot.lane.b32.xlu0 %v200, 24
  %v1017 = vpop.permute.xlu0 %1016
  %1018 = vrot.lane.b32.xlu0 %v201, 24
  %v1019 = vpop.permute.xlu0 %1018
  %1020 = vrot.lane.b32.xlu0 %v202, 24
  %v1021 = vpop.permute.xlu0 %1020
  %1022 = vrot.lane.b32.xlu0 %v203, 24
  %v1023 = vpop.permute.xlu0 %1022
  %1024 = vrot.lane.b32.xlu0 %v204, 24
  %v1025 = vpop.permute.xlu0 %1024
  %1026 = vrot.lane.b32.xlu0 %v205, 24
  %v1027 = vpop.permute.xlu0 %1026
  %1028 = vrot.lane.b32.xlu0 %v206, 24
  %v1029 = vpop.permute.xlu0 %1028
  %1030 = vrot.lane.b32.xlu0 %v207, 24
  %v1031 = vpop.permute.xlu0 %1030
  %1032 = vrot.lane.b32.xlu0 %v208, 24
  %v1033 = vpop.permute.xlu0 %1032
  %1034 = vrot.lane.b32.xlu0 %v209, 24
  %v1035 = vpop.permute.xlu0 %1034
  %1036 = vrot.lane.b32.xlu0 %v210, 24
  %v1037 = vpop.permute.xlu0 %1036
  %1038 = vrot.lane.b32.xlu0 %v211, 24
  %v1039 = vpop.permute.xlu0 %1038
  %1040 = vrot.lane.b32.xlu0 %v212, 24
  %v1041 = vpop.permute.xlu0 %1040
  %1042 = vrot.lane.b32.xlu0 %v213, 24
  %v1043 = vpop.permute.xlu0 %1042
  %1044 = vrot.lane.b32.xlu0 %v214, 24
  %v1045 = vpop.permute.xlu0 %1044
  %1046 = vrot.lane.b32.xlu0 %v215, 24
  %v1047 = vpop.permute.xlu0 %1046
  %1120 = vrot.lane.b32.xlu0 %v216, 28
  %v1121 = vpop.permute.xlu0 %1120
  %1122 = vrot.lane.b32.xlu0 %v217, 28
  %v1123 = vpop.permute.xlu0 %1122
  %1124 = vrot.lane.b32.xlu0 %v218, 28
  %v1125 = vpop.permute.xlu0 %1124
  %1126 = vrot.lane.b32.xlu0 %v219, 28
  %v1127 = vpop.permute.xlu0 %1126
  %1128 = vrot.lane.b32.xlu0 %v220, 28
  %v1129 = vpop.permute.xlu0 %1128
  %1130 = vrot.lane.b32.xlu0 %v221, 28
  %v1131 = vpop.permute.xlu0 %1130
  %1132 = vrot.lane.b32.xlu0 %v222, 28
  %v1133 = vpop.permute.xlu0 %1132
  %1134 = vrot.lane.b32.xlu0 %v223, 28
  %v1135 = vpop.permute.xlu0 %1134
  %1136 = vrot.lane.b32.xlu0 %v224, 28
  %v1137 = vpop.permute.xlu0 %1136
  %1138 = vrot.lane.b32.xlu0 %v225, 28
  %v1139 = vpop.permute.xlu0 %1138
  %1140 = vrot.lane.b32.xlu0 %v226, 28
  %v1141 = vpop.permute.xlu0 %1140
  %1142 = vrot.lane.b32.xlu0 %v227, 28
  %v1143 = vpop.permute.xlu0 %1142
  %1144 = vrot.lane.b32.xlu0 %v228, 28
  %v1145 = vpop.permute.xlu0 %1144
  %1146 = vrot.lane.b32.xlu0 %v229, 28
  %v1147 = vpop.permute.xlu0 %1146
  %1148 = vrot.lane.b32.xlu0 %v230, 28
  %v1149 = vpop.permute.xlu0 %1148
  %1150 = vrot.lane.b32.xlu0 %v231, 28
  %v1151 = vpop.permute.xlu0 %1150
  %1152 = vrot.lane.b32.xlu0 %v232, 28
  %v1153 = vpop.permute.xlu0 %1152
  %1154 = vrot.lane.b32.xlu0 %v233, 28
  %v1155 = vpop.permute.xlu0 %1154
  %1156 = vrot.lane.b32.xlu0 %v234, 28
  %v1157 = vpop.permute.xlu0 %1156
  %1158 = vrot.lane.b32.xlu0 %v235, 28
  %v1159 = vpop.permute.xlu0 %1158
  %1160 = vrot.lane.b32.xlu0 %v236, 28
  %v1161 = vpop.permute.xlu0 %1160
  %1162 = vrot.lane.b32.xlu0 %v237, 28
  %v1163 = vpop.permute.xlu0 %1162
  %1164 = vrot.lane.b32.xlu0 %v238, 28
  %v1165 = vpop.permute.xlu0 %1164
  %1166 = vrot.lane.b32.xlu0 %v239, 28
  %v1167 = vpop.permute.xlu0 %1166
  %1168 = vrot.lane.b32.xlu0 %v240, 28
  %v1169 = vpop.permute.xlu0 %1168
  %1170 = vrot.lane.b32.xlu0 %v241, 28
  %v1171 = vpop.permute.xlu0 %1170
  %1172 = vrot.lane.b32.xlu0 %v242, 28
  %v1173 = vpop.permute.xlu0 %1172
  %1174 = vrot.lane.b32.xlu0 %v243, 28
  %v1175 = vpop.permute.xlu0 %1174
  %1176 = vrot.lane.b32.xlu0 %v244, 28
  %v1177 = vpop.permute.xlu0 %1176
  %1178 = vrot.lane.b32.xlu0 %v245, 28
  %v1179 = vpop.permute.xlu0 %1178
  %1180 = vrot.lane.b32.xlu0 %v246, 28
  %v1181 = vpop.permute.xlu0 %1180
  %1182 = vrot.lane.b32.xlu0 %v247, 28
  %v1183 = vpop.permute.xlu0 %1182
  %1184 = vrot.lane.b32.xlu0 %v248, 28
  %v1185 = vpop.permute.xlu0 %1184
  %1186 = vrot.lane.b32.xlu0 %v249, 28
  %v1187 = vpop.permute.xlu0 %1186
  %1188 = vrot.lane.b32.xlu0 %v250, 28
  %v1189 = vpop.permute.xlu0 %1188
  %1190 = vrot.lane.b32.xlu0 %v251, 28
  %v1191 = vpop.permute.xlu0 %1190
  %1264 = vrot.lane.b32.xlu0 %v252, 32
  %v1265 = vpop.permute.xlu0 %1264
  %1266 = vrot.lane.b32.xlu0 %v253, 32
  %v1267 = vpop.permute.xlu0 %1266
  %1268 = vrot.lane.b32.xlu0 %v254, 32
  %v1269 = vpop.permute.xlu0 %1268
  %1270 = vrot.lane.b32.xlu0 %v255, 32
  %v1271 = vpop.permute.xlu0 %1270
  %1272 = vrot.lane.b32.xlu0 %v256, 32
  %v1273 = vpop.permute.xlu0 %1272
  %1274 = vrot.lane.b32.xlu0 %v257, 32
  %v1275 = vpop.permute.xlu0 %1274
  %1276 = vrot.lane.b32.xlu0 %v258, 32
  %v1277 = vpop.permute.xlu0 %1276
  %1278 = vrot.lane.b32.xlu0 %v259, 32
  %v1279 = vpop.permute.xlu0 %1278
  %1280 = vrot.lane.b32.xlu0 %v260, 32
  %v1281 = vpop.permute.xlu0 %1280
  %1282 = vrot.lane.b32.xlu0 %v261, 32
  %v1283 = vpop.permute.xlu0 %1282
  %1284 = vrot.lane.b32.xlu0 %v262, 32
  %v1285 = vpop.permute.xlu0 %1284
  %1286 = vrot.lane.b32.xlu0 %v263, 32
  %v1287 = vpop.permute.xlu0 %1286
  %1288 = vrot.lane.b32.xlu0 %v264, 32
  %v1289 = vpop.permute.xlu0 %1288
  %1290 = vrot.lane.b32.xlu0 %v265, 32
  %v1291 = vpop.permute.xlu0 %1290
  %1292 = vrot.lane.b32.xlu0 %v266, 32
  %v1293 = vpop.permute.xlu0 %1292
  %1294 = vrot.lane.b32.xlu0 %v267, 32
  %v1295 = vpop.permute.xlu0 %1294
  %1296 = vrot.lane.b32.xlu0 %v268, 32
  %v1297 = vpop.permute.xlu0 %1296
  %1298 = vrot.lane.b32.xlu0 %v269, 32
  %v1299 = vpop.permute.xlu0 %1298
  %1300 = vrot.lane.b32.xlu0 %v270, 32
  %v1301 = vpop.permute.xlu0 %1300
  %1302 = vrot.lane.b32.xlu0 %v271, 32
  %v1303 = vpop.permute.xlu0 %1302
  %1304 = vrot.lane.b32.xlu0 %v272, 32
  %v1305 = vpop.permute.xlu0 %1304
  %1306 = vrot.lane.b32.xlu0 %v273, 32
  %v1307 = vpop.permute.xlu0 %1306
  %1308 = vrot.lane.b32.xlu0 %v274, 32
  %v1309 = vpop.permute.xlu0 %1308
  %1310 = vrot.lane.b32.xlu0 %v275, 32
  %v1311 = vpop.permute.xlu0 %1310
  %1312 = vrot.lane.b32.xlu0 %v276, 32
  %v1313 = vpop.permute.xlu0 %1312
  %1314 = vrot.lane.b32.xlu0 %v277, 32
  %v1315 = vpop.permute.xlu0 %1314
  %1316 = vrot.lane.b32.xlu0 %v278, 32
  %v1317 = vpop.permute.xlu0 %1316
  %1318 = vrot.lane.b32.xlu0 %v279, 32
  %v1319 = vpop.permute.xlu0 %1318
  %1320 = vrot.lane.b32.xlu0 %v280, 32
  %v1321 = vpop.permute.xlu0 %1320
  %1322 = vrot.lane.b32.xlu0 %v281, 32
  %v1323 = vpop.permute.xlu0 %1322
  %1324 = vrot.lane.b32.xlu0 %v282, 32
  %v1325 = vpop.permute.xlu0 %1324
  %1326 = vrot.lane.b32.xlu0 %v283, 32
  %v1327 = vpop.permute.xlu0 %1326
  %1328 = vrot.lane.b32.xlu0 %v284, 32
  %v1329 = vpop.permute.xlu0 %1328
  %1330 = vrot.lane.b32.xlu0 %v285, 32
  %v1331 = vpop.permute.xlu0 %1330
  %1332 = vrot.lane.b32.xlu0 %v286, 32
  %v1333 = vpop.permute.xlu0 %1332
  %1334 = vrot.lane.b32.xlu0 %v287, 32
  %v1335 = vpop.permute.xlu0 %1334
  %vm1372 = vcmask 31744
  %v1373 = vsel %vm1372, %v32, %v325
  %v1374 = vsel %vm1372, %v33, %v327
  %v1375 = vsel %vm1372, %v34, %v329
  %v1376 = vsel %vm1372, %v35, %v331
  %v1377 = vsel %vm1372, %v36, %v333
  %v1378 = vsel %vm1372, %v37, %v335
  %v1379 = vsel %vm1372, %v38, %v337
  %v1380 = vsel %vm1372, %v39, %v339
  %v1381 = vsel %vm1372, %v40, %v341
  %v1382 = vsel %vm1372, %v41, %v343
  %v1383 = vsel %vm1372, %v42, %v345
  %v1384 = vsel %vm1372, %v43, %v347
  %v1385 = vsel %vm1372, %v44, %v349
  %v1386 = vsel %vm1372, %v45, %v351
  %v1387 = vsel %vm1372, %v46, %v353
  %v1388 = vsel %vm1372, %v47, %v355
  %v1389 = vsel %vm1372, %v48, %v357
  %v1390 = vsel %vm1372, %v49, %v359
  %v1391 = vsel %vm1372, %v50, %v361
  %v1392 = vsel %vm1372, %v51, %v363
  %v1393 = vsel %vm1372, %v52, %v365
  %v1394 = vsel %vm1372, %v53, %v367
  %v1395 = vsel %vm1372, %v54, %v369
  %v1396 = vsel %vm1372, %v55, %v371
  %v1397 = vsel %vm1372, %v56, %v373
  %v1398 = vsel %vm1372, %v57, %v375
  %v1399 = vsel %vm1372, %v58, %v377
  %v1400 = vsel %vm1372, %v59, %v379
  %v1401 = vsel %vm1372, %v60, %v381
  %v1402 = vsel %vm1372, %v61, %v383
  %v1403 = vsel %vm1372, %v62, %v385
  %v1404 = vsel %vm1372, %v63, %v387
  %v1405 = vsel %vm1372, %v64, %v389
  %v1406 = vsel %vm1372, %v65, %v391
  %v1407 = vsel %vm1372, %v66, %v393
  %v1408 = vsel %vm1372, %v67, %v395
  %vm1409 = vcmask 64512
  %v1410 = vsel %vm1409, %v1373, %v469
  %v1411 = vsel %vm1409, %v1374, %v471
  %v1412 = vsel %vm1409, %v1375, %v473
  %v1413 = vsel %vm1409, %v1376, %v475
  %v1414 = vsel %vm1409, %v1377, %v477
  %v1415 = vsel %vm1409, %v1378, %v479
  %v1416 = vsel %vm1409, %v1379, %v481
  %v1417 = vsel %vm1409, %v1380, %v483
  %v1418 = vsel %vm1409, %v1381, %v485
  %v1419 = vsel %vm1409, %v1382, %v487
  %v1420 = vsel %vm1409, %v1383, %v489
  %v1421 = vsel %vm1409, %v1384, %v491
  %v1422 = vsel %vm1409, %v1385, %v493
  %v1423 = vsel %vm1409, %v1386, %v495
  %v1424 = vsel %vm1409, %v1387, %v497
  %v1425 = vsel %vm1409, %v1388, %v499
  %v1426 = vsel %vm1409, %v1389, %v501
  %v1427 = vsel %vm1409, %v1390, %v503
  %v1428 = vsel %vm1409, %v1391, %v505
  %v1429 = vsel %vm1409, %v1392, %v507
  %v1430 = vsel %vm1409, %v1393, %v509
  %v1431 = vsel %vm1409, %v1394, %v511
  %v1432 = vsel %vm1409, %v1395, %v513
  %v1433 = vsel %vm1409, %v1396, %v515
  %v1434 = vsel %vm1409, %v1397, %v517
  %v1435 = vsel %vm1409, %v1398, %v519
  %v1436 = vsel %vm1409, %v1399, %v521
  %v1437 = vsel %vm1409, %v1400, %v523
  %v1438 = vsel %vm1409, %v1401, %v525
  %v1439 = vsel %vm1409, %v1402, %v527
  %v1440 = vsel %vm1409, %v1403, %v529
  %v1441 = vsel %vm1409, %v1404, %v531
  %v1442 = vsel %vm1409, %v1405, %v533
  %v1443 = vsel %vm1409, %v1406, %v535
  %v1444 = vsel %vm1409, %v1407, %v537
  %v1445 = vsel %vm1409, %v1408, %v539
  %vm1446 = vcmask 97280
  %v1447 = vsel %vm1446, %v1410, %v579
  %v1448 = vsel %vm1446, %v1411, %v581
  %v1449 = vsel %vm1446, %v1412, %v583
  %v1450 = vsel %vm1446, %v1413, %v585
  %v1451 = vsel %vm1446, %v1414, %v587
  %v1452 = vsel %vm1446, %v1415, %v589
  %v1453 = vsel %vm1446, %v1416, %v591
  %v1454 = vsel %vm1446, %v1417, %v593
  %v1455 = vsel %vm1446, %v1418, %v595
  %v1456 = vsel %vm1446, %v1419, %v597
  %v1457 = vsel %vm1446, %v1420, %v599
  %v1458 = vsel %vm1446, %v1421, %v601
  %v1459 = vsel %vm1446, %v1422, %v603
  %v1460 = vsel %vm1446, %v1423, %v605
  %v1461 = vsel %vm1446, %v1424, %v607
  %v1462 = vsel %vm1446, %v1425, %v609
  %v1463 = vsel %vm1446, %v1426, %v611
  %v1464 = vsel %vm1446, %v1427, %v613
  %v1465 = vsel %vm1446, %v1428, %v615
  %v1466 = vsel %vm1446, %v1429, %v617
  %v1467 = vsel %vm1446, %v1430, %v619
  %v1468 = vsel %vm1446, %v1431, %v621
  %v1469 = vsel %vm1446, %v1432, %v623
  %v1470 = vsel %vm1446, %v1433, %v625
  %v1471 = vsel %vm1446, %v1434, %v627
  %v1472 = vsel %vm1446, %v1435, %v629
  %v1473 = vsel %vm1446, %v1436, %v631
  %v1474 = vsel %vm1446, %v1437, %v633
  %v1475 = vsel %vm1446, %v1438, %v635
  %v1476 = vsel %vm1446, %v1439, %v637
  %v1477 = vsel %vm1446, %v1440, %v639
  %v1478 = vsel %vm1446, %v1441, %v641
  %v1479 = vsel %vm1446, %v1442, %v643
  %v1480 = vsel %vm1446, %v1443, %v645
  %v1481 = vsel %vm1446, %v1444, %v647
  %v1482 = vsel %vm1446, %v1445, %v649
  %vm1483 = vcmask 130048
  %v1484 = vsel %vm1483, %v1447, %v723
  %v1485 = vsel %vm1483, %v1448, %v725
  %v1486 = vsel %vm1483, %v1449, %v727
  %v1487 = vsel %vm1483, %v1450, %v729
  %v1488 = vsel %vm1483, %v1451, %v731
  %v1489 = vsel %vm1483, %v1452, %v733
  %v1490 = vsel %vm1483, %v1453, %v735
  %v1491 = vsel %vm1483, %v1454, %v737
  %v1492 = vsel %vm1483, %v1455, %v739
  %v1493 = vsel %vm1483, %v1456, %v741
  %v1494 = vsel %vm1483, %v1457, %v743
  %v1495 = vsel %vm1483, %v1458, %v745
  %v1496 = vsel %vm1483, %v1459, %v747
  %v1497 = vsel %vm1483, %v1460, %v749
  %v1498 = vsel %vm1483, %v1461, %v751
  %v1499 = vsel %vm1483, %v1462, %v753
  %v1500 = vsel %vm1483, %v1463, %v755
  %v1501 = vsel %vm1483, %v1464, %v757
  %v1502 = vsel %vm1483, %v1465, %v759
  %v1503 = vsel %vm1483, %v1466, %v761
  %v1504 = vsel %vm1483, %v1467, %v763
  %v1505 = vsel %vm1483, %v1468, %v765
  %v1506 = vsel %vm1483, %v1469, %v767
  %v1507 = vsel %vm1483, %v1470, %v769
  %v1508 = vsel %vm1483, %v1471, %v771
  %v1509 = vsel %vm1483, %v1472, %v773
  %v1510 = vsel %vm1483, %v1473, %v775
  %v1511 = vsel %vm1483, %v1474, %v777
  %v1512 = vsel %vm1483, %v1475, %v779
  %v1513 = vsel %vm1483, %v1476, %v781
  %v1514 = vsel %vm1483, %v1477, %v783
  %v1515 = vsel %vm1483, %v1478, %v785
  %v1516 = vsel %vm1483, %v1479, %v787
  %v1517 = vsel %vm1483, %v1480, %v789
  %v1518 = vsel %vm1483, %v1481, %v791
  %v1519 = vsel %vm1483, %v1482, %v793
  %vm1520 = vcmask 162816
  %v1521 = vsel %vm1520, %v1484, %v867
  %v1522 = vsel %vm1520, %v1485, %v869
  %v1523 = vsel %vm1520, %v1486, %v871
  %v1524 = vsel %vm1520, %v1487, %v873
  %v1525 = vsel %vm1520, %v1488, %v875
  %v1526 = vsel %vm1520, %v1489, %v877
  %v1527 = vsel %vm1520, %v1490, %v879
  %v1528 = vsel %vm1520, %v1491, %v881
  %v1529 = vsel %vm1520, %v1492, %v883
  %v1530 = vsel %vm1520, %v1493, %v885
  %v1531 = vsel %vm1520, %v1494, %v887
  %v1532 = vsel %vm1520, %v1495, %v889
  %v1533 = vsel %vm1520, %v1496, %v891
  %v1534 = vsel %vm1520, %v1497, %v893
  %v1535 = vsel %vm1520, %v1498, %v895
  %v1536 = vsel %vm1520, %v1499, %v897
  %v1537 = vsel %vm1520, %v1500, %v899
  %v1538 = vsel %vm1520, %v1501, %v901
  %v1539 = vsel %vm1520, %v1502, %v903
  %v1540 = vsel %vm1520, %v1503, %v905
  %v1541 = vsel %vm1520, %v1504, %v907
  %v1542 = vsel %vm1520, %v1505, %v909
  %v1543 = vsel %vm1520, %v1506, %v911
  %v1544 = vsel %vm1520, %v1507, %v913
  %v1545 = vsel %vm1520, %v1508, %v915
  %v1546 = vsel %vm1520, %v1509, %v917
  %v1547 = vsel %vm1520, %v1510, %v919
  %v1548 = vsel %vm1520, %v1511, %v921
  %v1549 = vsel %vm1520, %v1512, %v923
  %v1550 = vsel %vm1520, %v1513, %v925
  %v1551 = vsel %vm1520, %v1514, %v927
  %v1552 = vsel %vm1520, %v1515, %v929
  %v1553 = vsel %vm1520, %v1516, %v931
  %v1554 = vsel %vm1520, %v1517, %v933
  %v1555 = vsel %vm1520, %v1518, %v935
  %v1556 = vsel %vm1520, %v1519, %v937
  %vm1557 = vcmask 195584
  %v1558 = vsel %vm1557, %v1521, %v977
  %v1559 = vsel %vm1557, %v1522, %v979
  %v1560 = vsel %vm1557, %v1523, %v981
  %v1561 = vsel %vm1557, %v1524, %v983
  %v1562 = vsel %vm1557, %v1525, %v985
  %v1563 = vsel %vm1557, %v1526, %v987
  %v1564 = vsel %vm1557, %v1527, %v989
  %v1565 = vsel %vm1557, %v1528, %v991
  %v1566 = vsel %vm1557, %v1529, %v993
  %v1567 = vsel %vm1557, %v1530, %v995
  %v1568 = vsel %vm1557, %v1531, %v997
  %v1569 = vsel %vm1557, %v1532, %v999
  %v1570 = vsel %vm1557, %v1533, %v1001
  %v1571 = vsel %vm1557, %v1534, %v1003
  %v1572 = vsel %vm1557, %v1535, %v1005
  %v1573 = vsel %vm1557, %v1536, %v1007
  %v1574 = vsel %vm1557, %v1537, %v1009
  %v1575 = vsel %vm1557, %v1538, %v1011
  %v1576 = vsel %vm1557, %v1539, %v1013
  %v1577 = vsel %vm1557, %v1540, %v1015
  %v1578 = vsel %vm1557, %v1541, %v1017
  %v1579 = vsel %vm1557, %v1542, %v1019
  %v1580 = vsel %vm1557, %v1543, %v1021
  %v1581 = vsel %vm1557, %v1544, %v1023
  %v1582 = vsel %vm1557, %v1545, %v1025
  %v1583 = vsel %vm1557, %v1546, %v1027
  %v1584 = vsel %vm1557, %v1547, %v1029
  %v1585 = vsel %vm1557, %v1548, %v1031
  %v1586 = vsel %vm1557, %v1549, %v1033
  %v1587 = vsel %vm1557, %v1550, %v1035
  %v1588 = vsel %vm1557, %v1551, %v1037
  %v1589 = vsel %vm1557, %v1552, %v1039
  %v1590 = vsel %vm1557, %v1553, %v1041
  %v1591 = vsel %vm1557, %v1554, %v1043
  %v1592 = vsel %vm1557, %v1555, %v1045
  %v1593 = vsel %vm1557, %v1556, %v1047
  %vm1594 = vcmask 228352
  %v1595 = vsel %vm1594, %v1558, %v1121
  %v1596 = vsel %vm1594, %v1559, %v1123
  %v1597 = vsel %vm1594, %v1560, %v1125
  %v1598 = vsel %vm1594, %v1561, %v1127
  %v1599 = vsel %vm1594, %v1562, %v1129
  %v1600 = vsel %vm1594, %v1563, %v1131
  %v1601 = vsel %vm1594, %v1564, %v1133
  %v1602 = vsel %vm1594, %v1565, %v1135
  %v1603 = vsel %vm1594, %v1566, %v1137
  %v1604 = vsel %vm1594, %v1567, %v1139
  %v1605 = vsel %vm1594, %v1568, %v1141
  %v1606 = vsel %vm1594, %v1569, %v1143
  %v1607 = vsel %vm1594, %v1570, %v1145
  %v1608 = vsel %vm1594, %v1571, %v1147
  %v1609 = vsel %vm1594, %v1572, %v1149
  %v1610 = vsel %vm1594, %v1573, %v1151
  %v1611 = vsel %vm1594, %v1574, %v1153
  %v1612 = vsel %vm1594, %v1575, %v1155
  %v1613 = vsel %vm1594, %v1576, %v1157
  %v1614 = vsel %vm1594, %v1577, %v1159
  %v1615 = vsel %vm1594, %v1578, %v1161
  %v1616 = vsel %vm1594, %v1579, %v1163
  %v1617 = vsel %vm1594, %v1580, %v1165
  %v1618 = vsel %vm1594, %v1581, %v1167
  %v1619 = vsel %vm1594, %v1582, %v1169
  %v1620 = vsel %vm1594, %v1583, %v1171
  %v1621 = vsel %vm1594, %v1584, %v1173
  %v1622 = vsel %vm1594, %v1585, %v1175
  %v1623 = vsel %vm1594, %v1586, %v1177
  %v1624 = vsel %vm1594, %v1587, %v1179
  %v1625 = vsel %vm1594, %v1588, %v1181
  %v1626 = vsel %vm1594, %v1589, %v1183
  %v1627 = vsel %vm1594, %v1590, %v1185
  %v1628 = vsel %vm1594, %v1591, %v1187
  %v1629 = vsel %vm1594, %v1592, %v1189
  %v1630 = vsel %vm1594, %v1593, %v1191
  %vm1631 = vcmask 261120
  %v1632 = vsel %vm1631, %v1595, %v1265
  %v1633 = vsel %vm1631, %v1596, %v1267
  %v1634 = vsel %vm1631, %v1597, %v1269
  %v1635 = vsel %vm1631, %v1598, %v1271
  %v1636 = vsel %vm1631, %v1599, %v1273
  %v1637 = vsel %vm1631, %v1600, %v1275
  %v1638 = vsel %vm1631, %v1601, %v1277
  %v1639 = vsel %vm1631, %v1602, %v1279
  %v1640 = vsel %vm1631, %v1603, %v1281
  %v1641 = vsel %vm1631, %v1604, %v1283
  %v1642 = vsel %vm1631, %v1605, %v1285
  %v1643 = vsel %vm1631, %v1606, %v1287
  %v1644 = vsel %vm1631, %v1607, %v1289
  %v1645 = vsel %vm1631, %v1608, %v1291
  %v1646 = vsel %vm1631, %v1609, %v1293
  %v1647 = vsel %vm1631, %v1610, %v1295
  %v1648 = vsel %vm1631, %v1611, %v1297
  %v1649 = vsel %vm1631, %v1612, %v1299
  %v1650 = vsel %vm1631, %v1613, %v1301
  %v1651 = vsel %vm1631, %v1614, %v1303
  %v1652 = vsel %vm1631, %v1615, %v1305
  %v1653 = vsel %vm1631, %v1616, %v1307
  %v1654 = vsel %vm1631, %v1617, %v1309
  %v1655 = vsel %vm1631, %v1618, %v1311
  %v1656 = vsel %vm1631, %v1619, %v1313
  %v1657 = vsel %vm1631, %v1620, %v1315
  %v1658 = vsel %vm1631, %v1621, %v1317
  %v1659 = vsel %vm1631, %v1622, %v1319
  %v1660 = vsel %vm1631, %v1623, %v1321
  %v1661 = vsel %vm1631, %v1624, %v1323
  %v1662 = vsel %vm1631, %v1625, %v1325
  %v1663 = vsel %vm1631, %v1626, %v1327
  %v1664 = vsel %vm1631, %v1627, %v1329
  %v1665 = vsel %vm1631, %v1628, %v1331
  %v1666 = vsel %vm1631, %v1629, %v1333
  %v1667 = vsel %vm1631, %v1630, %v1335
  %s1668 = scalar_lea.vmem %s0, 328
  %v1669 = vld [vmem:[%s1668] sm:$0xff]
  %v1670 = vld [vmem:[%s1668 + $0x8] sm:$0xff]
  %v1671 = vld [vmem:[%s1668 + $0x10] sm:$0xff]
  %v1672 = vld [vmem:[%s1668 + $0x18] sm:$0xff]
  %v1673 = vld [vmem:[%s1668 + $0x20] sm:$0xff]
  %v1674 = vld [vmem:[%s1668 + $0x28] sm:$0xff]
  %v1675 = vld [vmem:[%s1668 + $0x30] sm:$0xff]
  %v1676 = vld [vmem:[%s1668 + $0x38] sm:$0xff]
  %v1677 = vld [vmem:[%s1668 + $0x40] sm:$0xff]
  %v1678 = vld [vmem:[%s1668 + $0x48] sm:$0xff]
  %v1679 = vld [vmem:[%s1668 + $0x50] sm:$0xff]
  %v1680 = vld [vmem:[%s1668 + $0x58] sm:$0xff]
  %v1681 = vld [vmem:[%s1668 + $0x60] sm:$0xff]
  %v1682 = vld [vmem:[%s1668 + $0x68] sm:$0xff]
  %v1683 = vld [vmem:[%s1668 + $0x70] sm:$0xff]
  %v1684 = vld [vmem:[%s1668 + $0x78] sm:$0xff]
  %v1685 = vld [vmem:[%s1668 + $0x80] sm:$0xff]
  %v1686 = vld [vmem:[%s1668 + $0x88] sm:$0xff]
  %v1687 = vld [vmem:[%s1668 + $0x90] sm:$0xff]
  %v1688 = vld [vmem:[%s1668 + $0x98] sm:$0xff]
  %v1689 = vld [vmem:[%s1668 + $0xa0] sm:$0xff]
  %v1690 = vld [vmem:[%s1668 + $0xa8] sm:$0xff]
  %v1691 = vld [vmem:[%s1668 + $0xb0] sm:$0xff]
  %v1692 = vld [vmem:[%s1668 + $0xb8] sm:$0xff]
  %v1693 = vld [vmem:[%s1668 + $0xc0] sm:$0xff]
  %v1694 = vld [vmem:[%s1668 + $0xc8] sm:$0xff]
  %v1695 = vld [vmem:[%s1668 + $0xd0] sm:$0xff]
  %v1696 = vld [vmem:[%s1668 + $0xd8] sm:$0xff]
  %v1697 = vld [vmem:[%s1668 + $0xe0] sm:$0xff]
  %v1698 = vld [vmem:[%s1668 + $0xe8] sm:$0xff]
  %v1699 = vld [vmem:[%s1668 + $0xf0] sm:$0xff]
  %v1700 = vld [vmem:[%s1668 + $0xf8] sm:$0xff]
  %v1701 = vld [vmem:[%s1668 + $0x100] sm:$0xff]
  %v1702 = vld [vmem:[%s1668 + $0x108] sm:$0xff]
  %v1703 = vld [vmem:[%s1668 + $0x110] sm:$0xff]
  %v1704 = vld [vmem:[%s1668 + $0x118] sm:$0xff]
  %v1705 = vld [vmem:[%s1668 + $0x1] sm:$0xff]
  %v1706 = vld [vmem:[%s1668 + $0x9] sm:$0xff]
  %v1707 = vld [vmem:[%s1668 + $0x11] sm:$0xff]
  %v1708 = vld [vmem:[%s1668 + $0x19] sm:$0xff]
  %v1709 = vld [vmem:[%s1668 + $0x21] sm:$0xff]
  %v1710 = vld [vmem:[%s1668 + $0x29] sm:$0xff]
  %v1711 = vld [vmem:[%s1668 + $0x31] sm:$0xff]
  %v1712 = vld [vmem:[%s1668 + $0x39] sm:$0xff]
  %v1713 = vld [vmem:[%s1668 + $0x41] sm:$0xff]
  %v1714 = vld [vmem:[%s1668 + $0x49] sm:$0xff]
  %v1715 = vld [vmem:[%s1668 + $0x51] sm:$0xff]
  %v1716 = vld [vmem:[%s1668 + $0x59] sm:$0xff]
  %v1717 = vld [vmem:[%s1668 + $0x61] sm:$0xff]
  %v1718 = vld [vmem:[%s1668 + $0x69] sm:$0xff]
  %v1719 = vld [vmem:[%s1668 + $0x71] sm:$0xff]
  %v1720 = vld [vmem:[%s1668 + $0x79] sm:$0xff]
  %v1721 = vld [vmem:[%s1668 + $0x81] sm:$0xff]
  %v1722 = vld [vmem:[%s1668 + $0x89] sm:$0xff]
  %v1723 = vld [vmem:[%s1668 + $0x91] sm:$0xff]
  %v1724 = vld [vmem:[%s1668 + $0x99] sm:$0xff]
  %v1725 = vld [vmem:[%s1668 + $0xa1] sm:$0xff]
  %v1726 = vld [vmem:[%s1668 + $0xa9] sm:$0xff]
  %v1727 = vld [vmem:[%s1668 + $0xb1] sm:$0xff]
  %v1728 = vld [vmem:[%s1668 + $0xb9] sm:$0xff]
  %v1729 = vld [vmem:[%s1668 + $0xc1] sm:$0xff]
  %v1730 = vld [vmem:[%s1668 + $0xc9] sm:$0xff]
  %v1731 = vld [vmem:[%s1668 + $0xd1] sm:$0xff]
  %v1732 = vld [vmem:[%s1668 + $0xd9] sm:$0xff]
  %v1733 = vld [vmem:[%s1668 + $0xe1] sm:$0xff]
  %v1734 = vld [vmem:[%s1668 + $0xe9] sm:$0xff]
  %v1735 = vld [vmem:[%s1668 + $0xf1] sm:$0xff]
  %v1736 = vld [vmem:[%s1668 + $0xf9] sm:$0xff]
  %v1737 = vld [vmem:[%s1668 + $0x101] sm:$0xff]
  %v1738 = vld [vmem:[%s1668 + $0x109] sm:$0xff]
  %v1739 = vld [vmem:[%s1668 + $0x111] sm:$0xff]
  %v1740 = vld [vmem:[%s1668 + $0x119] sm:$0xff]
  %v1741 = vld [vmem:[%s1668 + $0x2] sm:$0xff]
  %v1742 = vld [vmem:[%s1668 + $0xa] sm:$0xff]
  %v1743 = vld [vmem:[%s1668 + $0x12] sm:$0xff]
  %v1744 = vld [vmem:[%s1668 + $0x1a] sm:$0xff]
  %v1745 = vld [vmem:[%s1668 + $0x22] sm:$0xff]
  %v1746 = vld [vmem:[%s1668 + $0x2a] sm:$0xff]
  %v1747 = vld [vmem:[%s1668 + $0x32] sm:$0xff]
  %v1748 = vld [vmem:[%s1668 + $0x3a] sm:$0xff]
  %v1749 = vld [vmem:[%s1668 + $0x42] sm:$0xff]
  %v1750 = vld [vmem:[%s1668 + $0x4a] sm:$0xff]
  %v1751 = vld [vmem:[%s1668 + $0x52] sm:$0xff]
  %v1752 = vld [vmem:[%s1668 + $0x5a] sm:$0xff]
  %v1753 = vld [vmem:[%s1668 + $0x62] sm:$0xff]
  %v1754 = vld [vmem:[%s1668 + $0x6a] sm:$0xff]
  %v1755 = vld [vmem:[%s1668 + $0x72] sm:$0xff]
  %v1756 = vld [vmem:[%s1668 + $0x7a] sm:$0xff]
  %v1757 = vld [vmem:[%s1668 + $0x82] sm:$0xff]
  %v1758 = vld [vmem:[%s1668 + $0x8a] sm:$0xff]
  %v1759 = vld [vmem:[%s1668 + $0x92] sm:$0xff]
  %v1760 = vld [vmem:[%s1668 + $0x9a] sm:$0xff]
  %v1761 = vld [vmem:[%s1668 + $0xa2] sm:$0xff]
  %v1762 = vld [vmem:[%s1668 + $0xaa] sm:$0xff]
  %v1763 = vld [vmem:[%s1668 + $0xb2] sm:$0xff]
  %v1764 = vld [vmem:[%s1668 + $0xba] sm:$0xff]
  %v1765 = vld [vmem:[%s1668 + $0xc2] sm:$0xff]
  %v1766 = vld [vmem:[%s1668 + $0xca] sm:$0xff]
  %v1767 = vld [vmem:[%s1668 + $0xd2] sm:$0xff]
  %v1768 = vld [vmem:[%s1668 + $0xda] sm:$0xff]
  %v1769 = vld [vmem:[%s1668 + $0xe2] sm:$0xff]
  %v1770 = vld [vmem:[%s1668 + $0xea] sm:$0xff]
  %v1771 = vld [vmem:[%s1668 + $0xf2] sm:$0xff]
  %v1772 = vld [vmem:[%s1668 + $0xfa] sm:$0xff]
  %v1773 = vld [vmem:[%s1668 + $0x102] sm:$0xff]
  %v1774 = vld [vmem:[%s1668 + $0x10a] sm:$0xff]
  %v1775 = vld [vmem:[%s1668 + $0x112] sm:$0xff]
  %v1776 = vld [vmem:[%s1668 + $0x11a] sm:$0xff]
  %v1777 = vld [vmem:[%s1668 + $0x122] sm:$0xff]
  %v1778 = vld [vmem:[%s1668 + $0x12a] sm:$0xff]
  %v1779 = vld [vmem:[%s1668 + $0x13] sm:$0xff]
  %v1780 = vld [vmem:[%s1668 + $0x1b] sm:$0xff]
  %v1781 = vld [vmem:[%s1668 + $0x23] sm:$0xff]
  %v1782 = vld [vmem:[%s1668 + $0x2b] sm:$0xff]
  %v1783 = vld [vmem:[%s1668 + $0x33] sm:$0xff]
  %v1784 = vld [vmem:[%s1668 + $0x3b] sm:$0xff]
  %v1785 = vld [vmem:[%s1668 + $0x43] sm:$0xff]
  %v1786 = vld [vmem:[%s1668 + $0x4b] sm:$0xff]
  %v1787 = vld [vmem:[%s1668 + $0x53] sm:$0xff]
  %v1788 = vld [vmem:[%s1668 + $0x5b] sm:$0xff]
  %v1789 = vld [vmem:[%s1668 + $0x63] sm:$0xff]
  %v1790 = vld [vmem:[%s1668 + $0x6b] sm:$0xff]
  %v1791 = vld [vmem:[%s1668 + $0x73] sm:$0xff]
  %v1792 = vld [vmem:[%s1668 + $0x7b] sm:$0xff]
  %v1793 = vld [vmem:[%s1668 + $0x83] sm:$0xff]
  %v1794 = vld [vmem:[%s1668 + $0x8b] sm:$0xff]
  %v1795 = vld [vmem:[%s1668 + $0x93] sm:$0xff]
  %v1796 = vld [vmem:[%s1668 + $0x9b] sm:$0xff]
  %v1797 = vld [vmem:[%s1668 + $0xa3] sm:$0xff]
  %v1798 = vld [vmem:[%s1668 + $0xab] sm:$0xff]
  %v1799 = vld [vmem:[%s1668 + $0xb3] sm:$0xff]
  %v1800 = vld [vmem:[%s1668 + $0xbb] sm:$0xff]
  %v1801 = vld [vmem:[%s1668 + $0xc3] sm:$0xff]
  %v1802 = vld [vmem:[%s1668 + $0xcb] sm:$0xff]
  %v1803 = vld [vmem:[%s1668 + $0xd3] sm:$0xff]
  %v1804 = vld [vmem:[%s1668 + $0xdb] sm:$0xff]
  %v1805 = vld [vmem:[%s1668 + $0xe3] sm:$0xff]
  %v1806 = vld [vmem:[%s1668 + $0xeb] sm:$0xff]
  %v1807 = vld [vmem:[%s1668 + $0xf3] sm:$0xff]
  %v1808 = vld [vmem:[%s1668 + $0xfb] sm:$0xff]
  %v1809 = vld [vmem:[%s1668 + $0x103] sm:$0xff]
  %v1810 = vld [vmem:[%s1668 + $0x10b] sm:$0xff]
  %v1811 = vld [vmem:[%s1668 + $0x113] sm:$0xff]
  %v1812 = vld [vmem:[%s1668 + $0x11b] sm:$0xff]
  %v1813 = vld [vmem:[%s1668 + $0x123] sm:$0xff]
  %v1814 = vld [vmem:[%s1668 + $0x12b] sm:$0xff]
  %v1815 = vld [vmem:[%s1668 + $0x14] sm:$0xff]
  %v1816 = vld [vmem:[%s1668 + $0x1c] sm:$0xff]
  %v1817 = vld [vmem:[%s1668 + $0x24] sm:$0xff]
  %v1818 = vld [vmem:[%s1668 + $0x2c] sm:$0xff]
  %v1819 = vld [vmem:[%s1668 + $0x34] sm:$0xff]
  %v1820 = vld [vmem:[%s1668 + $0x3c] sm:$0xff]
  %v1821 = vld [vmem:[%s1668 + $0x44] sm:$0xff]
  %v1822 = vld [vmem:[%s1668 + $0x4c] sm:$0xff]
  %v1823 = vld [vmem:[%s1668 + $0x54] sm:$0xff]
  %v1824 = vld [vmem:[%s1668 + $0x5c] sm:$0xff]
  %v1825 = vld [vmem:[%s1668 + $0x64] sm:$0xff]
  %v1826 = vld [vmem:[%s1668 + $0x6c] sm:$0xff]
  %v1827 = vld [vmem:[%s1668 + $0x74] sm:$0xff]
  %v1828 = vld [vmem:[%s1668 + $0x7c] sm:$0xff]
  %v1829 = vld [vmem:[%s1668 + $0x84] sm:$0xff]
  %v1830 = vld [vmem:[%s1668 + $0x8c] sm:$0xff]
  %v1831 = vld [vmem:[%s1668 + $0x94] sm:$0xff]
  %v1832 = vld [vmem:[%s1668 + $0x9c] sm:$0xff]
  %v1833 = vld [vmem:[%s1668 + $0xa4] sm:$0xff]
  %v1834 = vld [vmem:[%s1668 + $0xac] sm:$0xff]
  %v1835 = vld [vmem:[%s1668 + $0xb4] sm:$0xff]
  %v1836 = vld [vmem:[%s1668 + $0xbc] sm:$0xff]
  %v1837 = vld [vmem:[%s1668 + $0xc4] sm:$0xff]
  %v1838 = vld [vmem:[%s1668 + $0xcc] sm:$0xff]
  %v1839 = vld [vmem:[%s1668 + $0xd4] sm:$0xff]
  %v1840 = vld [vmem:[%s1668 + $0xdc] sm:$0xff]
  %v1841 = vld [vmem:[%s1668 + $0xe4] sm:$0xff]
  %v1842 = vld [vmem:[%s1668 + $0xec] sm:$0xff]
  %v1843 = vld [vmem:[%s1668 + $0xf4] sm:$0xff]
  %v1844 = vld [vmem:[%s1668 + $0xfc] sm:$0xff]
  %v1845 = vld [vmem:[%s1668 + $0x104] sm:$0xff]
  %v1846 = vld [vmem:[%s1668 + $0x10c] sm:$0xff]
  %v1847 = vld [vmem:[%s1668 + $0x114] sm:$0xff]
  %v1848 = vld [vmem:[%s1668 + $0x11c] sm:$0xff]
  %v1849 = vld [vmem:[%s1668 + $0x124] sm:$0xff]
  %v1850 = vld [vmem:[%s1668 + $0x12c] sm:$0xff]
  %v1851 = vld [vmem:[%s1668 + $0x134] sm:$0xff]
  %v1852 = vld [vmem:[%s1668 + $0x13c] sm:$0xff]
  %v1853 = vld [vmem:[%s1668 + $0x25] sm:$0xff]
  %v1854 = vld [vmem:[%s1668 + $0x2d] sm:$0xff]
  %v1855 = vld [vmem:[%s1668 + $0x35] sm:$0xff]
  %v1856 = vld [vmem:[%s1668 + $0x3d] sm:$0xff]
  %v1857 = vld [vmem:[%s1668 + $0x45] sm:$0xff]
  %v1858 = vld [vmem:[%s1668 + $0x4d] sm:$0xff]
  %v1859 = vld [vmem:[%s1668 + $0x55] sm:$0xff]
  %v1860 = vld [vmem:[%s1668 + $0x5d] sm:$0xff]
  %v1861 = vld [vmem:[%s1668 + $0x65] sm:$0xff]
  %v1862 = vld [vmem:[%s1668 + $0x6d] sm:$0xff]
  %v1863 = vld [vmem:[%s1668 + $0x75] sm:$0xff]
  %v1864 = vld [vmem:[%s1668 + $0x7d] sm:$0xff]
  %v1865 = vld [vmem:[%s1668 + $0x85] sm:$0xff]
  %v1866 = vld [vmem:[%s1668 + $0x8d] sm:$0xff]
  %v1867 = vld [vmem:[%s1668 + $0x95] sm:$0xff]
  %v1868 = vld [vmem:[%s1668 + $0x9d] sm:$0xff]
  %v1869 = vld [vmem:[%s1668 + $0xa5] sm:$0xff]
  %v1870 = vld [vmem:[%s1668 + $0xad] sm:$0xff]
  %v1871 = vld [vmem:[%s1668 + $0xb5] sm:$0xff]
  %v1872 = vld [vmem:[%s1668 + $0xbd] sm:$0xff]
  %v1873 = vld [vmem:[%s1668 + $0xc5] sm:$0xff]
  %v1874 = vld [vmem:[%s1668 + $0xcd] sm:$0xff]
  %v1875 = vld [vmem:[%s1668 + $0xd5] sm:$0xff]
  %v1876 = vld [vmem:[%s1668 + $0xdd] sm:$0xff]
  %v1877 = vld [vmem:[%s1668 + $0xe5] sm:$0xff]
  %v1878 = vld [vmem:[%s1668 + $0xed] sm:$0xff]
  %v1879 = vld [vmem:[%s1668 + $0xf5] sm:$0xff]
  %v1880 = vld [vmem:[%s1668 + $0xfd] sm:$0xff]
  %v1881 = vld [vmem:[%s1668 + $0x105] sm:$0xff]
  %v1882 = vld [vmem:[%s1668 + $0x10d] sm:$0xff]
  %v1883 = vld [vmem:[%s1668 + $0x115] sm:$0xff]
  %v1884 = vld [vmem:[%s1668 + $0x11d] sm:$0xff]
  %v1885 = vld [vmem:[%s1668 + $0x125] sm:$0xff]
  %v1886 = vld [vmem:[%s1668 + $0x12d] sm:$0xff]
  %v1887 = vld [vmem:[%s1668 + $0x135] sm:$0xff]
  %v1888 = vld [vmem:[%s1668 + $0x13d] sm:$0xff]
  %v1889 = vld [vmem:[%s1668 + $0x26] sm:$0xff]
  %v1890 = vld [vmem:[%s1668 + $0x2e] sm:$0xff]
  %v1891 = vld [vmem:[%s1668 + $0x36] sm:$0xff]
  %v1892 = vld [vmem:[%s1668 + $0x3e] sm:$0xff]
  %v1893 = vld [vmem:[%s1668 + $0x46] sm:$0xff]
  %v1894 = vld [vmem:[%s1668 + $0x4e] sm:$0xff]
  %v1895 = vld [vmem:[%s1668 + $0x56] sm:$0xff]
  %v1896 = vld [vmem:[%s1668 + $0x5e] sm:$0xff]
  %v1897 = vld [vmem:[%s1668 + $0x66] sm:$0xff]
  %v1898 = vld [vmem:[%s1668 + $0x6e] sm:$0xff]
  %v1899 = vld [vmem:[%s1668 + $0x76] sm:$0xff]
  %v1900 = vld [vmem:[%s1668 + $0x7e] sm:$0xff]
  %v1901 = vld [vmem:[%s1668 + $0x86] sm:$0xff]
  %v1902 = vld [vmem:[%s1668 + $0x8e] sm:$0xff]
  %v1903 = vld [vmem:[%s1668 + $0x96] sm:$0xff]
  %v1904 = vld [vmem:[%s1668 + $0x9e] sm:$0xff]
  %v1905 = vld [vmem:[%s1668 + $0xa6] sm:$0xff]
  %v1906 = vld [vmem:[%s1668 + $0xae] sm:$0xff]
  %v1907 = vld [vmem:[%s1668 + $0xb6] sm:$0xff]
  %v1908 = vld [vmem:[%s1668 + $0xbe] sm:$0xff]
  %v1909 = vld [vmem:[%s1668 + $0xc6] sm:$0xff]
  %v1910 = vld [vmem:[%s1668 + $0xce] sm:$0xff]
  %v1911 = vld [vmem:[%s1668 + $0xd6] sm:$0xff]
  %v1912 = vld [vmem:[%s1668 + $0xde] sm:$0xff]
  %v1913 = vld [vmem:[%s1668 + $0xe6] sm:$0xff]
  %v1914 = vld [vmem:[%s1668 + $0xee] sm:$0xff]
  %v1915 = vld [vmem:[%s1668 + $0xf6] sm:$0xff]
  %v1916 = vld [vmem:[%s1668 + $0xfe] sm:$0xff]
  %v1917 = vld [vmem:[%s1668 + $0x106] sm:$0xff]
  %v1918 = vld [vmem:[%s1668 + $0x10e] sm:$0xff]
  %v1919 = vld [vmem:[%s1668 + $0x116] sm:$0xff]
  %v1920 = vld [vmem:[%s1668 + $0x11e] sm:$0xff]
  %v1921 = vld [vmem:[%s1668 + $0x126] sm:$0xff]
  %v1922 = vld [vmem:[%s1668 + $0x12e] sm:$0xff]
  %v1923 = vld [vmem:[%s1668 + $0x136] sm:$0xff]
  %v1924 = vld [vmem:[%s1668 + $0x13e] sm:$0xff]
  %1961 = vrot.lane.b32.xlu0 %v1705, 4
  %v1962 = vpop.permute.xlu0 %1961
  %1963 = vrot.lane.b32.xlu0 %v1706, 4
  %v1964 = vpop.permute.xlu0 %1963
  %1965 = vrot.lane.b32.xlu0 %v1707, 4
  %v1966 = vpop.permute.xlu0 %1965
  %1967 = vrot.lane.b32.xlu0 %v1708, 4
  %v1968 = vpop.permute.xlu0 %1967
  %1969 = vrot.lane.b32.xlu0 %v1709, 4
  %v1970 = vpop.permute.xlu0 %1969
  %1971 = vrot.lane.b32.xlu0 %v1710, 4
  %v1972 = vpop.permute.xlu0 %1971
  %1973 = vrot.lane.b32.xlu0 %v1711, 4
  %v1974 = vpop.permute.xlu0 %1973
  %1975 = vrot.lane.b32.xlu0 %v1712, 4
  %v1976 = vpop.permute.xlu0 %1975
  %1977 = vrot.lane.b32.xlu0 %v1713, 4
  %v1978 = vpop.permute.xlu0 %1977
  %1979 = vrot.lane.b32.xlu0 %v1714, 4
  %v1980 = vpop.permute.xlu0 %1979
  %1981 = vrot.lane.b32.xlu0 %v1715, 4
  %v1982 = vpop.permute.xlu0 %1981
  %1983 = vrot.lane.b32.xlu0 %v1716, 4
  %v1984 = vpop.permute.xlu0 %1983
  %1985 = vrot.lane.b32.xlu0 %v1717, 4
  %v1986 = vpop.permute.xlu0 %1985
  %1987 = vrot.lane.b32.xlu0 %v1718, 4
  %v1988 = vpop.permute.xlu0 %1987
  %1989 = vrot.lane.b32.xlu0 %v1719, 4
  %v1990 = vpop.permute.xlu0 %1989
  %1991 = vrot.lane.b32.xlu0 %v1720, 4
  %v1992 = vpop.permute.xlu0 %1991
  %1993 = vrot.lane.b32.xlu0 %v1721, 4
  %v1994 = vpop.permute.xlu0 %1993
  %1995 = vrot.lane.b32.xlu0 %v1722, 4
  %v1996 = vpop.permute.xlu0 %1995
  %1997 = vrot.lane.b32.xlu0 %v1723, 4
  %v1998 = vpop.permute.xlu0 %1997
  %1999 = vrot.lane.b32.xlu0 %v1724, 4
  %v2000 = vpop.permute.xlu0 %1999
  %2001 = vrot.lane.b32.xlu0 %v1725, 4
  %v2002 = vpop.permute.xlu0 %2001
  %2003 = vrot.lane.b32.xlu0 %v1726, 4
  %v2004 = vpop.permute.xlu0 %2003
  %2005 = vrot.lane.b32.xlu0 %v1727, 4
  %v2006 = vpop.permute.xlu0 %2005
  %2007 = vrot.lane.b32.xlu0 %v1728, 4
  %v2008 = vpop.permute.xlu0 %2007
  %2009 = vrot.lane.b32.xlu0 %v1729, 4
  %v2010 = vpop.permute.xlu0 %2009
  %2011 = vrot.lane.b32.xlu0 %v1730, 4
  %v2012 = vpop.permute.xlu0 %2011
  %2013 = vrot.lane.b32.xlu0 %v1731, 4
  %v2014 = vpop.permute.xlu0 %2013
  %2015 = vrot.lane.b32.xlu0 %v1732, 4
  %v2016 = vpop.permute.xlu0 %2015
  %2017 = vrot.lane.b32.xlu0 %v1733, 4
  %v2018 = vpop.permute.xlu0 %2017
  %2019 = vrot.lane.b32.xlu0 %v1734, 4
  %v2020 = vpop.permute.xlu0 %2019
  %2021 = vrot.lane.b32.xlu0 %v1735, 4
  %v2022 = vpop.permute.xlu0 %2021
  %2023 = vrot.lane.b32.xlu0 %v1736, 4
  %v2024 = vpop.permute.xlu0 %2023
  %2025 = vrot.lane.b32.xlu0 %v1737, 4
  %v2026 = vpop.permute.xlu0 %2025
  %2027 = vrot.lane.b32.xlu0 %v1738, 4
  %v2028 = vpop.permute.xlu0 %2027
  %2029 = vrot.lane.b32.xlu0 %v1739, 4
  %v2030 = vpop.permute.xlu0 %2029
  %2031 = vrot.lane.b32.xlu0 %v1740, 4
  %v2032 = vpop.permute.xlu0 %2031
  %2105 = vrot.lane.b32.xlu0 %v1741, 8
  %v2106 = vpop.permute.xlu0 %2105
  %2107 = vrot.lane.b32.xlu0 %v1742, 8
  %v2108 = vpop.permute.xlu0 %2107
  %2109 = vrot.lane.b32.xlu0 %v1743, 8
  %v2110 = vpop.permute.xlu0 %2109
  %2111 = vrot.lane.b32.xlu0 %v1744, 8
  %v2112 = vpop.permute.xlu0 %2111
  %2113 = vrot.lane.b32.xlu0 %v1745, 8
  %v2114 = vpop.permute.xlu0 %2113
  %2115 = vrot.lane.b32.xlu0 %v1746, 8
  %v2116 = vpop.permute.xlu0 %2115
  %2117 = vrot.lane.b32.xlu0 %v1747, 8
  %v2118 = vpop.permute.xlu0 %2117
  %2119 = vrot.lane.b32.xlu0 %v1748, 8
  %v2120 = vpop.permute.xlu0 %2119
  %2121 = vrot.lane.b32.xlu0 %v1749, 8
  %v2122 = vpop.permute.xlu0 %2121
  %2123 = vrot.lane.b32.xlu0 %v1750, 8
  %v2124 = vpop.permute.xlu0 %2123
  %2125 = vrot.lane.b32.xlu0 %v1751, 8
  %v2126 = vpop.permute.xlu0 %2125
  %2127 = vrot.lane.b32.xlu0 %v1752, 8
  %v2128 = vpop.permute.xlu0 %2127
  %2129 = vrot.lane.b32.xlu0 %v1753, 8
  %v2130 = vpop.permute.xlu0 %2129
  %2131 = vrot.lane.b32.xlu0 %v1754, 8
  %v2132 = vpop.permute.xlu0 %2131
  %2133 = vrot.lane.b32.xlu0 %v1755, 8
  %v2134 = vpop.permute.xlu0 %2133
  %2135 = vrot.lane.b32.xlu0 %v1756, 8
  %v2136 = vpop.permute.xlu0 %2135
  %2137 = vrot.lane.b32.xlu0 %v1757, 8
  %v2138 = vpop.permute.xlu0 %2137
  %2139 = vrot.lane.b32.xlu0 %v1758, 8
  %v2140 = vpop.permute.xlu0 %2139
  %2141 = vrot.lane.b32.xlu0 %v1759, 8
  %v2142 = vpop.permute.xlu0 %2141
  %2143 = vrot.lane.b32.xlu0 %v1760, 8
  %v2144 = vpop.permute.xlu0 %2143
  %2145 = vrot.lane.b32.xlu0 %v1761, 8
  %v2146 = vpop.permute.xlu0 %2145
  %2147 = vrot.lane.b32.xlu0 %v1762, 8
  %v2148 = vpop.permute.xlu0 %2147
  %2149 = vrot.lane.b32.xlu0 %v1763, 8
  %v2150 = vpop.permute.xlu0 %2149
  %2151 = vrot.lane.b32.xlu0 %v1764, 8
  %v2152 = vpop.permute.xlu0 %2151
  %2153 = vrot.lane.b32.xlu0 %v1765, 8
  %v2154 = vpop.permute.xlu0 %2153
  %2155 = vrot.lane.b32.xlu0 %v1766, 8
  %v2156 = vpop.permute.xlu0 %2155
  %2157 = vrot.lane.b32.xlu0 %v1767, 8
  %v2158 = vpop.permute.xlu0 %2157
  %2159 = vrot.lane.b32.xlu0 %v1768, 8
  %v2160 = vpop.permute.xlu0 %2159
  %2161 = vrot.lane.b32.xlu0 %v1769, 8
  %v2162 = vpop.permute.xlu0 %2161
  %2163 = vrot.lane.b32.xlu0 %v1770, 8
  %v2164 = vpop.permute.xlu0 %2163
  %2165 = vrot.lane.b32.xlu0 %v1771, 8
  %v2166 = vpop.permute.xlu0 %2165
  %2167 = vrot.lane.b32.xlu0 %v1772, 8
  %v2168 = vpop.permute.xlu0 %2167
  %2169 = vrot.lane.b32.xlu0 %v1773, 8
  %v2170 = vpop.permute.xlu0 %2169
  %2171 = vrot.lane.b32.xlu0 %v1774, 8
  %v2172 = vpop.permute.xlu0 %2171
  %2173 = vrot.lane.b32.xlu0 %v1775, 8
  %v2174 = vpop.permute.xlu0 %2173
  %2175 = vrot.lane.b32.xlu0 %v1776, 8
  %v2176 = vpop.permute.xlu0 %2175
  %2215 = vrot.lane.b32.xlu0 %v1743, 12
  %v2216 = vpop.permute.xlu0 %2215
  %2217 = vrot.lane.b32.xlu0 %v1744, 12
  %v2218 = vpop.permute.xlu0 %2217
  %2219 = vrot.lane.b32.xlu0 %v1745, 12
  %v2220 = vpop.permute.xlu0 %2219
  %2221 = vrot.lane.b32.xlu0 %v1746, 12
  %v2222 = vpop.permute.xlu0 %2221
  %2223 = vrot.lane.b32.xlu0 %v1747, 12
  %v2224 = vpop.permute.xlu0 %2223
  %2225 = vrot.lane.b32.xlu0 %v1748, 12
  %v2226 = vpop.permute.xlu0 %2225
  %2227 = vrot.lane.b32.xlu0 %v1749, 12
  %v2228 = vpop.permute.xlu0 %2227
  %2229 = vrot.lane.b32.xlu0 %v1750, 12
  %v2230 = vpop.permute.xlu0 %2229
  %2231 = vrot.lane.b32.xlu0 %v1751, 12
  %v2232 = vpop.permute.xlu0 %2231
  %2233 = vrot.lane.b32.xlu0 %v1752, 12
  %v2234 = vpop.permute.xlu0 %2233
  %2235 = vrot.lane.b32.xlu0 %v1753, 12
  %v2236 = vpop.permute.xlu0 %2235
  %2237 = vrot.lane.b32.xlu0 %v1754, 12
  %v2238 = vpop.permute.xlu0 %2237
  %2239 = vrot.lane.b32.xlu0 %v1755, 12
  %v2240 = vpop.permute.xlu0 %2239
  %2241 = vrot.lane.b32.xlu0 %v1756, 12
  %v2242 = vpop.permute.xlu0 %2241
  %2243 = vrot.lane.b32.xlu0 %v1757, 12
  %v2244 = vpop.permute.xlu0 %2243
  %2245 = vrot.lane.b32.xlu0 %v1758, 12
  %v2246 = vpop.permute.xlu0 %2245
  %2247 = vrot.lane.b32.xlu0 %v1759, 12
  %v2248 = vpop.permute.xlu0 %2247
  %2249 = vrot.lane.b32.xlu0 %v1760, 12
  %v2250 = vpop.permute.xlu0 %2249
  %2251 = vrot.lane.b32.xlu0 %v1761, 12
  %v2252 = vpop.permute.xlu0 %2251
  %2253 = vrot.lane.b32.xlu0 %v1762, 12
  %v2254 = vpop.permute.xlu0 %2253
  %2255 = vrot.lane.b32.xlu0 %v1763, 12
  %v2256 = vpop.permute.xlu0 %2255
  %2257 = vrot.lane.b32.xlu0 %v1764, 12
  %v2258 = vpop.permute.xlu0 %2257
  %2259 = vrot.lane.b32.xlu0 %v1765, 12
  %v2260 = vpop.permute.xlu0 %2259
  %2261 = vrot.lane.b32.xlu0 %v1766, 12
  %v2262 = vpop.permute.xlu0 %2261
  %2263 = vrot.lane.b32.xlu0 %v1767, 12
  %v2264 = vpop.permute.xlu0 %2263
  %2265 = vrot.lane.b32.xlu0 %v1768, 12
  %v2266 = vpop.permute.xlu0 %2265
  %2267 = vrot.lane.b32.xlu0 %v1769, 12
  %v2268 = vpop.permute.xlu0 %2267
  %2269 = vrot.lane.b32.xlu0 %v1770, 12
  %v2270 = vpop.permute.xlu0 %2269
  %2271 = vrot.lane.b32.xlu0 %v1771, 12
  %v2272 = vpop.permute.xlu0 %2271
  %2273 = vrot.lane.b32.xlu0 %v1772, 12
  %v2274 = vpop.permute.xlu0 %2273
  %2275 = vrot.lane.b32.xlu0 %v1773, 12
  %v2276 = vpop.permute.xlu0 %2275
  %2277 = vrot.lane.b32.xlu0 %v1774, 12
  %v2278 = vpop.permute.xlu0 %2277
  %2279 = vrot.lane.b32.xlu0 %v1775, 12
  %v2280 = vpop.permute.xlu0 %2279
  %2281 = vrot.lane.b32.xlu0 %v1776, 12
  %v2282 = vpop.permute.xlu0 %2281
  %2283 = vrot.lane.b32.xlu0 %v1777, 12
  %v2284 = vpop.permute.xlu0 %2283
  %2285 = vrot.lane.b32.xlu0 %v1778, 12
  %v2286 = vpop.permute.xlu0 %2285
  %2359 = vrot.lane.b32.xlu0 %v1779, 16
  %v2360 = vpop.permute.xlu0 %2359
  %2361 = vrot.lane.b32.xlu0 %v1780, 16
  %v2362 = vpop.permute.xlu0 %2361
  %2363 = vrot.lane.b32.xlu0 %v1781, 16
  %v2364 = vpop.permute.xlu0 %2363
  %2365 = vrot.lane.b32.xlu0 %v1782, 16
  %v2366 = vpop.permute.xlu0 %2365
  %2367 = vrot.lane.b32.xlu0 %v1783, 16
  %v2368 = vpop.permute.xlu0 %2367
  %2369 = vrot.lane.b32.xlu0 %v1784, 16
  %v2370 = vpop.permute.xlu0 %2369
  %2371 = vrot.lane.b32.xlu0 %v1785, 16
  %v2372 = vpop.permute.xlu0 %2371
  %2373 = vrot.lane.b32.xlu0 %v1786, 16
  %v2374 = vpop.permute.xlu0 %2373
  %2375 = vrot.lane.b32.xlu0 %v1787, 16
  %v2376 = vpop.permute.xlu0 %2375
  %2377 = vrot.lane.b32.xlu0 %v1788, 16
  %v2378 = vpop.permute.xlu0 %2377
  %2379 = vrot.lane.b32.xlu0 %v1789, 16
  %v2380 = vpop.permute.xlu0 %2379
  %2381 = vrot.lane.b32.xlu0 %v1790, 16
  %v2382 = vpop.permute.xlu0 %2381
  %2383 = vrot.lane.b32.xlu0 %v1791, 16
  %v2384 = vpop.permute.xlu0 %2383
  %2385 = vrot.lane.b32.xlu0 %v1792, 16
  %v2386 = vpop.permute.xlu0 %2385
  %2387 = vrot.lane.b32.xlu0 %v1793, 16
  %v2388 = vpop.permute.xlu0 %2387
  %2389 = vrot.lane.b32.xlu0 %v1794, 16
  %v2390 = vpop.permute.xlu0 %2389
  %2391 = vrot.lane.b32.xlu0 %v1795, 16
  %v2392 = vpop.permute.xlu0 %2391
  %2393 = vrot.lane.b32.xlu0 %v1796, 16
  %v2394 = vpop.permute.xlu0 %2393
  %2395 = vrot.lane.b32.xlu0 %v1797, 16
  %v2396 = vpop.permute.xlu0 %2395
  %2397 = vrot.lane.b32.xlu0 %v1798, 16
  %v2398 = vpop.permute.xlu0 %2397
  %2399 = vrot.lane.b32.xlu0 %v1799, 16
  %v2400 = vpop.permute.xlu0 %2399
  %2401 = vrot.lane.b32.xlu0 %v1800, 16
  %v2402 = vpop.permute.xlu0 %2401
  %2403 = vrot.lane.b32.xlu0 %v1801, 16
  %v2404 = vpop.permute.xlu0 %2403
  %2405 = vrot.lane.b32.xlu0 %v1802, 16
  %v2406 = vpop.permute.xlu0 %2405
  %2407 = vrot.lane.b32.xlu0 %v1803, 16
  %v2408 = vpop.permute.xlu0 %2407
  %2409 = vrot.lane.b32.xlu0 %v1804, 16
  %v2410 = vpop.permute.xlu0 %2409
  %2411 = vrot.lane.b32.xlu0 %v1805, 16
  %v2412 = vpop.permute.xlu0 %2411
  %2413 = vrot.lane.b32.xlu0 %v1806, 16
  %v2414 = vpop.permute.xlu0 %2413
  %2415 = vrot.lane.b32.xlu0 %v1807, 16
  %v2416 = vpop.permute.xlu0 %2415
  %2417 = vrot.lane.b32.xlu0 %v1808, 16
  %v2418 = vpop.permute.xlu0 %2417
  %2419 = vrot.lane.b32.xlu0 %v1809, 16
  %v2420 = vpop.permute.xlu0 %2419
  %2421 = vrot.lane.b32.xlu0 %v1810, 16
  %v2422 = vpop.permute.xlu0 %2421
  %2423 = vrot.lane.b32.xlu0 %v1811, 16
  %v2424 = vpop.permute.xlu0 %2423
  %2425 = vrot.lane.b32.xlu0 %v1812, 16
  %v2426 = vpop.permute.xlu0 %2425
  %2427 = vrot.lane.b32.xlu0 %v1813, 16
  %v2428 = vpop.permute.xlu0 %2427
  %2429 = vrot.lane.b32.xlu0 %v1814, 16
  %v2430 = vpop.permute.xlu0 %2429
  %2503 = vrot.lane.b32.xlu0 %v1815, 20
  %v2504 = vpop.permute.xlu0 %2503
  %2505 = vrot.lane.b32.xlu0 %v1816, 20
  %v2506 = vpop.permute.xlu0 %2505
  %2507 = vrot.lane.b32.xlu0 %v1817, 20
  %v2508 = vpop.permute.xlu0 %2507
  %2509 = vrot.lane.b32.xlu0 %v1818, 20
  %v2510 = vpop.permute.xlu0 %2509
  %2511 = vrot.lane.b32.xlu0 %v1819, 20
  %v2512 = vpop.permute.xlu0 %2511
  %2513 = vrot.lane.b32.xlu0 %v1820, 20
  %v2514 = vpop.permute.xlu0 %2513
  %2515 = vrot.lane.b32.xlu0 %v1821, 20
  %v2516 = vpop.permute.xlu0 %2515
  %2517 = vrot.lane.b32.xlu0 %v1822, 20
  %v2518 = vpop.permute.xlu0 %2517
  %2519 = vrot.lane.b32.xlu0 %v1823, 20
  %v2520 = vpop.permute.xlu0 %2519
  %2521 = vrot.lane.b32.xlu0 %v1824, 20
  %v2522 = vpop.permute.xlu0 %2521
  %2523 = vrot.lane.b32.xlu0 %v1825, 20
  %v2524 = vpop.permute.xlu0 %2523
  %2525 = vrot.lane.b32.xlu0 %v1826, 20
  %v2526 = vpop.permute.xlu0 %2525
  %2527 = vrot.lane.b32.xlu0 %v1827, 20
  %v2528 = vpop.permute.xlu0 %2527
  %2529 = vrot.lane.b32.xlu0 %v1828, 20
  %v2530 = vpop.permute.xlu0 %2529
  %2531 = vrot.lane.b32.xlu0 %v1829, 20
  %v2532 = vpop.permute.xlu0 %2531
  %2533 = vrot.lane.b32.xlu0 %v1830, 20
  %v2534 = vpop.permute.xlu0 %2533
  %2535 = vrot.lane.b32.xlu0 %v1831, 20
  %v2536 = vpop.permute.xlu0 %2535
  %2537 = vrot.lane.b32.xlu0 %v1832, 20
  %v2538 = vpop.permute.xlu0 %2537
  %2539 = vrot.lane.b32.xlu0 %v1833, 20
  %v2540 = vpop.permute.xlu0 %2539
  %2541 = vrot.lane.b32.xlu0 %v1834, 20
  %v2542 = vpop.permute.xlu0 %2541
  %2543 = vrot.lane.b32.xlu0 %v1835, 20
  %v2544 = vpop.permute.xlu0 %2543
  %2545 = vrot.lane.b32.xlu0 %v1836, 20
  %v2546 = vpop.permute.xlu0 %2545
  %2547 = vrot.lane.b32.xlu0 %v1837, 20
  %v2548 = vpop.permute.xlu0 %2547
  %2549 = vrot.lane.b32.xlu0 %v1838, 20
  %v2550 = vpop.permute.xlu0 %2549
  %2551 = vrot.lane.b32.xlu0 %v1839, 20
  %v2552 = vpop.permute.xlu0 %2551
  %2553 = vrot.lane.b32.xlu0 %v1840, 20
  %v2554 = vpop.permute.xlu0 %2553
  %2555 = vrot.lane.b32.xlu0 %v1841, 20
  %v2556 = vpop.permute.xlu0 %2555
  %2557 = vrot.lane.b32.xlu0 %v1842, 20
  %v2558 = vpop.permute.xlu0 %2557
  %2559 = vrot.lane.b32.xlu0 %v1843, 20
  %v2560 = vpop.permute.xlu0 %2559
  %2561 = vrot.lane.b32.xlu0 %v1844, 20
  %v2562 = vpop.permute.xlu0 %2561
  %2563 = vrot.lane.b32.xlu0 %v1845, 20
  %v2564 = vpop.permute.xlu0 %2563
  %2565 = vrot.lane.b32.xlu0 %v1846, 20
  %v2566 = vpop.permute.xlu0 %2565
  %2567 = vrot.lane.b32.xlu0 %v1847, 20
  %v2568 = vpop.permute.xlu0 %2567
  %2569 = vrot.lane.b32.xlu0 %v1848, 20
  %v2570 = vpop.permute.xlu0 %2569
  %2571 = vrot.lane.b32.xlu0 %v1849, 20
  %v2572 = vpop.permute.xlu0 %2571
  %2573 = vrot.lane.b32.xlu0 %v1850, 20
  %v2574 = vpop.permute.xlu0 %2573
  %2613 = vrot.lane.b32.xlu0 %v1817, 24
  %v2614 = vpop.permute.xlu0 %2613
  %2615 = vrot.lane.b32.xlu0 %v1818, 24
  %v2616 = vpop.permute.xlu0 %2615
  %2617 = vrot.lane.b32.xlu0 %v1819, 24
  %v2618 = vpop.permute.xlu0 %2617
  %2619 = vrot.lane.b32.xlu0 %v1820, 24
  %v2620 = vpop.permute.xlu0 %2619
  %2621 = vrot.lane.b32.xlu0 %v1821, 24
  %v2622 = vpop.permute.xlu0 %2621
  %2623 = vrot.lane.b32.xlu0 %v1822, 24
  %v2624 = vpop.permute.xlu0 %2623
  %2625 = vrot.lane.b32.xlu0 %v1823, 24
  %v2626 = vpop.permute.xlu0 %2625
  %2627 = vrot.lane.b32.xlu0 %v1824, 24
  %v2628 = vpop.permute.xlu0 %2627
  %2629 = vrot.lane.b32.xlu0 %v1825, 24
  %v2630 = vpop.permute.xlu0 %2629
  %2631 = vrot.lane.b32.xlu0 %v1826, 24
  %v2632 = vpop.permute.xlu0 %2631
  %2633 = vrot.lane.b32.xlu0 %v1827, 24
  %v2634 = vpop.permute.xlu0 %2633
  %2635 = vrot.lane.b32.xlu0 %v1828, 24
  %v2636 = vpop.permute.xlu0 %2635
  %2637 = vrot.lane.b32.xlu0 %v1829, 24
  %v2638 = vpop.permute.xlu0 %2637
  %2639 = vrot.lane.b32.xlu0 %v1830, 24
  %v2640 = vpop.permute.xlu0 %2639
  %2641 = vrot.lane.b32.xlu0 %v1831, 24
  %v2642 = vpop.permute.xlu0 %2641
  %2643 = vrot.lane.b32.xlu0 %v1832, 24
  %v2644 = vpop.permute.xlu0 %2643
  %2645 = vrot.lane.b32.xlu0 %v1833, 24
  %v2646 = vpop.permute.xlu0 %2645
  %2647 = vrot.lane.b32.xlu0 %v1834, 24
  %v2648 = vpop.permute.xlu0 %2647
  %2649 = vrot.lane.b32.xlu0 %v1835, 24
  %v2650 = vpop.permute.xlu0 %2649
  %2651 = vrot.lane.b32.xlu0 %v1836, 24
  %v2652 = vpop.permute.xlu0 %2651
  %2653 = vrot.lane.b32.xlu0 %v1837, 24
  %v2654 = vpop.permute.xlu0 %2653
  %2655 = vrot.lane.b32.xlu0 %v1838, 24
  %v2656 = vpop.permute.xlu0 %2655
  %2657 = vrot.lane.b32.xlu0 %v1839, 24
  %v2658 = vpop.permute.xlu0 %2657
  %2659 = vrot.lane.b32.xlu0 %v1840, 24
  %v2660 = vpop.permute.xlu0 %2659
  %2661 = vrot.lane.b32.xlu0 %v1841, 24
  %v2662 = vpop.permute.xlu0 %2661
  %2663 = vrot.lane.b32.xlu0 %v1842, 24
  %v2664 = vpop.permute.xlu0 %2663
  %2665 = vrot.lane.b32.xlu0 %v1843, 24
  %v2666 = vpop.permute.xlu0 %2665
  %2667 = vrot.lane.b32.xlu0 %v1844, 24
  %v2668 = vpop.permute.xlu0 %2667
  %2669 = vrot.lane.b32.xlu0 %v1845, 24
  %v2670 = vpop.permute.xlu0 %2669
  %2671 = vrot.lane.b32.xlu0 %v1846, 24
  %v2672 = vpop.permute.xlu0 %2671
  %2673 = vrot.lane.b32.xlu0 %v1847, 24
  %v2674 = vpop.permute.xlu0 %2673
  %2675 = vrot.lane.b32.xlu0 %v1848, 24
  %v2676 = vpop.permute.xlu0 %2675
  %2677 = vrot.lane.b32.xlu0 %v1849, 24
  %v2678 = vpop.permute.xlu0 %2677
  %2679 = vrot.lane.b32.xlu0 %v1850, 24
  %v2680 = vpop.permute.xlu0 %2679
  %2681 = vrot.lane.b32.xlu0 %v1851, 24
  %v2682 = vpop.permute.xlu0 %2681
  %2683 = vrot.lane.b32.xlu0 %v1852, 24
  %v2684 = vpop.permute.xlu0 %2683
  %2757 = vrot.lane.b32.xlu0 %v1853, 28
  %v2758 = vpop.permute.xlu0 %2757
  %2759 = vrot.lane.b32.xlu0 %v1854, 28
  %v2760 = vpop.permute.xlu0 %2759
  %2761 = vrot.lane.b32.xlu0 %v1855, 28
  %v2762 = vpop.permute.xlu0 %2761
  %2763 = vrot.lane.b32.xlu0 %v1856, 28
  %v2764 = vpop.permute.xlu0 %2763
  %2765 = vrot.lane.b32.xlu0 %v1857, 28
  %v2766 = vpop.permute.xlu0 %2765
  %2767 = vrot.lane.b32.xlu0 %v1858, 28
  %v2768 = vpop.permute.xlu0 %2767
  %2769 = vrot.lane.b32.xlu0 %v1859, 28
  %v2770 = vpop.permute.xlu0 %2769
  %2771 = vrot.lane.b32.xlu0 %v1860, 28
  %v2772 = vpop.permute.xlu0 %2771
  %2773 = vrot.lane.b32.xlu0 %v1861, 28
  %v2774 = vpop.permute.xlu0 %2773
  %2775 = vrot.lane.b32.xlu0 %v1862, 28
  %v2776 = vpop.permute.xlu0 %2775
  %2777 = vrot.lane.b32.xlu0 %v1863, 28
  %v2778 = vpop.permute.xlu0 %2777
  %2779 = vrot.lane.b32.xlu0 %v1864, 28
  %v2780 = vpop.permute.xlu0 %2779
  %2781 = vrot.lane.b32.xlu0 %v1865, 28
  %v2782 = vpop.permute.xlu0 %2781
  %2783 = vrot.lane.b32.xlu0 %v1866, 28
  %v2784 = vpop.permute.xlu0 %2783
  %2785 = vrot.lane.b32.xlu0 %v1867, 28
  %v2786 = vpop.permute.xlu0 %2785
  %2787 = vrot.lane.b32.xlu0 %v1868, 28
  %v2788 = vpop.permute.xlu0 %2787
  %2789 = vrot.lane.b32.xlu0 %v1869, 28
  %v2790 = vpop.permute.xlu0 %2789
  %2791 = vrot.lane.b32.xlu0 %v1870, 28
  %v2792 = vpop.permute.xlu0 %2791
  %2793 = vrot.lane.b32.xlu0 %v1871, 28
  %v2794 = vpop.permute.xlu0 %2793
  %2795 = vrot.lane.b32.xlu0 %v1872, 28
  %v2796 = vpop.permute.xlu0 %2795
  %2797 = vrot.lane.b32.xlu0 %v1873, 28
  %v2798 = vpop.permute.xlu0 %2797
  %2799 = vrot.lane.b32.xlu0 %v1874, 28
  %v2800 = vpop.permute.xlu0 %2799
  %2801 = vrot.lane.b32.xlu0 %v1875, 28
  %v2802 = vpop.permute.xlu0 %2801
  %2803 = vrot.lane.b32.xlu0 %v1876, 28
  %v2804 = vpop.permute.xlu0 %2803
  %2805 = vrot.lane.b32.xlu0 %v1877, 28
  %v2806 = vpop.permute.xlu0 %2805
  %2807 = vrot.lane.b32.xlu0 %v1878, 28
  %v2808 = vpop.permute.xlu0 %2807
  %2809 = vrot.lane.b32.xlu0 %v1879, 28
  %v2810 = vpop.permute.xlu0 %2809
  %2811 = vrot.lane.b32.xlu0 %v1880, 28
  %v2812 = vpop.permute.xlu0 %2811
  %2813 = vrot.lane.b32.xlu0 %v1881, 28
  %v2814 = vpop.permute.xlu0 %2813
  %2815 = vrot.lane.b32.xlu0 %v1882, 28
  %v2816 = vpop.permute.xlu0 %2815
  %2817 = vrot.lane.b32.xlu0 %v1883, 28
  %v2818 = vpop.permute.xlu0 %2817
  %2819 = vrot.lane.b32.xlu0 %v1884, 28
  %v2820 = vpop.permute.xlu0 %2819
  %2821 = vrot.lane.b32.xlu0 %v1885, 28
  %v2822 = vpop.permute.xlu0 %2821
  %2823 = vrot.lane.b32.xlu0 %v1886, 28
  %v2824 = vpop.permute.xlu0 %2823
  %2825 = vrot.lane.b32.xlu0 %v1887, 28
  %v2826 = vpop.permute.xlu0 %2825
  %2827 = vrot.lane.b32.xlu0 %v1888, 28
  %v2828 = vpop.permute.xlu0 %2827
  %2901 = vrot.lane.b32.xlu0 %v1889, 32
  %v2902 = vpop.permute.xlu0 %2901
  %2903 = vrot.lane.b32.xlu0 %v1890, 32
  %v2904 = vpop.permute.xlu0 %2903
  %2905 = vrot.lane.b32.xlu0 %v1891, 32
  %v2906 = vpop.permute.xlu0 %2905
  %2907 = vrot.lane.b32.xlu0 %v1892, 32
  %v2908 = vpop.permute.xlu0 %2907
  %2909 = vrot.lane.b32.xlu0 %v1893, 32
  %v2910 = vpop.permute.xlu0 %2909
  %2911 = vrot.lane.b32.xlu0 %v1894, 32
  %v2912 = vpop.permute.xlu0 %2911
  %2913 = vrot.lane.b32.xlu0 %v1895, 32
  %v2914 = vpop.permute.xlu0 %2913
  %2915 = vrot.lane.b32.xlu0 %v1896, 32
  %v2916 = vpop.permute.xlu0 %2915
  %2917 = vrot.lane.b32.xlu0 %v1897, 32
  %v2918 = vpop.permute.xlu0 %2917
  %2919 = vrot.lane.b32.xlu0 %v1898, 32
  %v2920 = vpop.permute.xlu0 %2919
  %2921 = vrot.lane.b32.xlu0 %v1899, 32
  %v2922 = vpop.permute.xlu0 %2921
  %2923 = vrot.lane.b32.xlu0 %v1900, 32
  %v2924 = vpop.permute.xlu0 %2923
  %2925 = vrot.lane.b32.xlu0 %v1901, 32
  %v2926 = vpop.permute.xlu0 %2925
  %2927 = vrot.lane.b32.xlu0 %v1902, 32
  %v2928 = vpop.permute.xlu0 %2927
  %2929 = vrot.lane.b32.xlu0 %v1903, 32
  %v2930 = vpop.permute.xlu0 %2929
  %2931 = vrot.lane.b32.xlu0 %v1904, 32
  %v2932 = vpop.permute.xlu0 %2931
  %2933 = vrot.lane.b32.xlu0 %v1905, 32
  %v2934 = vpop.permute.xlu0 %2933
  %2935 = vrot.lane.b32.xlu0 %v1906, 32
  %v2936 = vpop.permute.xlu0 %2935
  %2937 = vrot.lane.b32.xlu0 %v1907, 32
  %v2938 = vpop.permute.xlu0 %2937
  %2939 = vrot.lane.b32.xlu0 %v1908, 32
  %v2940 = vpop.permute.xlu0 %2939
  %2941 = vrot.lane.b32.xlu0 %v1909, 32
  %v2942 = vpop.permute.xlu0 %2941
  %2943 = vrot.lane.b32.xlu0 %v1910, 32
  %v2944 = vpop.permute.xlu0 %2943
  %2945 = vrot.lane.b32.xlu0 %v1911, 32
  %v2946 = vpop.permute.xlu0 %2945
  %2947 = vrot.lane.b32.xlu0 %v1912, 32
  %v2948 = vpop.permute.xlu0 %2947
  %2949 = vrot.lane.b32.xlu0 %v1913, 32
  %v2950 = vpop.permute.xlu0 %2949
  %2951 = vrot.lane.b32.xlu0 %v1914, 32
  %v2952 = vpop.permute.xlu0 %2951
  %2953 = vrot.lane.b32.xlu0 %v1915, 32
  %v2954 = vpop.permute.xlu0 %2953
  %2955 = vrot.lane.b32.xlu0 %v1916, 32
  %v2956 = vpop.permute.xlu0 %2955
  %2957 = vrot.lane.b32.xlu0 %v1917, 32
  %v2958 = vpop.permute.xlu0 %2957
  %2959 = vrot.lane.b32.xlu0 %v1918, 32
  %v2960 = vpop.permute.xlu0 %2959
  %2961 = vrot.lane.b32.xlu0 %v1919, 32
  %v2962 = vpop.permute.xlu0 %2961
  %2963 = vrot.lane.b32.xlu0 %v1920, 32
  %v2964 = vpop.permute.xlu0 %2963
  %2965 = vrot.lane.b32.xlu0 %v1921, 32
  %v2966 = vpop.permute.xlu0 %2965
  %2967 = vrot.lane.b32.xlu0 %v1922, 32
  %v2968 = vpop.permute.xlu0 %2967
  %2969 = vrot.lane.b32.xlu0 %v1923, 32
  %v2970 = vpop.permute.xlu0 %2969
  %2971 = vrot.lane.b32.xlu0 %v1924, 32
  %v2972 = vpop.permute.xlu0 %2971
  %v3009 = vsel %vm1372, %v1669, %v1962
  %v3010 = vsel %vm1372, %v1670, %v1964
  %v3011 = vsel %vm1372, %v1671, %v1966
  %v3012 = vsel %vm1372, %v1672, %v1968
  %v3013 = vsel %vm1372, %v1673, %v1970
  %v3014 = vsel %vm1372, %v1674, %v1972
  %v3015 = vsel %vm1372, %v1675, %v1974
  %v3016 = vsel %vm1372, %v1676, %v1976
  %v3017 = vsel %vm1372, %v1677, %v1978
  %v3018 = vsel %vm1372, %v1678, %v1980
  %v3019 = vsel %vm1372, %v1679, %v1982
  %v3020 = vsel %vm1372, %v1680, %v1984
  %v3021 = vsel %vm1372, %v1681, %v1986
  %v3022 = vsel %vm1372, %v1682, %v1988
  %v3023 = vsel %vm1372, %v1683, %v1990
  %v3024 = vsel %vm1372, %v1684, %v1992
  %v3025 = vsel %vm1372, %v1685, %v1994
  %v3026 = vsel %vm1372, %v1686, %v1996
  %v3027 = vsel %vm1372, %v1687, %v1998
  %v3028 = vsel %vm1372, %v1688, %v2000
  %v3029 = vsel %vm1372, %v1689, %v2002
  %v3030 = vsel %vm1372, %v1690, %v2004
  %v3031 = vsel %vm1372, %v1691, %v2006
  %v3032 = vsel %vm1372, %v1692, %v2008
  %v3033 = vsel %vm1372, %v1693, %v2010
  %v3034 = vsel %vm1372, %v1694, %v2012
  %v3035 = vsel %vm1372, %v1695, %v2014
  %v3036 = vsel %vm1372, %v1696, %v2016
  %v3037 = vsel %vm1372, %v1697, %v2018
  %v3038 = vsel %vm1372, %v1698, %v2020
  %v3039 = vsel %vm1372, %v1699, %v2022
  %v3040 = vsel %vm1372, %v1700, %v2024
  %v3041 = vsel %vm1372, %v1701, %v2026
  %v3042 = vsel %vm1372, %v1702, %v2028
  %v3043 = vsel %vm1372, %v1703, %v2030
  %v3044 = vsel %vm1372, %v1704, %v2032
  %v3045 = vsel %vm1409, %v3009, %v2106
  %v3046 = vsel %vm1409, %v3010, %v2108
  %v3047 = vsel %vm1409, %v3011, %v2110
  %v3048 = vsel %vm1409, %v3012, %v2112
  %v3049 = vsel %vm1409, %v3013, %v2114
  %v3050 = vsel %vm1409, %v3014, %v2116
  %v3051 = vsel %vm1409, %v3015, %v2118
  %v3052 = vsel %vm1409, %v3016, %v2120
  %v3053 = vsel %vm1409, %v3017, %v2122
  %v3054 = vsel %vm1409, %v3018, %v2124
  %v3055 = vsel %vm1409, %v3019, %v2126
  %v3056 = vsel %vm1409, %v3020, %v2128
  %v3057 = vsel %vm1409, %v3021, %v2130
  %v3058 = vsel %vm1409, %v3022, %v2132
  %v3059 = vsel %vm1409, %v3023, %v2134
  %v3060 = vsel %vm1409, %v3024, %v2136
  %v3061 = vsel %vm1409, %v3025, %v2138
  %v3062 = vsel %vm1409, %v3026, %v2140
  %v3063 = vsel %vm1409, %v3027, %v2142
  %v3064 = vsel %vm1409, %v3028, %v2144
  %v3065 = vsel %vm1409, %v3029, %v2146
  %v3066 = vsel %vm1409, %v3030, %v2148
  %v3067 = vsel %vm1409, %v3031, %v2150
  %v3068 = vsel %vm1409, %v3032, %v2152
  %v3069 = vsel %vm1409, %v3033, %v2154
  %v3070 = vsel %vm1409, %v3034, %v2156
  %v3071 = vsel %vm1409, %v3035, %v2158
  %v3072 = vsel %vm1409, %v3036, %v2160
  %v3073 = vsel %vm1409, %v3037, %v2162
  %v3074 = vsel %vm1409, %v3038, %v2164
  %v3075 = vsel %vm1409, %v3039, %v2166
  %v3076 = vsel %vm1409, %v3040, %v2168
  %v3077 = vsel %vm1409, %v3041, %v2170
  %v3078 = vsel %vm1409, %v3042, %v2172
  %v3079 = vsel %vm1409, %v3043, %v2174
  %v3080 = vsel %vm1409, %v3044, %v2176
  %v3081 = vsel %vm1446, %v3045, %v2216
  %v3082 = vsel %vm1446, %v3046, %v2218
  %v3083 = vsel %vm1446, %v3047, %v2220
  %v3084 = vsel %vm1446, %v3048, %v2222
  %v3085 = vsel %vm1446, %v3049, %v2224
  %v3086 = vsel %vm1446, %v3050, %v2226
  %v3087 = vsel %vm1446, %v3051, %v2228
  %v3088 = vsel %vm1446, %v3052, %v2230
  %v3089 = vsel %vm1446, %v3053, %v2232
  %v3090 = vsel %vm1446, %v3054, %v2234
  %v3091 = vsel %vm1446, %v3055, %v2236
  %v3092 = vsel %vm1446, %v3056, %v2238
  %v3093 = vsel %vm1446, %v3057, %v2240
  %v3094 = vsel %vm1446, %v3058, %v2242
  %v3095 = vsel %vm1446, %v3059, %v2244
  %v3096 = vsel %vm1446, %v3060, %v2246
  %v3097 = vsel %vm1446, %v3061, %v2248
  %v3098 = vsel %vm1446, %v3062, %v2250
  %v3099 = vsel %vm1446, %v3063, %v2252
  %v3100 = vsel %vm1446, %v3064, %v2254
  %v3101 = vsel %vm1446, %v3065, %v2256
  %v3102 = vsel %vm1446, %v3066, %v2258
  %v3103 = vsel %vm1446, %v3067, %v2260
  %v3104 = vsel %vm1446, %v3068, %v2262
  %v3105 = vsel %vm1446, %v3069, %v2264
  %v3106 = vsel %vm1446, %v3070, %v2266
  %v3107 = vsel %vm1446, %v3071, %v2268
  %v3108 = vsel %vm1446, %v3072, %v2270
  %v3109 = vsel %vm1446, %v3073, %v2272
  %v3110 = vsel %vm1446, %v3074, %v2274
  %v3111 = vsel %vm1446, %v3075, %v2276
  %v3112 = vsel %vm1446, %v3076, %v2278
  %v3113 = vsel %vm1446, %v3077, %v2280
  %v3114 = vsel %vm1446, %v3078, %v2282
  %v3115 = vsel %vm1446, %v3079, %v2284
  %v3116 = vsel %vm1446, %v3080, %v2286
  %v3117 = vsel %vm1483, %v3081, %v2360
  %v3118 = vsel %vm1483, %v3082, %v2362
  %v3119 = vsel %vm1483, %v3083, %v2364
  %v3120 = vsel %vm1483, %v3084, %v2366
  %v3121 = vsel %vm1483, %v3085, %v2368
  %v3122 = vsel %vm1483, %v3086, %v2370
  %v3123 = vsel %vm1483, %v3087, %v2372
  %v3124 = vsel %vm1483, %v3088, %v2374
  %v3125 = vsel %vm1483, %v3089, %v2376
  %v3126 = vsel %vm1483, %v3090, %v2378
  %v3127 = vsel %vm1483, %v3091, %v2380
  %v3128 = vsel %vm1483, %v3092, %v2382
  %v3129 = vsel %vm1483, %v3093, %v2384
  %v3130 = vsel %vm1483, %v3094, %v2386
  %v3131 = vsel %vm1483, %v3095, %v2388
  %v3132 = vsel %vm1483, %v3096, %v2390
  %v3133 = vsel %vm1483, %v3097, %v2392
  %v3134 = vsel %vm1483, %v3098, %v2394
  %v3135 = vsel %vm1483, %v3099, %v2396
  %v3136 = vsel %vm1483, %v3100, %v2398
  %v3137 = vsel %vm1483, %v3101, %v2400
  %v3138 = vsel %vm1483, %v3102, %v2402
  %v3139 = vsel %vm1483, %v3103, %v2404
  %v3140 = vsel %vm1483, %v3104, %v2406
  %v3141 = vsel %vm1483, %v3105, %v2408
  %v3142 = vsel %vm1483, %v3106, %v2410
  %v3143 = vsel %vm1483, %v3107, %v2412
  %v3144 = vsel %vm1483, %v3108, %v2414
  %v3145 = vsel %vm1483, %v3109, %v2416
  %v3146 = vsel %vm1483, %v3110, %v2418
  %v3147 = vsel %vm1483, %v3111, %v2420
  %v3148 = vsel %vm1483, %v3112, %v2422
  %v3149 = vsel %vm1483, %v3113, %v2424
  %v3150 = vsel %vm1483, %v3114, %v2426
  %v3151 = vsel %vm1483, %v3115, %v2428
  %v3152 = vsel %vm1483, %v3116, %v2430
  %v3153 = vsel %vm1520, %v3117, %v2504
  %v3154 = vsel %vm1520, %v3118, %v2506
  %v3155 = vsel %vm1520, %v3119, %v2508
  %v3156 = vsel %vm1520, %v3120, %v2510
  %v3157 = vsel %vm1520, %v3121, %v2512
  %v3158 = vsel %vm1520, %v3122, %v2514
  %v3159 = vsel %vm1520, %v3123, %v2516
  %v3160 = vsel %vm1520, %v3124, %v2518
  %v3161 = vsel %vm1520, %v3125, %v2520
  %v3162 = vsel %vm1520, %v3126, %v2522
  %v3163 = vsel %vm1520, %v3127, %v2524
  %v3164 = vsel %vm1520, %v3128, %v2526
  %v3165 = vsel %vm1520, %v3129, %v2528
  %v3166 = vsel %vm1520, %v3130, %v2530
  %v3167 = vsel %vm1520, %v3131, %v2532
  %v3168 = vsel %vm1520, %v3132, %v2534
  %v3169 = vsel %vm1520, %v3133, %v2536
  %v3170 = vsel %vm1520, %v3134, %v2538
  %v3171 = vsel %vm1520, %v3135, %v2540
  %v3172 = vsel %vm1520, %v3136, %v2542
  %v3173 = vsel %vm1520, %v3137, %v2544
  %v3174 = vsel %vm1520, %v3138, %v2546
  %v3175 = vsel %vm1520, %v3139, %v2548
  %v3176 = vsel %vm1520, %v3140, %v2550
  %v3177 = vsel %vm1520, %v3141, %v2552
  %v3178 = vsel %vm1520, %v3142, %v2554
  %v3179 = vsel %vm1520, %v3143, %v2556
  %v3180 = vsel %vm1520, %v3144, %v2558
  %v3181 = vsel %vm1520, %v3145, %v2560
  %v3182 = vsel %vm1520, %v3146, %v2562
  %v3183 = vsel %vm1520, %v3147, %v2564
  %v3184 = vsel %vm1520, %v3148, %v2566
  %v3185 = vsel %vm1520, %v3149, %v2568
  %v3186 = vsel %vm1520, %v3150, %v2570
  %v3187 = vsel %vm1520, %v3151, %v2572
  %v3188 = vsel %vm1520, %v3152, %v2574
  %v3189 = vsel %vm1557, %v3153, %v2614
  %v3190 = vsel %vm1557, %v3154, %v2616
  %v3191 = vsel %vm1557, %v3155, %v2618
  %v3192 = vsel %vm1557, %v3156, %v2620
  %v3193 = vsel %vm1557, %v3157, %v2622
  %v3194 = vsel %vm1557, %v3158, %v2624
  %v3195 = vsel %vm1557, %v3159, %v2626
  %v3196 = vsel %vm1557, %v3160, %v2628
  %v3197 = vsel %vm1557, %v3161, %v2630
  %v3198 = vsel %vm1557, %v3162, %v2632
  %v3199 = vsel %vm1557, %v3163, %v2634
  %v3200 = vsel %vm1557, %v3164, %v2636
  %v3201 = vsel %vm1557, %v3165, %v2638
  %v3202 = vsel %vm1557, %v3166, %v2640
  %v3203 = vsel %vm1557, %v3167, %v2642
  %v3204 = vsel %vm1557, %v3168, %v2644
  %v3205 = vsel %vm1557, %v3169, %v2646
  %v3206 = vsel %vm1557, %v3170, %v2648
  %v3207 = vsel %vm1557, %v3171, %v2650
  %v3208 = vsel %vm1557, %v3172, %v2652
  %v3209 = vsel %vm1557, %v3173, %v2654
  %v3210 = vsel %vm1557, %v3174, %v2656
  %v3211 = vsel %vm1557, %v3175, %v2658
  %v3212 = vsel %vm1557, %v3176, %v2660
  %v3213 = vsel %vm1557, %v3177, %v2662
  %v3214 = vsel %vm1557, %v3178, %v2664
  %v3215 = vsel %vm1557, %v3179, %v2666
  %v3216 = vsel %vm1557, %v3180, %v2668
  %v3217 = vsel %vm1557, %v3181, %v2670
  %v3218 = vsel %vm1557, %v3182, %v2672
  %v3219 = vsel %vm1557, %v3183, %v2674
  %v3220 = vsel %vm1557, %v3184, %v2676
  %v3221 = vsel %vm1557, %v3185, %v2678
  %v3222 = vsel %vm1557, %v3186, %v2680
  %v3223 = vsel %vm1557, %v3187, %v2682
  %v3224 = vsel %vm1557, %v3188, %v2684
  %v3225 = vsel %vm1594, %v3189, %v2758
  %v3226 = vsel %vm1594, %v3190, %v2760
  %v3227 = vsel %vm1594, %v3191, %v2762
  %v3228 = vsel %vm1594, %v3192, %v2764
  %v3229 = vsel %vm1594, %v3193, %v2766
  %v3230 = vsel %vm1594, %v3194, %v2768
  %v3231 = vsel %vm1594, %v3195, %v2770
  %v3232 = vsel %vm1594, %v3196, %v2772
  %v3233 = vsel %vm1594, %v3197, %v2774
  %v3234 = vsel %vm1594, %v3198, %v2776
  %v3235 = vsel %vm1594, %v3199, %v2778
  %v3236 = vsel %vm1594, %v3200, %v2780
  %v3237 = vsel %vm1594, %v3201, %v2782
  %v3238 = vsel %vm1594, %v3202, %v2784
  %v3239 = vsel %vm1594, %v3203, %v2786
  %v3240 = vsel %vm1594, %v3204, %v2788
  %v3241 = vsel %vm1594, %v3205, %v2790
  %v3242 = vsel %vm1594, %v3206, %v2792
  %v3243 = vsel %vm1594, %v3207, %v2794
  %v3244 = vsel %vm1594, %v3208, %v2796
  %v3245 = vsel %vm1594, %v3209, %v2798
  %v3246 = vsel %vm1594, %v3210, %v2800
  %v3247 = vsel %vm1594, %v3211, %v2802
  %v3248 = vsel %vm1594, %v3212, %v2804
  %v3249 = vsel %vm1594, %v3213, %v2806
  %v3250 = vsel %vm1594, %v3214, %v2808
  %v3251 = vsel %vm1594, %v3215, %v2810
  %v3252 = vsel %vm1594, %v3216, %v2812
  %v3253 = vsel %vm1594, %v3217, %v2814
  %v3254 = vsel %vm1594, %v3218, %v2816
  %v3255 = vsel %vm1594, %v3219, %v2818
  %v3256 = vsel %vm1594, %v3220, %v2820
  %v3257 = vsel %vm1594, %v3221, %v2822
  %v3258 = vsel %vm1594, %v3222, %v2824
  %v3259 = vsel %vm1594, %v3223, %v2826
  %v3260 = vsel %vm1594, %v3224, %v2828
  %v3261 = vsel %vm1631, %v3225, %v2902
  %v3262 = vsel %vm1631, %v3226, %v2904
  %v3263 = vsel %vm1631, %v3227, %v2906
  %v3264 = vsel %vm1631, %v3228, %v2908
  %v3265 = vsel %vm1631, %v3229, %v2910
  %v3266 = vsel %vm1631, %v3230, %v2912
  %v3267 = vsel %vm1631, %v3231, %v2914
  %v3268 = vsel %vm1631, %v3232, %v2916
  %v3269 = vsel %vm1631, %v3233, %v2918
  %v3270 = vsel %vm1631, %v3234, %v2920
  %v3271 = vsel %vm1631, %v3235, %v2922
  %v3272 = vsel %vm1631, %v3236, %v2924
  %v3273 = vsel %vm1631, %v3237, %v2926
  %v3274 = vsel %vm1631, %v3238, %v2928
  %v3275 = vsel %vm1631, %v3239, %v2930
  %v3276 = vsel %vm1631, %v3240, %v2932
  %v3277 = vsel %vm1631, %v3241, %v2934
  %v3278 = vsel %vm1631, %v3242, %v2936
  %v3279 = vsel %vm1631, %v3243, %v2938
  %v3280 = vsel %vm1631, %v3244, %v2940
  %v3281 = vsel %vm1631, %v3245, %v2942
  %v3282 = vsel %vm1631, %v3246, %v2944
  %v3283 = vsel %vm1631, %v3247, %v2946
  %v3284 = vsel %vm1631, %v3248, %v2948
  %v3285 = vsel %vm1631, %v3249, %v2950
  %v3286 = vsel %vm1631, %v3250, %v2952
  %v3287 = vsel %vm1631, %v3251, %v2954
  %v3288 = vsel %vm1631, %v3252, %v2956
  %v3289 = vsel %vm1631, %v3253, %v2958
  %v3290 = vsel %vm1631, %v3254, %v2960
  %v3291 = vsel %vm1631, %v3255, %v2962
  %v3292 = vsel %vm1631, %v3256, %v2964
  %v3293 = vsel %vm1631, %v3257, %v2966
  %v3294 = vsel %vm1631, %v3258, %v2968
  %v3295 = vsel %vm1631, %v3259, %v2970
  %v3296 = vsel %vm1631, %v3260, %v2972
  %v3297 = vld [vmem:[%s3] sm:$0xff]
  %v3298 = vld [vmem:[%s3 + $0x8] sm:$0xff]
  %v3299 = vld [vmem:[%s3 + $0x10] sm:$0xff]
  %v3300 = vld [vmem:[%s3 + $0x18] sm:$0xff]
  %v3301 = vld [vmem:[%s3 + $0x20] sm:$0xf]
  %v3302 = vld [vmem:[%s5] sm:$0x1]
  %v3304 = vperm.slane %v3302, 0
  %vm3306 = vcmask 293888
  %v3308 = vsel %vm3306, %v1632, 0
  %v3311 = vsel %vm3306, %v1633, 0
  %v3314 = vsel %vm3306, %v1634, 0
  %v3317 = vsel %vm3306, %v1635, 0
  %v3320 = vsel %vm3306, %v1636, 0
  %v3323 = vsel %vm3306, %v1637, 0
  %v3326 = vsel %vm3306, %v1638, 0
  %v3329 = vsel %vm3306, %v1639, 0
  %v3332 = vsel %vm3306, %v1640, 0
  %v3335 = vsel %vm3306, %v1641, 0
  %v3338 = vsel %vm3306, %v1642, 0
  %v3341 = vsel %vm3306, %v1643, 0
  %v3344 = vsel %vm3306, %v1644, 0
  %v3347 = vsel %vm3306, %v1645, 0
  %v3350 = vsel %vm3306, %v1646, 0
  %v3353 = vsel %vm3306, %v1647, 0
  %v3356 = vsel %vm3306, %v1648, 0
  %v3359 = vsel %vm3306, %v1649, 0
  %v3362 = vsel %vm3306, %v1650, 0
  %v3365 = vsel %vm3306, %v1651, 0
  %v3368 = vsel %vm3306, %v1652, 0
  %v3371 = vsel %vm3306, %v1653, 0
  %v3374 = vsel %vm3306, %v1654, 0
  %v3377 = vsel %vm3306, %v1655, 0
  %v3380 = vsel %vm3306, %v1656, 0
  %v3383 = vsel %vm3306, %v1657, 0
  %v3386 = vsel %vm3306, %v1658, 0
  %v3389 = vsel %vm3306, %v1659, 0
  %v3392 = vsel %vm3306, %v1660, 0
  %v3395 = vsel %vm3306, %v1661, 0
  %v3398 = vsel %vm3306, %v1662, 0
  %v3401 = vsel %vm3306, %v1663, 0
  %v3404 = vsel %vm3306, %v1664, 0
  %v3407 = vsel %vm3306, %v1665, 0
  %v3410 = vsel %vm3306, %v1666, 0
  %v3413 = vsel %vm3306, %v1667, 0
  %v3416 = vsel %vm3306, %v3261, 0
  %v3419 = vsel %vm3306, %v3262, 0
  %v3422 = vsel %vm3306, %v3263, 0
  %v3425 = vsel %vm3306, %v3264, 0
  %v3428 = vsel %vm3306, %v3265, 0
  %v3431 = vsel %vm3306, %v3266, 0
  %v3434 = vsel %vm3306, %v3267, 0
  %v3437 = vsel %vm3306, %v3268, 0
  %v3440 = vsel %vm3306, %v3269, 0
  %v3443 = vsel %vm3306, %v3270, 0
  %v3446 = vsel %vm3306, %v3271, 0
  %v3449 = vsel %vm3306, %v3272, 0
  %v3452 = vsel %vm3306, %v3273, 0
  %v3455 = vsel %vm3306, %v3274, 0
  %v3458 = vsel %vm3306, %v3275, 0
  %v3461 = vsel %vm3306, %v3276, 0
  %v3464 = vsel %vm3306, %v3277, 0
  %v3467 = vsel %vm3306, %v3278, 0
  %v3470 = vsel %vm3306, %v3279, 0
  %v3473 = vsel %vm3306, %v3280, 0
  %v3476 = vsel %vm3306, %v3281, 0
  %v3479 = vsel %vm3306, %v3282, 0
  %v3482 = vsel %vm3306, %v3283, 0
  %v3485 = vsel %vm3306, %v3284, 0
  %v3488 = vsel %vm3306, %v3285, 0
  %v3491 = vsel %vm3306, %v3286, 0
  %v3494 = vsel %vm3306, %v3287, 0
  %v3497 = vsel %vm3306, %v3288, 0
  %v3500 = vsel %vm3306, %v3289, 0
  %v3503 = vsel %vm3306, %v3290, 0
  %v3506 = vsel %vm3306, %v3291, 0
  %v3509 = vsel %vm3306, %v3292, 0
  %v3512 = vsel %vm3306, %v3293, 0
  %v3515 = vsel %vm3306, %v3294, 0
  %v3518 = vsel %vm3306, %v3295, 0
  %v3521 = vsel %vm3306, %v3296, 0
  %vm3523 = vcmask 1043456
  %v3525 = vsel %vm3523, %v3301, 0
  %3527 = vmatpush.msra.mxu0 0.0
  %3528 = vmatpush.msra.mxu0 0.0
  %3529 = vmatpush.msra.mxu0 0.0
  %3530 = vmatpush.msra.mxu0 0.0
  %3531 = vmatpush.msra.mxu0 0.0
  %3532 = vmatpush.msra.mxu0 0.0
  %3533 = vmatpush.msra.mxu0 0.0
  %3534 = vmatpush.msra.mxu0 0.0
  %3535 = vmatpush.msra.mxu0 0.0
  %3536 = vmatpush.msra.mxu0 0.0
  %3537 = vmatpush.msra.mxu0 0.0
  %3538 = vmatpush.msra.mxu0 %v3525
  %3539 = vmatpush.msra.mxu0 %v3300
  %3540 = vmatpush.msra.mxu0 %v3299
  %3541 = vmatpush.msra.mxu0 %v3298
  %3542 = vmatpush.msra.mxu0 %v3297
  %3543 = vmatmul.f32.gmra.mxu0 %v3308
  %v3544 = vpop.f32.mrf.mxu0
  %v3545 = vadd.f32 %v3304, %v3544
  %3546 = vmatmul.f32.gmra.mxu0 %v3311
  %v3547 = vpop.f32.mrf.mxu0
  %v3548 = vadd.f32 %v3304, %v3547
  %3549 = vmatmul.f32.gmra.mxu0 %v3314
  %v3550 = vpop.f32.mrf.mxu0
  %v3551 = vadd.f32 %v3304, %v3550
  %3552 = vmatmul.f32.gmra.mxu0 %v3317
  %v3553 = vpop.f32.mrf.mxu0
  %v3554 = vadd.f32 %v3304, %v3553
  %3555 = vmatmul.f32.gmra.mxu0 %v3320
  %v3556 = vpop.f32.mrf.mxu0
  %v3557 = vadd.f32 %v3304, %v3556
  %3558 = vmatmul.f32.gmra.mxu0 %v3323
  %v3559 = vpop.f32.mrf.mxu0
  %v3560 = vadd.f32 %v3304, %v3559
  %3561 = vmatmul.f32.gmra.mxu0 %v3326
  %v3562 = vpop.f32.mrf.mxu0
  %v3563 = vadd.f32 %v3304, %v3562
  %3564 = vmatmul.f32.gmra.mxu0 %v3329
  %v3565 = vpop.f32.mrf.mxu0
  %v3566 = vadd.f32 %v3304, %v3565
  %3567 = vmatmul.f32.gmra.mxu0 %v3332
  %v3568 = vpop.f32.mrf.mxu0
  %v3569 = vadd.f32 %v3304, %v3568
  %3570 = vmatmul.f32.gmra.mxu0 %v3335
  %v3571 = vpop.f32.mrf.mxu0
  %v3572 = vadd.f32 %v3304, %v3571
  %3573 = vmatmul.f32.gmra.mxu0 %v3338
  %v3574 = vpop.f32.mrf.mxu0
  %v3575 = vadd.f32 %v3304, %v3574
  %3576 = vmatmul.f32.gmra.mxu0 %v3341
  %v3577 = vpop.f32.mrf.mxu0
  %v3578 = vadd.f32 %v3304, %v3577
  %3579 = vmatmul.f32.gmra.mxu0 %v3344
  %v3580 = vpop.f32.mrf.mxu0
  %v3581 = vadd.f32 %v3304, %v3580
  %3582 = vmatmul.f32.gmra.mxu0 %v3347
  %v3583 = vpop.f32.mrf.mxu0
  %v3584 = vadd.f32 %v3304, %v3583
  %3585 = vmatmul.f32.gmra.mxu0 %v3350
  %v3586 = vpop.f32.mrf.mxu0
  %v3587 = vadd.f32 %v3304, %v3586
  %3588 = vmatmul.f32.gmra.mxu0 %v3353
  %v3589 = vpop.f32.mrf.mxu0
  %v3590 = vadd.f32 %v3304, %v3589
  %3591 = vmatmul.f32.gmra.mxu0 %v3356
  %v3592 = vpop.f32.mrf.mxu0
  %v3593 = vadd.f32 %v3304, %v3592
  %3594 = vmatmul.f32.gmra.mxu0 %v3359
  %v3595 = vpop.f32.mrf.mxu0
  %v3596 = vadd.f32 %v3304, %v3595
  %3597 = vmatmul.f32.gmra.mxu0 %v3362
  %v3598 = vpop.f32.mrf.mxu0
  %v3599 = vadd.f32 %v3304, %v3598
  %3600 = vmatmul.f32.gmra.mxu0 %v3365
  %v3601 = vpop.f32.mrf.mxu0
  %v3602 = vadd.f32 %v3304, %v3601
  %3603 = vmatmul.f32.gmra.mxu0 %v3368
  %v3604 = vpop.f32.mrf.mxu0
  %v3605 = vadd.f32 %v3304, %v3604
  %3606 = vmatmul.f32.gmra.mxu0 %v3371
  %v3607 = vpop.f32.mrf.mxu0
  %v3608 = vadd.f32 %v3304, %v3607
  %3609 = vmatmul.f32.gmra.mxu0 %v3374
  %v3610 = vpop.f32.mrf.mxu0
  %v3611 = vadd.f32 %v3304, %v3610
  %3612 = vmatmul.f32.gmra.mxu0 %v3377
  %v3613 = vpop.f32.mrf.mxu0
  %v3614 = vadd.f32 %v3304, %v3613
  %3615 = vmatmul.f32.gmra.mxu0 %v3380
  %v3616 = vpop.f32.mrf.mxu0
  %v3617 = vadd.f32 %v3304, %v3616
  %3618 = vmatmul.f32.gmra.mxu0 %v3383
  %v3619 = vpop.f32.mrf.mxu0
  %v3620 = vadd.f32 %v3304, %v3619
  %3621 = vmatmul.f32.gmra.mxu0 %v3386
  %v3622 = vpop.f32.mrf.mxu0
  %v3623 = vadd.f32 %v3304, %v3622
  %3624 = vmatmul.f32.gmra.mxu0 %v3389
  %v3625 = vpop.f32.mrf.mxu0
  %v3626 = vadd.f32 %v3304, %v3625
  %3627 = vmatmul.f32.gmra.mxu0 %v3392
  %v3628 = vpop.f32.mrf.mxu0
  %v3629 = vadd.f32 %v3304, %v3628
  %3630 = vmatmul.f32.gmra.mxu0 %v3395
  %v3631 = vpop.f32.mrf.mxu0
  %v3632 = vadd.f32 %v3304, %v3631
  %3633 = vmatmul.f32.gmra.mxu0 %v3398
  %v3634 = vpop.f32.mrf.mxu0
  %v3635 = vadd.f32 %v3304, %v3634
  %3636 = vmatmul.f32.gmra.mxu0 %v3401
  %v3637 = vpop.f32.mrf.mxu0
  %v3638 = vadd.f32 %v3304, %v3637
  %3639 = vmatmul.f32.gmra.mxu0 %v3404
  %v3640 = vpop.f32.mrf.mxu0
  %v3641 = vadd.f32 %v3304, %v3640
  %3642 = vmatmul.f32.gmra.mxu0 %v3407
  %v3643 = vpop.f32.mrf.mxu0
  %v3644 = vadd.f32 %v3304, %v3643
  %3645 = vmatmul.f32.gmra.mxu0 %v3410
  %v3646 = vpop.f32.mrf.mxu0
  %v3647 = vadd.f32 %v3304, %v3646
  %3648 = vmatmul.f32.gmra.mxu0 %v3413
  %v3649 = vpop.f32.mrf.mxu0
  %v3650 = vadd.f32 %v3304, %v3649
  %3651 = vmatmul.f32.gmra.mxu0 %v3416
  %v3652 = vpop.f32.mrf.mxu0
  %v3653 = vadd.f32 %v3304, %v3652
  %3654 = vmatmul.f32.gmra.mxu0 %v3419
  %v3655 = vpop.f32.mrf.mxu0
  %v3656 = vadd.f32 %v3304, %v3655
  %3657 = vmatmul.f32.gmra.mxu0 %v3422
  %v3658 = vpop.f32.mrf.mxu0
  %v3659 = vadd.f32 %v3304, %v3658
  %3660 = vmatmul.f32.gmra.mxu0 %v3425
  %v3661 = vpop.f32.mrf.mxu0
  %v3662 = vadd.f32 %v3304, %v3661
  %3663 = vmatmul.f32.gmra.mxu0 %v3428
  %v3664 = vpop.f32.mrf.mxu0
  %v3665 = vadd.f32 %v3304, %v3664
  %3666 = vmatmul.f32.gmra.mxu0 %v3431
  %v3667 = vpop.f32.mrf.mxu0
  %v3668 = vadd.f32 %v3304, %v3667
  %3669 = vmatmul.f32.gmra.mxu0 %v3434
  %v3670 = vpop.f32.mrf.mxu0
  %v3671 = vadd.f32 %v3304, %v3670
  %3672 = vmatmul.f32.gmra.mxu0 %v3437
  %v3673 = vpop.f32.mrf.mxu0
  %v3674 = vadd.f32 %v3304, %v3673
  %3675 = vmatmul.f32.gmra.mxu0 %v3440
  %v3676 = vpop.f32.mrf.mxu0
  %v3677 = vadd.f32 %v3304, %v3676
  %3678 = vmatmul.f32.gmra.mxu0 %v3443
  %v3679 = vpop.f32.mrf.mxu0
  %v3680 = vadd.f32 %v3304, %v3679
  %3681 = vmatmul.f32.gmra.mxu0 %v3446
  %v3682 = vpop.f32.mrf.mxu0
  %v3683 = vadd.f32 %v3304, %v3682
  %3684 = vmatmul.f32.gmra.mxu0 %v3449
  %v3685 = vpop.f32.mrf.mxu0
  %v3686 = vadd.f32 %v3304, %v3685
  %3687 = vmatmul.f32.gmra.mxu0 %v3452
  %v3688 = vpop.f32.mrf.mxu0
  %v3689 = vadd.f32 %v3304, %v3688
  %3690 = vmatmul.f32.gmra.mxu0 %v3455
  %v3691 = vpop.f32.mrf.mxu0
  %v3692 = vadd.f32 %v3304, %v3691
  %3693 = vmatmul.f32.gmra.mxu0 %v3458
  %v3694 = vpop.f32.mrf.mxu0
  %v3695 = vadd.f32 %v3304, %v3694
  %3696 = vmatmul.f32.gmra.mxu0 %v3461
  %v3697 = vpop.f32.mrf.mxu0
  %v3698 = vadd.f32 %v3304, %v3697
  %3699 = vmatmul.f32.gmra.mxu0 %v3464
  %v3700 = vpop.f32.mrf.mxu0
  %v3701 = vadd.f32 %v3304, %v3700
  %3702 = vmatmul.f32.gmra.mxu0 %v3467
  %v3703 = vpop.f32.mrf.mxu0
  %v3704 = vadd.f32 %v3304, %v3703
  %3705 = vmatmul.f32.gmra.mxu0 %v3470
  %v3706 = vpop.f32.mrf.mxu0
  %v3707 = vadd.f32 %v3304, %v3706
  %3708 = vmatmul.f32.gmra.mxu0 %v3473
  %v3709 = vpop.f32.mrf.mxu0
  %v3710 = vadd.f32 %v3304, %v3709
  %3711 = vmatmul.f32.gmra.mxu0 %v3476
  %v3712 = vpop.f32.mrf.mxu0
  %v3713 = vadd.f32 %v3304, %v3712
  %3714 = vmatmul.f32.gmra.mxu0 %v3479
  %v3715 = vpop.f32.mrf.mxu0
  %v3716 = vadd.f32 %v3304, %v3715
  %3717 = vmatmul.f32.gmra.mxu0 %v3482
  %v3718 = vpop.f32.mrf.mxu0
  %v3719 = vadd.f32 %v3304, %v3718
  %3720 = vmatmul.f32.gmra.mxu0 %v3485
  %v3721 = vpop.f32.mrf.mxu0
  %v3722 = vadd.f32 %v3304, %v3721
  %3723 = vmatmul.f32.gmra.mxu0 %v3488
  %v3724 = vpop.f32.mrf.mxu0
  %v3725 = vadd.f32 %v3304, %v3724
  %3726 = vmatmul.f32.gmra.mxu0 %v3491
  %v3727 = vpop.f32.mrf.mxu0
  %v3728 = vadd.f32 %v3304, %v3727
  %3729 = vmatmul.f32.gmra.mxu0 %v3494
  %v3730 = vpop.f32.mrf.mxu0
  %v3731 = vadd.f32 %v3304, %v3730
  %3732 = vmatmul.f32.gmra.mxu0 %v3497
  %v3733 = vpop.f32.mrf.mxu0
  %v3734 = vadd.f32 %v3304, %v3733
  %3735 = vmatmul.f32.gmra.mxu0 %v3500
  %v3736 = vpop.f32.mrf.mxu0
  %v3737 = vadd.f32 %v3304, %v3736
  %3738 = vmatmul.f32.gmra.mxu0 %v3503
  %v3739 = vpop.f32.mrf.mxu0
  %v3740 = vadd.f32 %v3304, %v3739
  %3741 = vmatmul.f32.gmra.mxu0 %v3506
  %v3742 = vpop.f32.mrf.mxu0
  %v3743 = vadd.f32 %v3304, %v3742
  %3744 = vmatmul.f32.gmra.mxu0 %v3509
  %v3745 = vpop.f32.mrf.mxu0
  %v3746 = vadd.f32 %v3304, %v3745
  %3747 = vmatmul.f32.gmra.mxu0 %v3512
  %v3748 = vpop.f32.mrf.mxu0
  %v3749 = vadd.f32 %v3304, %v3748
  %3750 = vmatmul.f32.gmra.mxu0 %v3515
  %v3751 = vpop.f32.mrf.mxu0
  %v3752 = vadd.f32 %v3304, %v3751
  %3753 = vmatmul.f32.gmra.mxu0 %v3518
  %v3754 = vpop.f32.mrf.mxu0
  %v3755 = vadd.f32 %v3304, %v3754
  %3756 = vmatmul.f32.gmra.mxu0 %v3521
  %v3757 = vpop.f32.mrf.mxu0
  %v3758 = vadd.f32 %v3304, %v3757
  %3759 = vdwg.mxu0
  %v3760 = vld [vmem:[%s1] sm:$0xff]
  %v3761 = vld [vmem:[%s1 + $0x8] sm:$0x3]
  %v3762 = vmax.f32 %v3545, 0.0
  %v3763 = vmax.f32 %v3548, 0.0
  %v3764 = vmax.f32 %v3551, 0.0
  %v3765 = vmax.f32 %v3554, 0.0
  %v3766 = vmax.f32 %v3557, 0.0
  %v3767 = vmax.f32 %v3560, 0.0
  %v3768 = vmax.f32 %v3563, 0.0
  %v3769 = vmax.f32 %v3566, 0.0
  %v3770 = vmax.f32 %v3569, 0.0
  %v3771 = vmax.f32 %v3572, 0.0
  %v3772 = vmax.f32 %v3575, 0.0
  %v3773 = vmax.f32 %v3578, 0.0
  %v3774 = vmax.f32 %v3581, 0.0
  %v3775 = vmax.f32 %v3584, 0.0
  %v3776 = vmax.f32 %v3587, 0.0
  %v3777 = vmax.f32 %v3590, 0.0
  %v3778 = vmax.f32 %v3593, 0.0
  %v3779 = vmax.f32 %v3596, 0.0
  %v3780 = vmax.f32 %v3599, 0.0
  %v3781 = vmax.f32 %v3602, 0.0
  %v3782 = vmax.f32 %v3605, 0.0
  %v3783 = vmax.f32 %v3608, 0.0
  %v3784 = vmax.f32 %v3611, 0.0
  %v3785 = vmax.f32 %v3614, 0.0
  %v3786 = vmax.f32 %v3617, 0.0
  %v3787 = vmax.f32 %v3620, 0.0
  %v3788 = vmax.f32 %v3623, 0.0
  %v3789 = vmax.f32 %v3626, 0.0
  %v3790 = vmax.f32 %v3629, 0.0
  %v3791 = vmax.f32 %v3632, 0.0
  %v3792 = vmax.f32 %v3635, 0.0
  %v3793 = vmax.f32 %v3638, 0.0
  %v3794 = vmax.f32 %v3641, 0.0
  %v3795 = vmax.f32 %v3644, 0.0
  %v3796 = vmax.f32 %v3647, 0.0
  %v3797 = vmax.f32 %v3650, 0.0
  %v3798 = vmax.f32 %v3653, 0.0
  %v3799 = vmax.f32 %v3656, 0.0
  %v3800 = vmax.f32 %v3659, 0.0
  %v3801 = vmax.f32 %v3662, 0.0
  %v3802 = vmax.f32 %v3665, 0.0
  %v3803 = vmax.f32 %v3668, 0.0
  %v3804 = vmax.f32 %v3671, 0.0
  %v3805 = vmax.f32 %v3674, 0.0
  %v3806 = vmax.f32 %v3677, 0.0
  %v3807 = vmax.f32 %v3680, 0.0
  %v3808 = vmax.f32 %v3683, 0.0
  %v3809 = vmax.f32 %v3686, 0.0
  %v3810 = vmax.f32 %v3689, 0.0
  %v3811 = vmax.f32 %v3692, 0.0
  %v3812 = vmax.f32 %v3695, 0.0
  %v3813 = vmax.f32 %v3698, 0.0
  %v3814 = vmax.f32 %v3701, 0.0
  %v3815 = vmax.f32 %v3704, 0.0
  %v3816 = vmax.f32 %v3707, 0.0
  %v3817 = vmax.f32 %v3710, 0.0
  %v3818 = vmax.f32 %v3713, 0.0
  %v3819 = vmax.f32 %v3716, 0.0
  %v3820 = vmax.f32 %v3719, 0.0
  %v3821 = vmax.f32 %v3722, 0.0
  %v3822 = vmax.f32 %v3725, 0.0
  %v3823 = vmax.f32 %v3728, 0.0
  %v3824 = vmax.f32 %v3731, 0.0
  %v3825 = vmax.f32 %v3734, 0.0
  %v3826 = vmax.f32 %v3737, 0.0
  %v3827 = vmax.f32 %v3740, 0.0
  %v3828 = vmax.f32 %v3743, 0.0
  %v3829 = vmax.f32 %v3746, 0.0
  %v3830 = vmax.f32 %v3749, 0.0
  %v3831 = vmax.f32 %v3752, 0.0
  %v3832 = vmax.f32 %v3755, 0.0
  %v3833 = vmax.f32 %v3758, 0.0
  %3836 = vst [vmem:[#allocation1] ss:$4 sm:$0xff] %v3760
  %s3837 = scalar_lea.vmem [#allocation1], 32
  %3838 = vst [vmem:[%s3837] ss:$4 sm:$0xff] %v3761
  %v3839 = vld.sshfl [vmem:[#allocation1] sm:$0xff pattern:$0x73625140]
  %v3840 = vld.sshfl [vmem:[#allocation1 + $0x8] sm:$0xff pattern:$0x73625140]
  %v3841 = vld.sshfl [vmem:[#allocation1 + $0x10] sm:$0xff pattern:$0x73625140]
  %v3842 = vld.sshfl [vmem:[#allocation1 + $0x18] sm:$0xff pattern:$0x73625140]
  %v3843 = vld.sshfl [vmem:[#allocation1 + $0x20] sm:$0xff pattern:$0x73625140]
  %vm3848 = vcmask 523264
  %v3849 = vsel %vm3848, %v3843, 0
  %3851 = vmatpush.msra.mxu0 %v3777
  %3852 = vmatpush.msra.mxu0 %v3776
  %3853 = vmatpush.msra.mxu0 %v3775
  %3854 = vmatpush.msra.mxu0 %v3774
  %3855 = vmatpush.msra.mxu0 %v3773
  %3856 = vmatpush.msra.mxu0 %v3772
  %3857 = vmatpush.msra.mxu0 %v3771
  %3858 = vmatpush.msra.mxu0 %v3770
  %3859 = vmatpush.msra.mxu0 %v3769
  %3860 = vmatpush.msra.mxu0 %v3768
  %3861 = vmatpush.msra.mxu0 %v3767
  %3862 = vmatpush.msra.mxu0 %v3766
  %3863 = vmatpush.msra.mxu0 %v3765
  %3864 = vmatpush.msra.mxu0 %v3764
  %3865 = vmatpush.msra.mxu0 %v3763
  %3866 = vmatpush.msra.mxu0 %v3762
  %3867 = vmatmul.f32.gmra.mxu0 %v3839
  %v3868 = vpop.f32.mrf.mxu0
  %v3869 = vadd.f32 0.0, %v3868
  %3870 = vdwg.mxu0
  %3871 = vmatpush.msra.mxu0 %v3793
  %3872 = vmatpush.msra.mxu0 %v3792
  %3873 = vmatpush.msra.mxu0 %v3791
  %3874 = vmatpush.msra.mxu0 %v3790
  %3875 = vmatpush.msra.mxu0 %v3789
  %3876 = vmatpush.msra.mxu0 %v3788
  %3877 = vmatpush.msra.mxu0 %v3787
  %3878 = vmatpush.msra.mxu0 %v3786
  %3879 = vmatpush.msra.mxu0 %v3785
  %3880 = vmatpush.msra.mxu0 %v3784
  %3881 = vmatpush.msra.mxu0 %v3783
  %3882 = vmatpush.msra.mxu0 %v3782
  %3883 = vmatpush.msra.mxu0 %v3781
  %3884 = vmatpush.msra.mxu0 %v3780
  %3885 = vmatpush.msra.mxu0 %v3779
  %3886 = vmatpush.msra.mxu0 %v3778
  %3887 = vmatmul.f32.gmra.mxu0 %v3840
  %v3888 = vpop.f32.mrf.mxu0
  %v3889 = vadd.f32 %v3869, %v3888
  %3890 = vdwg.mxu0
  %3891 = vmatpush.msra.mxu0 %v3809
  %3892 = vmatpush.msra.mxu0 %v3808
  %3893 = vmatpush.msra.mxu0 %v3807
  %3894 = vmatpush.msra.mxu0 %v3806
  %3895 = vmatpush.msra.mxu0 %v3805
  %3896 = vmatpush.msra.mxu0 %v3804
  %3897 = vmatpush.msra.mxu0 %v3803
  %3898 = vmatpush.msra.mxu0 %v3802
  %3899 = vmatpush.msra.mxu0 %v3801
  %3900 = vmatpush.msra.mxu0 %v3800
  %3901 = vmatpush.msra.mxu0 %v3799
  %3902 = vmatpush.msra.mxu0 %v3798
  %3903 = vmatpush.msra.mxu0 %v3797
  %3904 = vmatpush.msra.mxu0 %v3796
  %3905 = vmatpush.msra.mxu0 %v3795
  %3906 = vmatpush.msra.mxu0 %v3794
  %3907 = vmatmul.f32.gmra.mxu0 %v3841
  %v3908 = vpop.f32.mrf.mxu0
  %v3909 = vadd.f32 %v3889, %v3908
  %3910 = vdwg.mxu0
  %3911 = vmatpush.msra.mxu0 %v3825
  %3912 = vmatpush.msra.mxu0 %v3824
  %3913 = vmatpush.msra.mxu0 %v3823
  %3914 = vmatpush.msra.mxu0 %v3822
  %3915 = vmatpush.msra.mxu0 %v3821
  %3916 = vmatpush.msra.mxu0 %v3820
  %3917 = vmatpush.msra.mxu0 %v3819
  %3918 = vmatpush.msra.mxu0 %v3818
  %3919 = vmatpush.msra.mxu0 %v3817
  %3920 = vmatpush.msra.mxu0 %v3816
  %3921 = vmatpush.msra.mxu0 %v3815
  %3922 = vmatpush.msra.mxu0 %v3814
  %3923 = vmatpush.msra.mxu0 %v3813
  %3924 = vmatpush.msra.mxu0 %v3812
  %3925 = vmatpush.msra.mxu0 %v3811
  %3926 = vmatpush.msra.mxu0 %v3810
  %3927 = vmatmul.f32.gmra.mxu0 %v3842
  %v3928 = vpop.f32.mrf.mxu0
  %v3929 = vadd.f32 %v3909, %v3928
  %3930 = vdwg.mxu0
  %3931 = vmatpush.msra.mxu0 0.0
  %3932 = vmatpush.msra.mxu0 0.0
  %3933 = vmatpush.msra.mxu0 0.0
  %3934 = vmatpush.msra.mxu0 0.0
  %3935 = vmatpush.msra.mxu0 0.0
  %3936 = vmatpush.msra.mxu0 0.0
  %3937 = vmatpush.msra.mxu0 0.0
  %3938 = vmatpush.msra.mxu0 0.0
  %3939 = vmatpush.msra.mxu0 %v3833
  %3940 = vmatpush.msra.mxu0 %v3832
  %3941 = vmatpush.msra.mxu0 %v3831
  %3942 = vmatpush.msra.mxu0 %v3830
  %3943 = vmatpush.msra.mxu0 %v3829
  %3944 = vmatpush.msra.mxu0 %v3828
  %3945 = vmatpush.msra.mxu0 %v3827
  %3946 = vmatpush.msra.mxu0 %v3826
  %3947 = vmatmul.f32.gmra.mxu0 %v3849
  %v3948 = vpop.f32.mrf.mxu0
  %v3949 = vadd.f32 %v3929, %v3948
  %3950 = vdwg.mxu0
  %v3951 = vld [vmem:[%s4] sm:$0xff]
  %v3952 = vld [vmem:[%s4 + $0x8] sm:$0xff]
  %v3953 = vld [vmem:[%s4 + $0x10] sm:$0xff]
  %v3954 = vld [vmem:[%s4 + $0x18] sm:$0xff]
  %v3955 = vld [vmem:[%s4 + $0x20] sm:$0xff]
  %v3956 = vld [vmem:[%s4 + $0x28] sm:$0xff]
  %v3957 = vld [vmem:[%s4 + $0x30] sm:$0xff]
  %v3958 = vld [vmem:[%s4 + $0x38] sm:$0xff]
  %v3959 = vld [vmem:[%s4 + $0x40] sm:$0xff]
  %v3961 = vsel %vm1409, %v3949, 0
  %3963 = vmatpush.msra.mxu0 0.0
  %3964 = vmatpush.msra.mxu0 0.0
  %3965 = vmatpush.msra.mxu0 0.0
  %3966 = vmatpush.msra.mxu0 0.0
  %3967 = vmatpush.msra.mxu0 0.0
  %3968 = vmatpush.msra.mxu0 0.0
  %3969 = vmatpush.msra.mxu0 0.0
  %3970 = vmatpush.msra.mxu0 0.0
  %3971 = vmatpush.msra.mxu0 0.0
  %3972 = vmatpush.msra.mxu0 0.0
  %3973 = vmatpush.msra.mxu0 0.0
  %3974 = vmatpush.msra.mxu0 0.0
  %3975 = vmatpush.msra.mxu0 0.0
  %3976 = vmatpush.msra.mxu0 0.0
  %3977 = vmatpush.msra.mxu0 0.0
  %3978 = vmatpush.msra.mxu0 %v3951
  %3979 = vmatmul.f32.gmra.mxu0 %v3961
  %v3980 = vpop.f32.mrf.mxu0
  %v3981 = vadd.f32 0.0, %v3980
  %3982 = vdwg.mxu0
  %3983 = vmatpush.msra.mxu0 0.0
  %3984 = vmatpush.msra.mxu0 0.0
  %3985 = vmatpush.msra.mxu0 0.0
  %3986 = vmatpush.msra.mxu0 0.0
  %3987 = vmatpush.msra.mxu0 0.0
  %3988 = vmatpush.msra.mxu0 0.0
  %3989 = vmatpush.msra.mxu0 0.0
  %3990 = vmatpush.msra.mxu0 0.0
  %3991 = vmatpush.msra.mxu0 0.0
  %3992 = vmatpush.msra.mxu0 0.0
  %3993 = vmatpush.msra.mxu0 0.0
  %3994 = vmatpush.msra.mxu0 0.0
  %3995 = vmatpush.msra.mxu0 0.0
  %3996 = vmatpush.msra.mxu0 0.0
  %3997 = vmatpush.msra.mxu0 0.0
  %3998 = vmatpush.msra.mxu0 %v3952
  %3999 = vmatmul.f32.gmra.mxu0 %v3961
  %v4000 = vpop.f32.mrf.mxu0
  %v4001 = vadd.f32 0.0, %v4000
  %4002 = vdwg.mxu0
  %4003 = vmatpush.msra.mxu0 0.0
  %4004 = vmatpush.msra.mxu0 0.0
  %4005 = vmatpush.msra.mxu0 0.0
  %4006 = vmatpush.msra.mxu0 0.0
  %4007 = vmatpush.msra.mxu0 0.0
  %4008 = vmatpush.msra.mxu0 0.0
  %4009 = vmatpush.msra.mxu0 0.0
  %4010 = vmatpush.msra.mxu0 0.0
  %4011 = vmatpush.msra.mxu0 0.0
  %4012 = vmatpush.msra.mxu0 0.0
  %4013 = vmatpush.msra.mxu0 0.0
  %4014 = vmatpush.msra.mxu0 0.0
  %4015 = vmatpush.msra.mxu0 0.0
  %4016 = vmatpush.msra.mxu0 0.0
  %4017 = vmatpush.msra.mxu0 0.0
  %4018 = vmatpush.msra.mxu0 %v3953
  %4019 = vmatmul.f32.gmra.mxu0 %v3961
  %v4020 = vpop.f32.mrf.mxu0
  %v4021 = vadd.f32 0.0, %v4020
  %4022 = vdwg.mxu0
  %4023 = vmatpush.msra.mxu0 0.0
  %4024 = vmatpush.msra.mxu0 0.0
  %4025 = vmatpush.msra.mxu0 0.0
  %4026 = vmatpush.msra.mxu0 0.0
  %4027 = vmatpush.msra.mxu0 0.0
  %4028 = vmatpush.msra.mxu0 0.0
  %4029 = vmatpush.msra.mxu0 0.0
  %4030 = vmatpush.msra.mxu0 0.0
  %4031 = vmatpush.msra.mxu0 0.0
  %4032 = vmatpush.msra.mxu0 0.0
  %4033 = vmatpush.msra.mxu0 0.0
  %4034 = vmatpush.msra.mxu0 0.0
  %4035 = vmatpush.msra.mxu0 0.0
  %4036 = vmatpush.msra.mxu0 0.0
  %4037 = vmatpush.msra.mxu0 0.0
  %4038 = vmatpush.msra.mxu0 %v3954
  %4039 = vmatmul.f32.gmra.mxu0 %v3961
  %v4040 = vpop.f32.mrf.mxu0
  %v4041 = vadd.f32 0.0, %v4040
  %4042 = vdwg.mxu0
  %4043 = vmatpush.msra.mxu0 0.0
  %4044 = vmatpush.msra.mxu0 0.0
  %4045 = vmatpush.msra.mxu0 0.0
  %4046 = vmatpush.msra.mxu0 0.0
  %4047 = vmatpush.msra.mxu0 0.0
  %4048 = vmatpush.msra.mxu0 0.0
  %4049 = vmatpush.msra.mxu0 0.0
  %4050 = vmatpush.msra.mxu0 0.0
  %4051 = vmatpush.msra.mxu0 0.0
  %4052 = vmatpush.msra.mxu0 0.0
  %4053 = vmatpush.msra.mxu0 0.0
  %4054 = vmatpush.msra.mxu0 0.0
  %4055 = vmatpush.msra.mxu0 0.0
  %4056 = vmatpush.msra.mxu0 0.0
  %4057 = vmatpush.msra.mxu0 0.0
  %4058 = vmatpush.msra.mxu0 %v3955
  %4059 = vmatmul.f32.gmra.mxu0 %v3961
  %v4060 = vpop.f32.mrf.mxu0
  %v4061 = vadd.f32 0.0, %v4060
  %4062 = vdwg.mxu0
  %4063 = vmatpush.msra.mxu0 0.0
  %4064 = vmatpush.msra.mxu0 0.0
  %4065 = vmatpush.msra.mxu0 0.0
  %4066 = vmatpush.msra.mxu0 0.0
  %4067 = vmatpush.msra.mxu0 0.0
  %4068 = vmatpush.msra.mxu0 0.0
  %4069 = vmatpush.msra.mxu0 0.0
  %4070 = vmatpush.msra.mxu0 0.0
  %4071 = vmatpush.msra.mxu0 0.0
  %4072 = vmatpush.msra.mxu0 0.0
  %4073 = vmatpush.msra.mxu0 0.0
  %4074 = vmatpush.msra.mxu0 0.0
  %4075 = vmatpush.msra.mxu0 0.0
  %4076 = vmatpush.msra.mxu0 0.0
  %4077 = vmatpush.msra.mxu0 0.0
  %4078 = vmatpush.msra.mxu0 %v3956
  %4079 = vmatmul.f32.gmra.mxu0 %v3961
  %v4080 = vpop.f32.mrf.mxu0
  %v4081 = vadd.f32 0.0, %v4080
  %4082 = vdwg.mxu0
  %4083 = vmatpush.msra.mxu0 0.0
  %4084 = vmatpush.msra.mxu0 0.0
  %4085 = vmatpush.msra.mxu0 0.0
  %4086 = vmatpush.msra.mxu0 0.0
  %4087 = vmatpush.msra.mxu0 0.0
  %4088 = vmatpush.msra.mxu0 0.0
  %4089 = vmatpush.msra.mxu0 0.0
  %4090 = vmatpush.msra.mxu0 0.0
  %4091 = vmatpush.msra.mxu0 0.0
  %4092 = vmatpush.msra.mxu0 0.0
  %4093 = vmatpush.msra.mxu0 0.0
  %4094 = vmatpush.msra.mxu0 0.0
  %4095 = vmatpush.msra.mxu0 0.0
  %4096 = vmatpush.msra.mxu0 0.0
  %4097 = vmatpush.msra.mxu0 0.0
  %4098 = vmatpush.msra.mxu0 %v3957
  %4099 = vmatmul.f32.gmra.mxu0 %v3961
  %v4100 = vpop.f32.mrf.mxu0
  %v4101 = vadd.f32 0.0, %v4100
  %4102 = vdwg.mxu0
  %4103 = vmatpush.msra.mxu0 0.0
  %4104 = vmatpush.msra.mxu0 0.0
  %4105 = vmatpush.msra.mxu0 0.0
  %4106 = vmatpush.msra.mxu0 0.0
  %4107 = vmatpush.msra.mxu0 0.0
  %4108 = vmatpush.msra.mxu0 0.0
  %4109 = vmatpush.msra.mxu0 0.0
  %4110 = vmatpush.msra.mxu0 0.0
  %4111 = vmatpush.msra.mxu0 0.0
  %4112 = vmatpush.msra.mxu0 0.0
  %4113 = vmatpush.msra.mxu0 0.0
  %4114 = vmatpush.msra.mxu0 0.0
  %4115 = vmatpush.msra.mxu0 0.0
  %4116 = vmatpush.msra.mxu0 0.0
  %4117 = vmatpush.msra.mxu0 0.0
  %4118 = vmatpush.msra.mxu0 %v3958
  %4119 = vmatmul.f32.gmra.mxu0 %v3961
  %v4120 = vpop.f32.mrf.mxu0
  %v4121 = vadd.f32 0.0, %v4120
  %4122 = vdwg.mxu0
  %4123 = vmatpush.msra.mxu0 0.0
  %4124 = vmatpush.msra.mxu0 0.0
  %4125 = vmatpush.msra.mxu0 0.0
  %4126 = vmatpush.msra.mxu0 0.0
  %4127 = vmatpush.msra.mxu0 0.0
  %4128 = vmatpush.msra.mxu0 0.0
  %4129 = vmatpush.msra.mxu0 0.0
  %4130 = vmatpush.msra.mxu0 0.0
  %4131 = vmatpush.msra.mxu0 0.0
  %4132 = vmatpush.msra.mxu0 0.0
  %4133 = vmatpush.msra.mxu0 0.0
  %4134 = vmatpush.msra.mxu0 0.0
  %4135 = vmatpush.msra.mxu0 0.0
  %4136 = vmatpush.msra.mxu0 0.0
  %4137 = vmatpush.msra.mxu0 0.0
  %4138 = vmatpush.msra.mxu0 %v3959
  %4139 = vmatmul.f32.gmra.mxu0 %v3961
  %v4140 = vpop.f32.mrf.mxu0
  %v4141 = vadd.f32 0.0, %v4140
  %4142 = vdwg.mxu0
  %vm4143 = vcmask 1040384
  %v4144 = vsel %vm4143, %v3981, 0.0
  %v4145 = vrot.slane %v4001, 7
  %vm4146 = vcmask 1041409
  %v4147 = vsel %vm4146, %v4145, %v4144
  %v4148 = vrot.slane %v4021, 6
  %vm4149 = vcmask 1042434
  %v4150 = vsel %vm4149, %v4148, %v4147
  %v4151 = vrot.slane %v4041, 5
  %vm4152 = vcmask 1043459
  %v4153 = vsel %vm4152, %v4151, %v4150
  %v4154 = vrot.slane %v4061, 4
  %vm4155 = vcmask 1044484
  %v4156 = vsel %vm4155, %v4154, %v4153
  %v4157 = vrot.slane %v4081, 3
  %vm4158 = vcmask 1045509
  %v4159 = vsel %vm4158, %v4157, %v4156
  %v4160 = vrot.slane %v4101, 2
  %vm4161 = vcmask 1046534
  %v4162 = vsel %vm4161, %v4160, %v4159
  %v4163 = vrot.slane %v4121, 1
  %vm4164 = vcmask 1047559
  %v4165 = vsel %vm4164, %v4163, %v4162
  %v4166 = vsel %vm4143, %v4141, 0.0
  %v4167 = vsel %vm4146, %v3981, %v4166
  %v4168 = vsel %vm4149, %v4145, %v4167
  %v4169 = vsel %vm4152, %v4148, %v4168
  %v4170 = vsel %vm4155, %v4151, %v4169
  %v4171 = vsel %vm4158, %v4154, %v4170
  %v4172 = vsel %vm4161, %v4157, %v4171
  %v4173 = vsel %vm4164, %v4160, %v4172
  %v4174 = vsel %vm4143, %v4163, 0.0
  %v4175 = vsel %vm4146, %v4141, %v4174
  %v4176 = vld [vmem:[%s2] sm:$0xff]
  %v4177 = vld [vmem:[%s2 + $0x8] sm:$0xff]
  %v4178 = vld [vmem:[%s2 + $0x10] sm:$0xff]
  %v4179 = vld [vmem:[%s2 + $0x18] sm:$0xff]
  %v4180 = vld [vmem:[%s2 + $0x20] sm:$0xff]
  %v4181 = vld [vmem:[%s2 + $0x28] sm:$0xff]
  %v4182 = vld [vmem:[%s2 + $0x30] sm:$0xff]
  %v4183 = vld [vmem:[%s2 + $0x38] sm:$0xff]
  %v4184 = vld [vmem:[%s2 + $0x40] sm:$0xff]
  %v4185 = vld [vmem:[%s2 + $0x48] sm:$0xff]
  %v4186 = vld [vmem:[%s2 + $0x50] sm:$0xff]
  %v4187 = vld [vmem:[%s2 + $0x58] sm:$0xff]
  %v4188 = vld [vmem:[%s2 + $0x60] sm:$0xff]
  %v4189 = vld [vmem:[%s2 + $0x68] sm:$0xff]
  %v4190 = vld [vmem:[%s2 + $0x70] sm:$0xff]
  %v4191 = vld [vmem:[%s2 + $0x78] sm:$0xff]
  %v4192 = vld [vmem:[%s2 + $0x80] sm:$0xff]
  %v4193 = vld [vmem:[%s2 + $0x88] sm:$0xff]
  %v4194 = vld [vmem:[%s2 + $0x90] sm:$0xff]
  %v4195 = vld [vmem:[%s2 + $0x98] sm:$0xff]
  %v4196 = vld [vmem:[%s2 + $0xa0] sm:$0xff]
  %v4197 = vld [vmem:[%s2 + $0xa8] sm:$0xff]
  %v4198 = vld [vmem:[%s2 + $0xb0] sm:$0xff]
  %v4199 = vld [vmem:[%s2 + $0xb8] sm:$0xff]
  %v4200 = vld [vmem:[%s2 + $0xc0] sm:$0xff]
  %v4201 = vld [vmem:[%s2 + $0xc8] sm:$0xff]
  %v4202 = vld [vmem:[%s2 + $0xd0] sm:$0xff]
  %v4203 = vld [vmem:[%s2 + $0xd8] sm:$0xff]
  %v4204 = vld [vmem:[%s2 + $0xe0] sm:$0xff]
  %v4205 = vld [vmem:[%s2 + $0xe8] sm:$0xff]
  %v4206 = vld [vmem:[%s2 + $0xf0] sm:$0xff]
  %v4207 = vld [vmem:[%s2 + $0xf8] sm:$0xff]
  %v4208 = vld [vmem:[%s2 + $0x100] sm:$0xff]
  %v4209 = vld [vmem:[%s2 + $0x108] sm:$0xff]
  %v4210 = vld [vmem:[%s2 + $0x110] sm:$0xff]
  %v4211 = vld [vmem:[%s2 + $0x118] sm:$0xff]
  %v4212 = vld [vmem:[%s2 + $0x120] sm:$0xff]
  %v4213 = vld [vmem:[%s2 + $0x128] sm:$0xff]
  %v4214 = vld [vmem:[%s2 + $0x130] sm:$0xff]
  %v4215 = vld [vmem:[%s2 + $0x138] sm:$0xff]
  %v4216 = vld [vmem:[%s2 + $0x140] sm:$0xff]
  %v4217 = vld [vmem:[%s2 + $0x148] sm:$0xff]
  %v4218 = vld [vmem:[%s2 + $0x150] sm:$0xff]
  %v4219 = vld [vmem:[%s2 + $0x158] sm:$0xff]
  %v4220 = vld [vmem:[%s2 + $0x160] sm:$0xff]
  %v4221 = vld [vmem:[%s2 + $0x168] sm:$0xff]
  %v4222 = vld [vmem:[%s2 + $0x170] sm:$0xff]
  %v4223 = vld [vmem:[%s2 + $0x178] sm:$0xff]
  %v4224 = vld [vmem:[%s2 + $0x180] sm:$0xff]
  %v4225 = vld [vmem:[%s2 + $0x188] sm:$0xff]
  %v4226 = vld [vmem:[%s2 + $0x190] sm:$0xff]
  %v4227 = vld [vmem:[%s2 + $0x198] sm:$0xff]
  %v4228 = vld [vmem:[%s2 + $0x1a0] sm:$0xff]
  %v4229 = vld [vmem:[%s2 + $0x1a8] sm:$0xff]
  %v4230 = vld [vmem:[%s2 + $0x1b0] sm:$0xff]
  %v4231 = vld [vmem:[%s2 + $0x1b8] sm:$0xff]
  %v4232 = vld [vmem:[%s2 + $0x1c0] sm:$0xff]
  %v4233 = vld [vmem:[%s2 + $0x1c8] sm:$0xff]
  %v4234 = vld [vmem:[%s2 + $0x1d0] sm:$0xff]
  %v4235 = vld [vmem:[%s2 + $0x1d8] sm:$0xff]
  %v4236 = vld [vmem:[%s2 + $0x1e0] sm:$0xff]
  %v4237 = vld [vmem:[%s2 + $0x1e8] sm:$0xff]
  %v4238 = vld [vmem:[%s2 + $0x1f0] sm:$0xff]
  %v4239 = vld [vmem:[%s2 + $0x1f8] sm:$0xff]
  %v4240 = vld [vmem:[%s2 + $0x200] sm:$0xff]
  %v4241 = vld [vmem:[%s2 + $0x208] sm:$0xff]
  %v4242 = vld [vmem:[%s2 + $0x210] sm:$0xff]
  %v4243 = vld [vmem:[%s2 + $0x218] sm:$0xff]
  %v4244 = vld [vmem:[%s2 + $0x220] sm:$0xff]
  %v4245 = vld [vmem:[%s2 + $0x228] sm:$0xff]
  %v4246 = vld [vmem:[%s2 + $0x230] sm:$0xff]
  %v4247 = vld [vmem:[%s2 + $0x238] sm:$0xff]
  %vm4248 = vcmask 146432
  %v4250 = vsel %vm4248, %v4176, 0
  %v4253 = vsel %vm4248, %v4177, 0
  %v4256 = vsel %vm4248, %v4178, 0
  %v4259 = vsel %vm4248, %v4179, 0
  %v4262 = vsel %vm4248, %v4180, 0
  %v4265 = vsel %vm4248, %v4181, 0
  %v4268 = vsel %vm4248, %v4182, 0
  %v4271 = vsel %vm4248, %v4183, 0
  %v4274 = vsel %vm4248, %v4184, 0
  %v4277 = vsel %vm4248, %v4185, 0
  %v4280 = vsel %vm4248, %v4186, 0
  %v4283 = vsel %vm4248, %v4187, 0
  %v4286 = vsel %vm4248, %v4188, 0
  %v4289 = vsel %vm4248, %v4189, 0
  %v4292 = vsel %vm4248, %v4190, 0
  %v4295 = vsel %vm4248, %v4191, 0
  %v4298 = vsel %vm4248, %v4192, 0
  %v4301 = vsel %vm4248, %v4193, 0
  %v4304 = vsel %vm4248, %v4194, 0
  %v4307 = vsel %vm4248, %v4195, 0
  %v4310 = vsel %vm4248, %v4196, 0
  %v4313 = vsel %vm4248, %v4197, 0
  %v4316 = vsel %vm4248, %v4198, 0
  %v4319 = vsel %vm4248, %v4199, 0
  %v4322 = vsel %vm4248, %v4200, 0
  %v4325 = vsel %vm4248, %v4201, 0
  %v4328 = vsel %vm4248, %v4202, 0
  %v4331 = vsel %vm4248, %v4203, 0
  %v4334 = vsel %vm4248, %v4204, 0
  %v4337 = vsel %vm4248, %v4205, 0
  %v4340 = vsel %vm4248, %v4206, 0
  %v4343 = vsel %vm4248, %v4207, 0
  %v4346 = vsel %vm4248, %v4208, 0
  %v4349 = vsel %vm4248, %v4209, 0
  %v4352 = vsel %vm4248, %v4210, 0
  %v4355 = vsel %vm4248, %v4211, 0
  %v4358 = vsel %vm4248, %v4212, 0
  %v4361 = vsel %vm4248, %v4213, 0
  %v4364 = vsel %vm4248, %v4214, 0
  %v4367 = vsel %vm4248, %v4215, 0
  %v4370 = vsel %vm4248, %v4216, 0
  %v4373 = vsel %vm4248, %v4217, 0
  %v4376 = vsel %vm4248, %v4218, 0
  %v4379 = vsel %vm4248, %v4219, 0
  %v4382 = vsel %vm4248, %v4220, 0
  %v4385 = vsel %vm4248, %v4221, 0
  %v4388 = vsel %vm4248, %v4222, 0
  %v4391 = vsel %vm4248, %v4223, 0
  %v4394 = vsel %vm4248, %v4224, 0
  %v4397 = vsel %vm4248, %v4225, 0
  %v4400 = vsel %vm4248, %v4226, 0
  %v4403 = vsel %vm4248, %v4227, 0
  %v4406 = vsel %vm4248, %v4228, 0
  %v4409 = vsel %vm4248, %v4229, 0
  %v4412 = vsel %vm4248, %v4230, 0
  %v4415 = vsel %vm4248, %v4231, 0
  %v4418 = vsel %vm4248, %v4232, 0
  %v4421 = vsel %vm4248, %v4233, 0
  %v4424 = vsel %vm4248, %v4234, 0
  %v4427 = vsel %vm4248, %v4235, 0
  %v4430 = vsel %vm4248, %v4236, 0
  %v4433 = vsel %vm4248, %v4237, 0
  %v4436 = vsel %vm4248, %v4238, 0
  %v4439 = vsel %vm4248, %v4239, 0
  %v4442 = vsel %vm4248, %v4240, 0
  %v4445 = vsel %vm4248, %v4241, 0
  %v4448 = vsel %vm4248, %v4242, 0
  %v4451 = vsel %vm4248, %v4243, 0
  %v4454 = vsel %vm4248, %v4244, 0
  %v4457 = vsel %vm4248, %v4245, 0
  %v4460 = vsel %vm4248, %v4246, 0
  %v4463 = vsel %vm4248, %v4247, 0
  %vm4465 = vcmask 1041408
  %v4467 = vsel %vm4465, %v4175, 0
  %4469 = vmatpush.msra.mxu0 0.0
  %4470 = vmatpush.msra.mxu0 0.0
  %4471 = vmatpush.msra.mxu0 0.0
  %4472 = vmatpush.msra.mxu0 0.0
  %4473 = vmatpush.msra.mxu0 0.0
  %4474 = vmatpush.msra.mxu0 0.0
  %4475 = vmatpush.msra.mxu0 0.0
  %4476 = vmatpush.msra.mxu0 0.0
  %4477 = vmatpush.msra.mxu0 0.0
  %4478 = vmatpush.msra.mxu0 0.0
  %4479 = vmatpush.msra.mxu0 0.0
  %4480 = vmatpush.msra.mxu0 0.0
  %4481 = vmatpush.msra.mxu0 0.0
  %4482 = vmatpush.msra.mxu0 %v4467
  %4483 = vmatpush.msra.mxu0 %v4173
  %4484 = vmatpush.msra.mxu0 %v4165
  %4485 = vmatmul.f32.gmra.mxu0 %v4250
  %v4486 = vpop.f32.mrf.mxu0
  %v4487 = vadd.f32 0.0, %v4486
  %4488 = vmatmul.f32.gmra.mxu0 %v4253
  %v4489 = vpop.f32.mrf.mxu0
  %v4490 = vadd.f32 0.0, %v4489
  %4491 = vmatmul.f32.gmra.mxu0 %v4256
  %v4492 = vpop.f32.mrf.mxu0
  %v4493 = vadd.f32 0.0, %v4492
  %4494 = vmatmul.f32.gmra.mxu0 %v4259
  %v4495 = vpop.f32.mrf.mxu0
  %v4496 = vadd.f32 0.0, %v4495
  %4497 = vmatmul.f32.gmra.mxu0 %v4262
  %v4498 = vpop.f32.mrf.mxu0
  %v4499 = vadd.f32 0.0, %v4498
  %4500 = vmatmul.f32.gmra.mxu0 %v4265
  %v4501 = vpop.f32.mrf.mxu0
  %v4502 = vadd.f32 0.0, %v4501
  %4503 = vmatmul.f32.gmra.mxu0 %v4268
  %v4504 = vpop.f32.mrf.mxu0
  %v4505 = vadd.f32 0.0, %v4504
  %4506 = vmatmul.f32.gmra.mxu0 %v4271
  %v4507 = vpop.f32.mrf.mxu0
  %v4508 = vadd.f32 0.0, %v4507
  %4509 = vmatmul.f32.gmra.mxu0 %v4274
  %v4510 = vpop.f32.mrf.mxu0
  %v4511 = vadd.f32 0.0, %v4510
  %4512 = vmatmul.f32.gmra.mxu0 %v4277
  %v4513 = vpop.f32.mrf.mxu0
  %v4514 = vadd.f32 0.0, %v4513
  %4515 = vmatmul.f32.gmra.mxu0 %v4280
  %v4516 = vpop.f32.mrf.mxu0
  %v4517 = vadd.f32 0.0, %v4516
  %4518 = vmatmul.f32.gmra.mxu0 %v4283
  %v4519 = vpop.f32.mrf.mxu0
  %v4520 = vadd.f32 0.0, %v4519
  %4521 = vmatmul.f32.gmra.mxu0 %v4286
  %v4522 = vpop.f32.mrf.mxu0
  %v4523 = vadd.f32 0.0, %v4522
  %4524 = vmatmul.f32.gmra.mxu0 %v4289
  %v4525 = vpop.f32.mrf.mxu0
  %v4526 = vadd.f32 0.0, %v4525
  %4527 = vmatmul.f32.gmra.mxu0 %v4292
  %v4528 = vpop.f32.mrf.mxu0
  %v4529 = vadd.f32 0.0, %v4528
  %4530 = vmatmul.f32.gmra.mxu0 %v4295
  %v4531 = vpop.f32.mrf.mxu0
  %v4532 = vadd.f32 0.0, %v4531
  %4533 = vmatmul.f32.gmra.mxu0 %v4298
  %v4534 = vpop.f32.mrf.mxu0
  %v4535 = vadd.f32 0.0, %v4534
  %4536 = vmatmul.f32.gmra.mxu0 %v4301
  %v4537 = vpop.f32.mrf.mxu0
  %v4538 = vadd.f32 0.0, %v4537
  %4539 = vmatmul.f32.gmra.mxu0 %v4304
  %v4540 = vpop.f32.mrf.mxu0
  %v4541 = vadd.f32 0.0, %v4540
  %4542 = vmatmul.f32.gmra.mxu0 %v4307
  %v4543 = vpop.f32.mrf.mxu0
  %v4544 = vadd.f32 0.0, %v4543
  %4545 = vmatmul.f32.gmra.mxu0 %v4310
  %v4546 = vpop.f32.mrf.mxu0
  %v4547 = vadd.f32 0.0, %v4546
  %4548 = vmatmul.f32.gmra.mxu0 %v4313
  %v4549 = vpop.f32.mrf.mxu0
  %v4550 = vadd.f32 0.0, %v4549
  %4551 = vmatmul.f32.gmra.mxu0 %v4316
  %v4552 = vpop.f32.mrf.mxu0
  %v4553 = vadd.f32 0.0, %v4552
  %4554 = vmatmul.f32.gmra.mxu0 %v4319
  %v4555 = vpop.f32.mrf.mxu0
  %v4556 = vadd.f32 0.0, %v4555
  %4557 = vmatmul.f32.gmra.mxu0 %v4322
  %v4558 = vpop.f32.mrf.mxu0
  %v4559 = vadd.f32 0.0, %v4558
  %4560 = vmatmul.f32.gmra.mxu0 %v4325
  %v4561 = vpop.f32.mrf.mxu0
  %v4562 = vadd.f32 0.0, %v4561
  %4563 = vmatmul.f32.gmra.mxu0 %v4328
  %v4564 = vpop.f32.mrf.mxu0
  %v4565 = vadd.f32 0.0, %v4564
  %4566 = vmatmul.f32.gmra.mxu0 %v4331
  %v4567 = vpop.f32.mrf.mxu0
  %v4568 = vadd.f32 0.0, %v4567
  %4569 = vmatmul.f32.gmra.mxu0 %v4334
  %v4570 = vpop.f32.mrf.mxu0
  %v4571 = vadd.f32 0.0, %v4570
  %4572 = vmatmul.f32.gmra.mxu0 %v4337
  %v4573 = vpop.f32.mrf.mxu0
  %v4574 = vadd.f32 0.0, %v4573
  %4575 = vmatmul.f32.gmra.mxu0 %v4340
  %v4576 = vpop.f32.mrf.mxu0
  %v4577 = vadd.f32 0.0, %v4576
  %4578 = vmatmul.f32.gmra.mxu0 %v4343
  %v4579 = vpop.f32.mrf.mxu0
  %v4580 = vadd.f32 0.0, %v4579
  %4581 = vmatmul.f32.gmra.mxu0 %v4346
  %v4582 = vpop.f32.mrf.mxu0
  %v4583 = vadd.f32 0.0, %v4582
  %4584 = vmatmul.f32.gmra.mxu0 %v4349
  %v4585 = vpop.f32.mrf.mxu0
  %v4586 = vadd.f32 0.0, %v4585
  %4587 = vmatmul.f32.gmra.mxu0 %v4352
  %v4588 = vpop.f32.mrf.mxu0
  %v4589 = vadd.f32 0.0, %v4588
  %4590 = vmatmul.f32.gmra.mxu0 %v4355
  %v4591 = vpop.f32.mrf.mxu0
  %v4592 = vadd.f32 0.0, %v4591
  %4593 = vmatmul.f32.gmra.mxu0 %v4358
  %v4594 = vpop.f32.mrf.mxu0
  %v4595 = vadd.f32 0.0, %v4594
  %4596 = vmatmul.f32.gmra.mxu0 %v4361
  %v4597 = vpop.f32.mrf.mxu0
  %v4598 = vadd.f32 0.0, %v4597
  %4599 = vmatmul.f32.gmra.mxu0 %v4364
  %v4600 = vpop.f32.mrf.mxu0
  %v4601 = vadd.f32 0.0, %v4600
  %4602 = vmatmul.f32.gmra.mxu0 %v4367
  %v4603 = vpop.f32.mrf.mxu0
  %v4604 = vadd.f32 0.0, %v4603
  %4605 = vmatmul.f32.gmra.mxu0 %v4370
  %v4606 = vpop.f32.mrf.mxu0
  %v4607 = vadd.f32 0.0, %v4606
  %4608 = vmatmul.f32.gmra.mxu0 %v4373
  %v4609 = vpop.f32.mrf.mxu0
  %v4610 = vadd.f32 0.0, %v4609
  %4611 = vmatmul.f32.gmra.mxu0 %v4376
  %v4612 = vpop.f32.mrf.mxu0
  %v4613 = vadd.f32 0.0, %v4612
  %4614 = vmatmul.f32.gmra.mxu0 %v4379
  %v4615 = vpop.f32.mrf.mxu0
  %v4616 = vadd.f32 0.0, %v4615
  %4617 = vmatmul.f32.gmra.mxu0 %v4382
  %v4618 = vpop.f32.mrf.mxu0
  %v4619 = vadd.f32 0.0, %v4618
  %4620 = vmatmul.f32.gmra.mxu0 %v4385
  %v4621 = vpop.f32.mrf.mxu0
  %v4622 = vadd.f32 0.0, %v4621
  %4623 = vmatmul.f32.gmra.mxu0 %v4388
  %v4624 = vpop.f32.mrf.mxu0
  %v4625 = vadd.f32 0.0, %v4624
  %4626 = vmatmul.f32.gmra.mxu0 %v4391
  %v4627 = vpop.f32.mrf.mxu0
  %v4628 = vadd.f32 0.0, %v4627
  %4629 = vmatmul.f32.gmra.mxu0 %v4394
  %v4630 = vpop.f32.mrf.mxu0
  %v4631 = vadd.f32 0.0, %v4630
  %4632 = vmatmul.f32.gmra.mxu0 %v4397
  %v4633 = vpop.f32.mrf.mxu0
  %v4634 = vadd.f32 0.0, %v4633
  %4635 = vmatmul.f32.gmra.mxu0 %v4400
  %v4636 = vpop.f32.mrf.mxu0
  %v4637 = vadd.f32 0.0, %v4636
  %4638 = vmatmul.f32.gmra.mxu0 %v4403
  %v4639 = vpop.f32.mrf.mxu0
  %v4640 = vadd.f32 0.0, %v4639
  %4641 = vmatmul.f32.gmra.mxu0 %v4406
  %v4642 = vpop.f32.mrf.mxu0
  %v4643 = vadd.f32 0.0, %v4642
  %4644 = vmatmul.f32.gmra.mxu0 %v4409
  %v4645 = vpop.f32.mrf.mxu0
  %v4646 = vadd.f32 0.0, %v4645
  %4647 = vmatmul.f32.gmra.mxu0 %v4412
  %v4648 = vpop.f32.mrf.mxu0
  %v4649 = vadd.f32 0.0, %v4648
  %4650 = vmatmul.f32.gmra.mxu0 %v4415
  %v4651 = vpop.f32.mrf.mxu0
  %v4652 = vadd.f32 0.0, %v4651
  %4653 = vmatmul.f32.gmra.mxu0 %v4418
  %v4654 = vpop.f32.mrf.mxu0
  %v4655 = vadd.f32 0.0, %v4654
  %4656 = vmatmul.f32.gmra.mxu0 %v4421
  %v4657 = vpop.f32.mrf.mxu0
  %v4658 = vadd.f32 0.0, %v4657
  %4659 = vmatmul.f32.gmra.mxu0 %v4424
  %v4660 = vpop.f32.mrf.mxu0
  %v4661 = vadd.f32 0.0, %v4660
  %4662 = vmatmul.f32.gmra.mxu0 %v4427
  %v4663 = vpop.f32.mrf.mxu0
  %v4664 = vadd.f32 0.0, %v4663
  %4665 = vmatmul.f32.gmra.mxu0 %v4430
  %v4666 = vpop.f32.mrf.mxu0
  %v4667 = vadd.f32 0.0, %v4666
  %4668 = vmatmul.f32.gmra.mxu0 %v4433
  %v4669 = vpop.f32.mrf.mxu0
  %v4670 = vadd.f32 0.0, %v4669
  %4671 = vmatmul.f32.gmra.mxu0 %v4436
  %v4672 = vpop.f32.mrf.mxu0
  %v4673 = vadd.f32 0.0, %v4672
  %4674 = vmatmul.f32.gmra.mxu0 %v4439
  %v4675 = vpop.f32.mrf.mxu0
  %v4676 = vadd.f32 0.0, %v4675
  %4677 = vmatmul.f32.gmra.mxu0 %v4442
  %v4678 = vpop.f32.mrf.mxu0
  %v4679 = vadd.f32 0.0, %v4678
  %4680 = vmatmul.f32.gmra.mxu0 %v4445
  %v4681 = vpop.f32.mrf.mxu0
  %v4682 = vadd.f32 0.0, %v4681
  %4683 = vmatmul.f32.gmra.mxu0 %v4448
  %v4684 = vpop.f32.mrf.mxu0
  %v4685 = vadd.f32 0.0, %v4684
  %4686 = vmatmul.f32.gmra.mxu0 %v4451
  %v4687 = vpop.f32.mrf.mxu0
  %v4688 = vadd.f32 0.0, %v4687
  %4689 = vmatmul.f32.gmra.mxu0 %v4454
  %v4690 = vpop.f32.mrf.mxu0
  %v4691 = vadd.f32 0.0, %v4690
  %4692 = vmatmul.f32.gmra.mxu0 %v4457
  %v4693 = vpop.f32.mrf.mxu0
  %v4694 = vadd.f32 0.0, %v4693
  %4695 = vmatmul.f32.gmra.mxu0 %v4460
  %v4696 = vpop.f32.mrf.mxu0
  %v4697 = vadd.f32 0.0, %v4696
  %4698 = vmatmul.f32.gmra.mxu0 %v4463
  %v4699 = vpop.f32.mrf.mxu0
  %v4700 = vadd.f32 0.0, %v4699
  %4701 = vdwg.mxu0
  %v4702 = vadd.f32 %v3545, %v4487
  %v4703 = vadd.f32 %v3548, %v4490
  %v4704 = vadd.f32 %v3551, %v4493
  %v4705 = vadd.f32 %v3554, %v4496
  %v4706 = vadd.f32 %v3557, %v4499
  %v4707 = vadd.f32 %v3560, %v4502
  %v4708 = vadd.f32 %v3563, %v4505
  %v4709 = vadd.f32 %v3566, %v4508
  %v4710 = vadd.f32 %v3569, %v4511
  %v4711 = vadd.f32 %v3572, %v4514
  %v4712 = vadd.f32 %v3575, %v4517
  %v4713 = vadd.f32 %v3578, %v4520
  %v4714 = vadd.f32 %v3581, %v4523
  %v4715 = vadd.f32 %v3584, %v4526
  %v4716 = vadd.f32 %v3587, %v4529
  %v4717 = vadd.f32 %v3590, %v4532
  %v4718 = vadd.f32 %v3593, %v4535
  %v4719 = vadd.f32 %v3596, %v4538
  %v4720 = vadd.f32 %v3599, %v4541
  %v4721 = vadd.f32 %v3602, %v4544
  %v4722 = vadd.f32 %v3605, %v4547
  %v4723 = vadd.f32 %v3608, %v4550
  %v4724 = vadd.f32 %v3611, %v4553
  %v4725 = vadd.f32 %v3614, %v4556
  %v4726 = vadd.f32 %v3617, %v4559
  %v4727 = vadd.f32 %v3620, %v4562
  %v4728 = vadd.f32 %v3623, %v4565
  %v4729 = vadd.f32 %v3626, %v4568
  %v4730 = vadd.f32 %v3629, %v4571
  %v4731 = vadd.f32 %v3632, %v4574
  %v4732 = vadd.f32 %v3635, %v4577
  %v4733 = vadd.f32 %v3638, %v4580
  %v4734 = vadd.f32 %v3641, %v4583
  %v4735 = vadd.f32 %v3644, %v4586
  %v4736 = vadd.f32 %v3647, %v4589
  %v4737 = vadd.f32 %v3650, %v4592
  %v4738 = vadd.f32 %v3653, %v4595
  %v4739 = vadd.f32 %v3656, %v4598
  %v4740 = vadd.f32 %v3659, %v4601
  %v4741 = vadd.f32 %v3662, %v4604
  %v4742 = vadd.f32 %v3665, %v4607
  %v4743 = vadd.f32 %v3668, %v4610
  %v4744 = vadd.f32 %v3671, %v4613
  %v4745 = vadd.f32 %v3674, %v4616
  %v4746 = vadd.f32 %v3677, %v4619
  %v4747 = vadd.f32 %v3680, %v4622
  %v4748 = vadd.f32 %v3683, %v4625
  %v4749 = vadd.f32 %v3686, %v4628
  %v4750 = vadd.f32 %v3689, %v4631
  %v4751 = vadd.f32 %v3692, %v4634
  %v4752 = vadd.f32 %v3695, %v4637
  %v4753 = vadd.f32 %v3698, %v4640
  %v4754 = vadd.f32 %v3701, %v4643
  %v4755 = vadd.f32 %v3704, %v4646
  %v4756 = vadd.f32 %v3707, %v4649
  %v4757 = vadd.f32 %v3710, %v4652
  %v4758 = vadd.f32 %v3713, %v4655
  %v4759 = vadd.f32 %v3716, %v4658
  %v4760 = vadd.f32 %v3719, %v4661
  %v4761 = vadd.f32 %v3722, %v4664
  %v4762 = vadd.f32 %v3725, %v4667
  %v4763 = vadd.f32 %v3728, %v4670
  %v4764 = vadd.f32 %v3731, %v4673
  %v4765 = vadd.f32 %v3734, %v4676
  %v4766 = vadd.f32 %v3737, %v4679
  %v4767 = vadd.f32 %v3740, %v4682
  %v4768 = vadd.f32 %v3743, %v4685
  %v4769 = vadd.f32 %v3746, %v4688
  %v4770 = vadd.f32 %v3749, %v4691
  %v4771 = vadd.f32 %v3752, %v4694
  %v4772 = vadd.f32 %v3755, %v4697
  %v4773 = vadd.f32 %v3758, %v4700
  %v4774 = vmax.f32 %v4702, 0.0
  %v4775 = vmax.f32 %v4703, 0.0
  %v4776 = vmax.f32 %v4704, 0.0
  %v4777 = vmax.f32 %v4705, 0.0
  %v4778 = vmax.f32 %v4706, 0.0
  %v4779 = vmax.f32 %v4707, 0.0
  %v4780 = vmax.f32 %v4708, 0.0
  %v4781 = vmax.f32 %v4709, 0.0
  %v4782 = vmax.f32 %v4710, 0.0
  %v4783 = vmax.f32 %v4711, 0.0
  %v4784 = vmax.f32 %v4712, 0.0
  %v4785 = vmax.f32 %v4713, 0.0
  %v4786 = vmax.f32 %v4714, 0.0
  %v4787 = vmax.f32 %v4715, 0.0
  %v4788 = vmax.f32 %v4716, 0.0
  %v4789 = vmax.f32 %v4717, 0.0
  %v4790 = vmax.f32 %v4718, 0.0
  %v4791 = vmax.f32 %v4719, 0.0
  %v4792 = vmax.f32 %v4720, 0.0
  %v4793 = vmax.f32 %v4721, 0.0
  %v4794 = vmax.f32 %v4722, 0.0
  %v4795 = vmax.f32 %v4723, 0.0
  %v4796 = vmax.f32 %v4724, 0.0
  %v4797 = vmax.f32 %v4725, 0.0
  %v4798 = vmax.f32 %v4726, 0.0
  %v4799 = vmax.f32 %v4727, 0.0
  %v4800 = vmax.f32 %v4728, 0.0
  %v4801 = vmax.f32 %v4729, 0.0
  %v4802 = vmax.f32 %v4730, 0.0
  %v4803 = vmax.f32 %v4731, 0.0
  %v4804 = vmax.f32 %v4732, 0.0
  %v4805 = vmax.f32 %v4733, 0.0
  %v4806 = vmax.f32 %v4734, 0.0
  %v4807 = vmax.f32 %v4735, 0.0
  %v4808 = vmax.f32 %v4736, 0.0
  %v4809 = vmax.f32 %v4737, 0.0
  %v4810 = vmax.f32 %v4738, 0.0
  %v4811 = vmax.f32 %v4739, 0.0
  %v4812 = vmax.f32 %v4740, 0.0
  %v4813 = vmax.f32 %v4741, 0.0
  %v4814 = vmax.f32 %v4742, 0.0
  %v4815 = vmax.f32 %v4743, 0.0
  %v4816 = vmax.f32 %v4744, 0.0
  %v4817 = vmax.f32 %v4745, 0.0
  %v4818 = vmax.f32 %v4746, 0.0
  %v4819 = vmax.f32 %v4747, 0.0
  %v4820 = vmax.f32 %v4748, 0.0
  %v4821 = vmax.f32 %v4749, 0.0
  %v4822 = vmax.f32 %v4750, 0.0
  %v4823 = vmax.f32 %v4751, 0.0
  %v4824 = vmax.f32 %v4752, 0.0
  %v4825 = vmax.f32 %v4753, 0.0
  %v4826 = vmax.f32 %v4754, 0.0
  %v4827 = vmax.f32 %v4755, 0.0
  %v4828 = vmax.f32 %v4756, 0.0
  %v4829 = vmax.f32 %v4757, 0.0
  %v4830 = vmax.f32 %v4758, 0.0
  %v4831 = vmax.f32 %v4759, 0.0
  %v4832 = vmax.f32 %v4760, 0.0
  %v4833 = vmax.f32 %v4761, 0.0
  %v4834 = vmax.f32 %v4762, 0.0
  %v4835 = vmax.f32 %v4763, 0.0
  %v4836 = vmax.f32 %v4764, 0.0
  %v4837 = vmax.f32 %v4765, 0.0
  %v4838 = vmax.f32 %v4766, 0.0
  %v4839 = vmax.f32 %v4767, 0.0
  %v4840 = vmax.f32 %v4768, 0.0
  %v4841 = vmax.f32 %v4769, 0.0
  %v4842 = vmax.f32 %v4770, 0.0
  %v4843 = vmax.f32 %v4771, 0.0
  %v4844 = vmax.f32 %v4772, 0.0
  %v4845 = vmax.f32 %v4773, 0.0
  %4846 = vst [vmem:[#allocation1] ss:$4 sm:$0xff] %v3760
  %s4847 = scalar_lea.vmem [#allocation1], 32
  %4848 = vst [vmem:[%s4847] ss:$4 sm:$0xff] %v3761
  %v4849 = vld.sshfl [vmem:[#allocation1] sm:$0xff pattern:$0x73625140]
  %v4850 = vld.sshfl [vmem:[#allocation1 + $0x8] sm:$0xff pattern:$0x73625140]
  %v4851 = vld.sshfl [vmem:[#allocation1 + $0x10] sm:$0xff pattern:$0x73625140]
  %v4852 = vld.sshfl [vmem:[#allocation1 + $0x18] sm:$0xff pattern:$0x73625140]
  %v4853 = vld.sshfl [vmem:[#allocation1 + $0x20] sm:$0xff pattern:$0x73625140]
  %v4858 = vsel %vm3848, %v4853, 0
  %4860 = vmatpush.msra.mxu0 %v4789
  %4861 = vmatpush.msra.mxu0 %v4788
  %4862 = vmatpush.msra.mxu0 %v4787
  %4863 = vmatpush.msra.mxu0 %v4786
  %4864 = vmatpush.msra.mxu0 %v4785
  %4865 = vmatpush.msra.mxu0 %v4784
  %4866 = vmatpush.msra.mxu0 %v4783
  %4867 = vmatpush.msra.mxu0 %v4782
  %4868 = vmatpush.msra.mxu0 %v4781
  %4869 = vmatpush.msra.mxu0 %v4780
  %4870 = vmatpush.msra.mxu0 %v4779
  %4871 = vmatpush.msra.mxu0 %v4778
  %4872 = vmatpush.msra.mxu0 %v4777
  %4873 = vmatpush.msra.mxu0 %v4776
  %4874 = vmatpush.msra.mxu0 %v4775
  %4875 = vmatpush.msra.mxu0 %v4774
  %4876 = vmatmul.f32.gmra.mxu0 %v4849
  %v4877 = vpop.f32.mrf.mxu0
  %v4878 = vadd.f32 0.0, %v4877
  %4879 = vdwg.mxu0
  %4880 = vmatpush.msra.mxu0 %v4805
  %4881 = vmatpush.msra.mxu0 %v4804
  %4882 = vmatpush.msra.mxu0 %v4803
  %4883 = vmatpush.msra.mxu0 %v4802
  %4884 = vmatpush.msra.mxu0 %v4801
  %4885 = vmatpush.msra.mxu0 %v4800
  %4886 = vmatpush.msra.mxu0 %v4799
  %4887 = vmatpush.msra.mxu0 %v4798
  %4888 = vmatpush.msra.mxu0 %v4797
  %4889 = vmatpush.msra.mxu0 %v4796
  %4890 = vmatpush.msra.mxu0 %v4795
  %4891 = vmatpush.msra.mxu0 %v4794
  %4892 = vmatpush.msra.mxu0 %v4793
  %4893 = vmatpush.msra.mxu0 %v4792
  %4894 = vmatpush.msra.mxu0 %v4791
  %4895 = vmatpush.msra.mxu0 %v4790
  %4896 = vmatmul.f32.gmra.mxu0 %v4850
  %v4897 = vpop.f32.mrf.mxu0
  %v4898 = vadd.f32 %v4878, %v4897
  %4899 = vdwg.mxu0
  %4900 = vmatpush.msra.mxu0 %v4821
  %4901 = vmatpush.msra.mxu0 %v4820
  %4902 = vmatpush.msra.mxu0 %v4819
  %4903 = vmatpush.msra.mxu0 %v4818
  %4904 = vmatpush.msra.mxu0 %v4817
  %4905 = vmatpush.msra.mxu0 %v4816
  %4906 = vmatpush.msra.mxu0 %v4815
  %4907 = vmatpush.msra.mxu0 %v4814
  %4908 = vmatpush.msra.mxu0 %v4813
  %4909 = vmatpush.msra.mxu0 %v4812
  %4910 = vmatpush.msra.mxu0 %v4811
  %4911 = vmatpush.msra.mxu0 %v4810
  %4912 = vmatpush.msra.mxu0 %v4809
  %4913 = vmatpush.msra.mxu0 %v4808
  %4914 = vmatpush.msra.mxu0 %v4807
  %4915 = vmatpush.msra.mxu0 %v4806
  %4916 = vmatmul.f32.gmra.mxu0 %v4851
  %v4917 = vpop.f32.mrf.mxu0
  %v4918 = vadd.f32 %v4898, %v4917
  %4919 = vdwg.mxu0
  %4920 = vmatpush.msra.mxu0 %v4837
  %4921 = vmatpush.msra.mxu0 %v4836
  %4922 = vmatpush.msra.mxu0 %v4835
  %4923 = vmatpush.msra.mxu0 %v4834
  %4924 = vmatpush.msra.mxu0 %v4833
  %4925 = vmatpush.msra.mxu0 %v4832
  %4926 = vmatpush.msra.mxu0 %v4831
  %4927 = vmatpush.msra.mxu0 %v4830
  %4928 = vmatpush.msra.mxu0 %v4829
  %4929 = vmatpush.msra.mxu0 %v4828
  %4930 = vmatpush.msra.mxu0 %v4827
  %4931 = vmatpush.msra.mxu0 %v4826
  %4932 = vmatpush.msra.mxu0 %v4825
  %4933 = vmatpush.msra.mxu0 %v4824
  %4934 = vmatpush.msra.mxu0 %v4823
  %4935 = vmatpush.msra.mxu0 %v4822
  %4936 = vmatmul.f32.gmra.mxu0 %v4852
  %v4937 = vpop.f32.mrf.mxu0
  %v4938 = vadd.f32 %v4918, %v4937
  %4939 = vdwg.mxu0
  %4940 = vmatpush.msra.mxu0 0.0
  %4941 = vmatpush.msra.mxu0 0.0
  %4942 = vmatpush.msra.mxu0 0.0
  %4943 = vmatpush.msra.mxu0 0.0
  %4944 = vmatpush.msra.mxu0 0.0
  %4945 = vmatpush.msra.mxu0 0.0
  %4946 = vmatpush.msra.mxu0 0.0
  %4947 = vmatpush.msra.mxu0 0.0
  %4948 = vmatpush.msra.mxu0 %v4845
  %4949 = vmatpush.msra.mxu0 %v4844
  %4950 = vmatpush.msra.mxu0 %v4843
  %4951 = vmatpush.msra.mxu0 %v4842
  %4952 = vmatpush.msra.mxu0 %v4841
  %4953 = vmatpush.msra.mxu0 %v4840
  %4954 = vmatpush.msra.mxu0 %v4839
  %4955 = vmatpush.msra.mxu0 %v4838
  %4956 = vmatmul.f32.gmra.mxu0 %v4858
  %v4957 = vpop.f32.mrf.mxu0
  %v4958 = vadd.f32 %v4938, %v4957
  %4959 = vdwg.mxu0
  %v4960 = vld [vmem:[%s6] sm:$0xff]
  %v4961 = vld [vmem:[%s6 + $0x8] sm:$0xff]
  %v4962 = vld [vmem:[%s6 + $0x10] sm:$0xff]
  %v4963 = vld [vmem:[%s6 + $0x18] sm:$0xff]
  %v4964 = vld [vmem:[%s6 + $0x20] sm:$0xff]
  %v4965 = vld [vmem:[%s6 + $0x28] sm:$0xff]
  %v4966 = vld [vmem:[%s6 + $0x30] sm:$0xff]
  %v4967 = vld [vmem:[%s6 + $0x38] sm:$0xff]
  %v4968 = vld [vmem:[%s6 + $0x40] sm:$0xff]
  %v4969 = vld [vmem:[%s6 + $0x48] sm:$0xff]
  %v4970 = vld [vmem:[%s6 + $0x50] sm:$0xff]
  %v4971 = vld [vmem:[%s6 + $0x58] sm:$0xff]
  %v4972 = vld [vmem:[%s6 + $0x60] sm:$0xff]
  %v4973 = vld [vmem:[%s6 + $0x68] sm:$0xff]
  %v4974 = vld [vmem:[%s6 + $0x70] sm:$0xff]
  %v4975 = vld [vmem:[%s6 + $0x78] sm:$0xff]
  %v4976 = vld [vmem:[%s7] sm:$0xff]
  %v4977 = vld [vmem:[%s7 + $0x8] sm:$0xff]
  %v4978 = vld [vmem:[%s7 + $0x10] sm:$0xff]
  %v4979 = vld [vmem:[%s7 + $0x18] sm:$0xff]
  %v4980 = vld [vmem:[%s7 + $0x20] sm:$0xff]
  %v4981 = vld [vmem:[%s7 + $0x28] sm:$0xff]
  %v4982 = vld [vmem:[%s7 + $0x30] sm:$0xff]
  %v4983 = vld [vmem:[%s7 + $0x38] sm:$0xff]
  %v4984 = vld [vmem:[%s7 + $0x40] sm:$0xff]
  %v4985 = vld [vmem:[%s7 + $0x48] sm:$0xff]
  %v4986 = vld [vmem:[%s7 + $0x50] sm:$0xff]
  %v4987 = vld [vmem:[%s7 + $0x58] sm:$0xff]
  %v4988 = vld [vmem:[%s7 + $0x60] sm:$0xff]
  %v4989 = vld [vmem:[%s7 + $0x68] sm:$0xff]
  %v4990 = vld [vmem:[%s7 + $0x70] sm:$0xff]
  %v4991 = vld [vmem:[%s7 + $0x78] sm:$0xff]
  %4992 = vmatpush.msra.mxu0 %v4991
  %4993 = vmatpush.msra.mxu0 %v4990
  %4994 = vmatpush.msra.mxu0 %v4989
  %4995 = vmatpush.msra.mxu0 %v4988
  %4996 = vmatpush.msra.mxu0 %v4987
  %4997 = vmatpush.msra.mxu0 %v4986
  %4998 = vmatpush.msra.mxu0 %v4985
  %4999 = vmatpush.msra.mxu0 %v4984
  %5000 = vmatpush.msra.mxu0 %v4983
  %5001 = vmatpush.msra.mxu0 %v4982
  %5002 = vmatpush.msra.mxu0 %v4981
  %5003 = vmatpush.msra.mxu0 %v4980
  %5004 = vmatpush.msra.mxu0 %v4979
  %5005 = vmatpush.msra.mxu0 %v4978
  %5006 = vmatpush.msra.mxu0 %v4977
  %5007 = vmatpush.msra.mxu0 %v4976
  %5008 = vmatmul.f32.gmra.mxu0 %v4958
  %v5009 = vpop.f32.mrf.mxu0
  %v5010 = vadd.f32 0.0, %v5009
  %5011 = vdwg.mxu0
  %5012 = vmatpush.msra.mxu0 %v4975
  %5013 = vmatpush.msra.mxu0 %v4974
  %5014 = vmatpush.msra.mxu0 %v4973
  %5015 = vmatpush.msra.mxu0 %v4972
  %5016 = vmatpush.msra.mxu0 %v4971
  %5017 = vmatpush.msra.mxu0 %v4970
  %5018 = vmatpush.msra.mxu0 %v4969
  %5019 = vmatpush.msra.mxu0 %v4968
  %5020 = vmatpush.msra.mxu0 %v4967
  %5021 = vmatpush.msra.mxu0 %v4966
  %5022 = vmatpush.msra.mxu0 %v4965
  %5023 = vmatpush.msra.mxu0 %v4964
  %5024 = vmatpush.msra.mxu0 %v4963
  %5025 = vmatpush.msra.mxu0 %v4962
  %5026 = vmatpush.msra.mxu0 %v4961
  %5027 = vmatpush.msra.mxu0 %v4960
  %5028 = vmatmul.f32.gmra.mxu0 %v3949
  %v5029 = vpop.f32.mrf.mxu0
  %v5030 = vadd.f32 %v5010, %v5029
  %5031 = vdwg.mxu0
  %v5032 = vld [vmem:[%s8] sm:$0x1]
  %v5034 = vperm.slane %v5032, 0
  %v5036 = vadd.f32 %v5030, %v5034
  %5037 = vst [vmem:[%s9] sm:$0x3] %v5036
  // Predicated region
  $region38: #{multi_domain_forward.1} parent=0 // pred_check
    _
  $region39: #{multi_domain_forward.1} parent=0 // pred_check_branch
    %5039 = sbr.rel (0) target = $region41
  $region40: #{multi_domain_forward.1} parent=0 // pred_region
    _
  $region41: #{multi_domain_forward.1} parent=0 // pred_fallthru
    _
  // Predicated region
  $region42: #{multi_domain_forward.1} parent=0 // pred_check
    _
  $region43: #{multi_domain_forward.1} parent=0 // pred_check_branch
    %5041 = sbr.rel (0) target = $region45
  $region44: #{multi_domain_forward.1} parent=0 // pred_region
    _
  $region45: #{multi_domain_forward.1} parent=0 // pred_fallthru
    _

</llo_original>
